<compile_context>
chip_gen: v6e
topology: v6e:2x2x1
jax: 0.10.0
libtpu: 0.0.40
codegen_flags: <defaults>
</compile_context>

<pallas_src>
import functools

import jax
import jax.numpy as jnp
from jax.experimental import pallas as pl
from jax.experimental.pallas import tpu as pltpu

EPS = 1e-5  # nn.InstanceNorm2d default (affine=False, track_running_stats=False)


def _reflect_pad1(z3, H, W):
    """Reflection pad (pad=1) on the last two dims of a (C, H, W) VMEM value."""
    zr = jnp.concatenate(
        [z3[:, 1:2, :], z3, z3[:, H - 2:H - 1, :]], axis=1)       # (C, H+2, W)
    zp = jnp.concatenate(
        [zr[:, :, 1:2], zr, zr[:, :, W - 2:W - 1]], axis=2)       # (C, H+2, W+2)
    return zp


def _conv3x3_instance_norm(z2d, w_ref, b_ref, C, H, W):
    """reflect-pad(1) -> conv3x3(valid) + bias -> InstanceNorm, all in VMEM.

    z2d   : (C, H*W) float32 activations (lane-dense)
    w_ref : (9, C_out, C_in) weights, tap-major ((ky*3+kx), out, in)
    b_ref : (C, 1) bias (channels on sublanes, matches activation layout)
    returns (C, H*W) float32
    """
    HW = H * W
    zp = _reflect_pad1(z2d.reshape(C, H, W), H, W)                # (C, H+2, W+2)

    acc = jnp.zeros((C, HW), jnp.float32)
    for ky in range(3):
        for kx in range(3):
            patch = zp[:, ky:ky + H, kx:kx + W].reshape(C, HW)
            wk = w_ref[ky * 3 + kx].astype(jnp.float32)           # (C_out, C_in)
            acc = acc + jnp.dot(wk, patch, preferred_element_type=jnp.float32)
    acc = acc + b_ref[...].astype(jnp.float32)                    # (C,1) bcast over lanes

    # One-pass InstanceNorm stats (biased variance, eps=1e-5), all f32.
    inv_n = 1.0 / HW
    mean = jnp.sum(acc, axis=1, keepdims=True) * inv_n
    var = jnp.maximum(
        jnp.sum(acc * acc, axis=1, keepdims=True) * inv_n - mean * mean, 0.0)
    return (acc - mean) * jax.lax.rsqrt(var + EPS)


def _resnet_block_kernel(x_ref, w1_ref, b1_ref, w2_ref, b2_ref, out_ref,
                         *, C, H, W):
    # One batch element per grid step; everything stays in VMEM.
    x = x_ref[0].astype(jnp.float32)                              # (C, H*W)
    h = jnp.maximum(_conv3x3_instance_norm(x, w1_ref, b1_ref, C, H, W), 0.0)
    y = _conv3x3_instance_norm(h, w2_ref, b2_ref, C, H, W)
    out_ref[0] = (x + y).astype(out_ref.dtype)                    # residual add


def resnet_block_forward(x, w1, b1, w2, b2):
    """x: (B, C, H, W) float32; w*: (C, C, 3, 3); b*: (C,)."""
    B, C, H, W = x.shape
    HW = H * W

    def taps(w):  # (C_out, C_in, 3, 3) -> (9, C_out, C_in), tap-major
        return jnp.transpose(w, (2, 3, 0, 1)).reshape(9, C, C)

    out2d = pl.pallas_call(
        functools.partial(_resnet_block_kernel, C=C, H=H, W=W),
        out_shape=jax.ShapeDtypeStruct((B, C, HW), x.dtype),
        grid_spec=pltpu.PrefetchScalarGridSpec(
            num_scalar_prefetch=0,
            grid=(B,),
            in_specs=[
                pl.BlockSpec((1, C, HW), lambda b: (b, 0, 0)),    # x, lane-dense
                pl.BlockSpec((9, C, C), lambda b: (0, 0, 0)),     # w1 taps
                pl.BlockSpec((C, 1), lambda b: (0, 0)),           # b1
                pl.BlockSpec((9, C, C), lambda b: (0, 0, 0)),     # w2 taps
                pl.BlockSpec((C, 1), lambda b: (0, 0)),           # b2
            ],
            out_specs=pl.BlockSpec((1, C, HW), lambda b: (b, 0, 0)),
        ),
        compiler_params=pltpu.CompilerParams(
            dimension_semantics=("parallel",)),
    )(x.reshape(B, C, HW), taps(w1), b1.reshape(C, 1),
      taps(w2), b2.reshape(C, 1))

    return out2d.reshape(B, C, H, W)


def _reference(x, w1, b1, w2, b2):
    """Pure-JAX reference matching the PyTorch module semantics."""
    def conv_in(t, w, b):
        tp = jnp.pad(t, ((0, 0), (0, 0), (1, 1), (1, 1)), mode="reflect")
        y = jax.lax.conv_general_dilated(
            tp, w, (1, 1), "VALID",
            dimension_numbers=("NCHW", "OIHW", "NCHW"))
        y = y + b[None, :, None, None]
        mean = y.mean(axis=(2, 3), keepdims=True)
        var = ((y - mean) ** 2).mean(axis=(2, 3), keepdims=True)
        return (y - mean) / jnp.sqrt(var + EPS)

    h = jnp.maximum(conv_in(x, w1, b1), 0.0)
    return x + conv_in(h, w2, b2)


if __name__ == "__main__":
    B, C, H, W = 2, 4, 16, 16

    key = jax.random.PRNGKey(0)
    kx, kw1, kb1, kw2, kb2 = jax.random.split(key, 5)

    x = jax.random.normal(kx, (B, C, H, W), dtype=jnp.float32)

    # Deterministic parameter init (PyTorch-style uniform bound 1/sqrt(fan_in)).
    bound = 1.0 / jnp.sqrt(jnp.float32(C * 3 * 3))
    w1 = jax.random.uniform(kw1, (C, C, 3, 3), jnp.float32, -bound, bound)
    b1 = jax.random.uniform(kb1, (C,), jnp.float32, -bound, bound)
    w2 = jax.random.uniform(kw2, (C, C, 3, 3), jnp.float32, -bound, bound)
    b2 = jax.random.uniform(kb2, (C,), jnp.float32, -bound, bound)

    out = resnet_block_forward(x, w1, b1, w2, b2)
    out = jax.block_until_ready(out)

    ref = jax.block_until_ready(_reference(x, w1, b1, w2, b2))
    assert out.shape == (B, C, H, W)
    assert jnp.allclose(out, ref, atol=1e-4, rtol=1e-4), "mismatch vs reference"

    print("KERNEL_OK")
</pallas_src>

<mosaic_0001>
module attributes {stable_mosaic.version = 11 : i64} {
  func.func @_resnet_block_kernel(%arg0: i32, %arg1: memref<1x4x256xf32, #tpu.memory_space<vmem>>, %arg2: memref<9x4x4xf32, #tpu.memory_space<vmem>>, %arg3: memref<4x1xf32, #tpu.memory_space<vmem>>, %arg4: memref<9x4x4xf32, #tpu.memory_space<vmem>>, %arg5: memref<4x1xf32, #tpu.memory_space<vmem>>, %arg6: memref<1x4x256xf32, #tpu.memory_space<vmem>>) attributes {dimension_semantics = [#tpu.dimension_semantics<parallel>], iteration_bounds = array<i64: 2>, scalar_prefetch = 0 : i64, scratch_operands = 0 : i64, tpu.core_type = #tpu.core_type<tc>, window_params = [{transform_indices = @transform_0, window_bounds = array<i64: 1, 4, 256>}, {pipeline_mode = #tpu.pipeline_mode<synchronous>, transform_indices = @transform_1, window_bounds = array<i64: 9, 4, 4>}, {pipeline_mode = #tpu.pipeline_mode<synchronous>, transform_indices = @transform_2, window_bounds = array<i64: 4, 1>}, {pipeline_mode = #tpu.pipeline_mode<synchronous>, transform_indices = @transform_3, window_bounds = array<i64: 9, 4, 4>}, {pipeline_mode = #tpu.pipeline_mode<synchronous>, transform_indices = @transform_4, window_bounds = array<i64: 4, 1>}, {transform_indices = @transform_5, window_bounds = array<i64: 1, 4, 256>}]} {
    %c0 = arith.constant 0 : index
    %c0_0 = arith.constant 0 : index
    %c0_1 = arith.constant 0 : index
    %0 = vector.load %arg1[%c0, %c0_0, %c0_1] : memref<1x4x256xf32, #tpu.memory_space<vmem>>, vector<1x4x256xf32>
    %1 = vector.shape_cast %0 : vector<1x4x256xf32> to vector<4x256xf32>
    %2 = vector.shape_cast %1 : vector<4x256xf32> to vector<4x16x16xf32>
    %3 = vector.extract_strided_slice %2 {offsets = [0, 1, 0], sizes = [4, 1, 16], strides = [1, 1, 1]} : vector<4x16x16xf32> to vector<4x1x16xf32>
    %4 = vector.extract_strided_slice %2 {offsets = [0, 14, 0], sizes = [4, 1, 16], strides = [1, 1, 1]} : vector<4x16x16xf32> to vector<4x1x16xf32>
    %5 = tpu.concatenate %3, %2, %4 in 1 : vector<4x1x16xf32>, vector<4x16x16xf32>, vector<4x1x16xf32> -> vector<4x18x16xf32>
    %6 = vector.extract_strided_slice %5 {offsets = [0, 0, 1], sizes = [4, 18, 1], strides = [1, 1, 1]} : vector<4x18x16xf32> to vector<4x18x1xf32>
    %7 = vector.extract_strided_slice %5 {offsets = [0, 0, 14], sizes = [4, 18, 1], strides = [1, 1, 1]} : vector<4x18x16xf32> to vector<4x18x1xf32>
    %8 = tpu.concatenate %6, %5, %7 in 2 : vector<4x18x1xf32>, vector<4x18x16xf32>, vector<4x18x1xf32> -> vector<4x18x18xf32>
    %cst = arith.constant 0.000000e+00 : f32
    %9 = vector.broadcast %cst : f32 to vector<4x256xf32>
    %10 = vector.extract_strided_slice %8 {offsets = [0, 0, 0], sizes = [4, 16, 16], strides = [1, 1, 1]} : vector<4x18x18xf32> to vector<4x16x16xf32>
    %11 = vector.shape_cast %10 : vector<4x16x16xf32> to vector<4x256xf32>
    %c0_2 = arith.constant 0 : index
    %c0_3 = arith.constant 0 : index
    %c0_4 = arith.constant 0 : index
    %12 = vector.load %arg2[%c0_2, %c0_3, %c0_4] : memref<9x4x4xf32, #tpu.memory_space<vmem>>, vector<1x4x4xf32>
    %13 = vector.shape_cast %12 : vector<1x4x4xf32> to vector<4x4xf32>
    %cst_5 = arith.constant dense<0.000000e+00> : vector<4x256xf32>
    %14 = tpu.matmul %13, %11, %cst_5 {dimension_numbers = #tpu.dot_dimension_numbers<[1], [0], [0], [1], [0, 0, 1, 1], [], []>} : vector<4x4xf32>, vector<4x256xf32>, vector<4x256xf32> -> vector<4x256xf32>
    %15 = arith.addf %9, %14 : vector<4x256xf32>
    %16 = vector.extract_strided_slice %8 {offsets = [0, 0, 1], sizes = [4, 16, 16], strides = [1, 1, 1]} : vector<4x18x18xf32> to vector<4x16x16xf32>
    %17 = vector.shape_cast %16 : vector<4x16x16xf32> to vector<4x256xf32>
    %c1 = arith.constant 1 : index
    %c0_6 = arith.constant 0 : index
    %c0_7 = arith.constant 0 : index
    %18 = vector.load %arg2[%c1, %c0_6, %c0_7] : memref<9x4x4xf32, #tpu.memory_space<vmem>>, vector<1x4x4xf32>
    %19 = vector.shape_cast %18 : vector<1x4x4xf32> to vector<4x4xf32>
    %cst_8 = arith.constant dense<0.000000e+00> : vector<4x256xf32>
    %20 = tpu.matmul %19, %17, %cst_8 {dimension_numbers = #tpu.dot_dimension_numbers<[1], [0], [0], [1], [0, 0, 1, 1], [], []>} : vector<4x4xf32>, vector<4x256xf32>, vector<4x256xf32> -> vector<4x256xf32>
    %21 = arith.addf %15, %20 : vector<4x256xf32>
    %22 = vector.extract_strided_slice %8 {offsets = [0, 0, 2], sizes = [4, 16, 16], strides = [1, 1, 1]} : vector<4x18x18xf32> to vector<4x16x16xf32>
    %23 = vector.shape_cast %22 : vector<4x16x16xf32> to vector<4x256xf32>
    %c2 = arith.constant 2 : index
    %c0_9 = arith.constant 0 : index
    %c0_10 = arith.constant 0 : index
    %24 = vector.load %arg2[%c2, %c0_9, %c0_10] : memref<9x4x4xf32, #tpu.memory_space<vmem>>, vector<1x4x4xf32>
    %25 = vector.shape_cast %24 : vector<1x4x4xf32> to vector<4x4xf32>
    %cst_11 = arith.constant dense<0.000000e+00> : vector<4x256xf32>
    %26 = tpu.matmul %25, %23, %cst_11 {dimension_numbers = #tpu.dot_dimension_numbers<[1], [0], [0], [1], [0, 0, 1, 1], [], []>} : vector<4x4xf32>, vector<4x256xf32>, vector<4x256xf32> -> vector<4x256xf32>
    %27 = arith.addf %21, %26 : vector<4x256xf32>
    %28 = vector.extract_strided_slice %8 {offsets = [0, 1, 0], sizes = [4, 16, 16], strides = [1, 1, 1]} : vector<4x18x18xf32> to vector<4x16x16xf32>
    %29 = vector.shape_cast %28 : vector<4x16x16xf32> to vector<4x256xf32>
    %c3 = arith.constant 3 : index
    %c0_12 = arith.constant 0 : index
    %c0_13 = arith.constant 0 : index
    %30 = vector.load %arg2[%c3, %c0_12, %c0_13] : memref<9x4x4xf32, #tpu.memory_space<vmem>>, vector<1x4x4xf32>
    %31 = vector.shape_cast %30 : vector<1x4x4xf32> to vector<4x4xf32>
    %cst_14 = arith.constant dense<0.000000e+00> : vector<4x256xf32>
    %32 = tpu.matmul %31, %29, %cst_14 {dimension_numbers = #tpu.dot_dimension_numbers<[1], [0], [0], [1], [0, 0, 1, 1], [], []>} : vector<4x4xf32>, vector<4x256xf32>, vector<4x256xf32> -> vector<4x256xf32>
    %33 = arith.addf %27, %32 : vector<4x256xf32>
    %34 = vector.extract_strided_slice %8 {offsets = [0, 1, 1], sizes = [4, 16, 16], strides = [1, 1, 1]} : vector<4x18x18xf32> to vector<4x16x16xf32>
    %35 = vector.shape_cast %34 : vector<4x16x16xf32> to vector<4x256xf32>
    %c4 = arith.constant 4 : index
    %c0_15 = arith.constant 0 : index
    %c0_16 = arith.constant 0 : index
    %36 = vector.load %arg2[%c4, %c0_15, %c0_16] : memref<9x4x4xf32, #tpu.memory_space<vmem>>, vector<1x4x4xf32>
    %37 = vector.shape_cast %36 : vector<1x4x4xf32> to vector<4x4xf32>
    %cst_17 = arith.constant dense<0.000000e+00> : vector<4x256xf32>
    %38 = tpu.matmul %37, %35, %cst_17 {dimension_numbers = #tpu.dot_dimension_numbers<[1], [0], [0], [1], [0, 0, 1, 1], [], []>} : vector<4x4xf32>, vector<4x256xf32>, vector<4x256xf32> -> vector<4x256xf32>
    %39 = arith.addf %33, %38 : vector<4x256xf32>
    %40 = vector.extract_strided_slice %8 {offsets = [0, 1, 2], sizes = [4, 16, 16], strides = [1, 1, 1]} : vector<4x18x18xf32> to vector<4x16x16xf32>
    %41 = vector.shape_cast %40 : vector<4x16x16xf32> to vector<4x256xf32>
    %c5 = arith.constant 5 : index
    %c0_18 = arith.constant 0 : index
    %c0_19 = arith.constant 0 : index
    %42 = vector.load %arg2[%c5, %c0_18, %c0_19] : memref<9x4x4xf32, #tpu.memory_space<vmem>>, vector<1x4x4xf32>
    %43 = vector.shape_cast %42 : vector<1x4x4xf32> to vector<4x4xf32>
    %cst_20 = arith.constant dense<0.000000e+00> : vector<4x256xf32>
    %44 = tpu.matmul %43, %41, %cst_20 {dimension_numbers = #tpu.dot_dimension_numbers<[1], [0], [0], [1], [0, 0, 1, 1], [], []>} : vector<4x4xf32>, vector<4x256xf32>, vector<4x256xf32> -> vector<4x256xf32>
    %45 = arith.addf %39, %44 : vector<4x256xf32>
    %46 = vector.extract_strided_slice %8 {offsets = [0, 2, 0], sizes = [4, 16, 16], strides = [1, 1, 1]} : vector<4x18x18xf32> to vector<4x16x16xf32>
    %47 = vector.shape_cast %46 : vector<4x16x16xf32> to vector<4x256xf32>
    %c6 = arith.constant 6 : index
    %c0_21 = arith.constant 0 : index
    %c0_22 = arith.constant 0 : index
    %48 = vector.load %arg2[%c6, %c0_21, %c0_22] : memref<9x4x4xf32, #tpu.memory_space<vmem>>, vector<1x4x4xf32>
    %49 = vector.shape_cast %48 : vector<1x4x4xf32> to vector<4x4xf32>
    %cst_23 = arith.constant dense<0.000000e+00> : vector<4x256xf32>
    %50 = tpu.matmul %49, %47, %cst_23 {dimension_numbers = #tpu.dot_dimension_numbers<[1], [0], [0], [1], [0, 0, 1, 1], [], []>} : vector<4x4xf32>, vector<4x256xf32>, vector<4x256xf32> -> vector<4x256xf32>
    %51 = arith.addf %45, %50 : vector<4x256xf32>
    %52 = vector.extract_strided_slice %8 {offsets = [0, 2, 1], sizes = [4, 16, 16], strides = [1, 1, 1]} : vector<4x18x18xf32> to vector<4x16x16xf32>
    %53 = vector.shape_cast %52 : vector<4x16x16xf32> to vector<4x256xf32>
    %c7 = arith.constant 7 : index
    %c0_24 = arith.constant 0 : index
    %c0_25 = arith.constant 0 : index
    %54 = vector.load %arg2[%c7, %c0_24, %c0_25] : memref<9x4x4xf32, #tpu.memory_space<vmem>>, vector<1x4x4xf32>
    %55 = vector.shape_cast %54 : vector<1x4x4xf32> to vector<4x4xf32>
    %cst_26 = arith.constant dense<0.000000e+00> : vector<4x256xf32>
    %56 = tpu.matmul %55, %53, %cst_26 {dimension_numbers = #tpu.dot_dimension_numbers<[1], [0], [0], [1], [0, 0, 1, 1], [], []>} : vector<4x4xf32>, vector<4x256xf32>, vector<4x256xf32> -> vector<4x256xf32>
    %57 = arith.addf %51, %56 : vector<4x256xf32>
    %58 = vector.extract_strided_slice %8 {offsets = [0, 2, 2], sizes = [4, 16, 16], strides = [1, 1, 1]} : vector<4x18x18xf32> to vector<4x16x16xf32>
    %59 = vector.shape_cast %58 : vector<4x16x16xf32> to vector<4x256xf32>
    %c8 = arith.constant 8 : index
    %c0_27 = arith.constant 0 : index
    %c0_28 = arith.constant 0 : index
    %60 = vector.load %arg2[%c8, %c0_27, %c0_28] : memref<9x4x4xf32, #tpu.memory_space<vmem>>, vector<1x4x4xf32>
    %61 = vector.shape_cast %60 : vector<1x4x4xf32> to vector<4x4xf32>
    %cst_29 = arith.constant dense<0.000000e+00> : vector<4x256xf32>
    %62 = tpu.matmul %61, %59, %cst_29 {dimension_numbers = #tpu.dot_dimension_numbers<[1], [0], [0], [1], [0, 0, 1, 1], [], []>} : vector<4x4xf32>, vector<4x256xf32>, vector<4x256xf32> -> vector<4x256xf32>
    %63 = arith.addf %57, %62 : vector<4x256xf32>
    %c0_30 = arith.constant 0 : index
    %c0_31 = arith.constant 0 : index
    %64 = vector.load %arg3[%c0_30, %c0_31] : memref<4x1xf32, #tpu.memory_space<vmem>>, vector<4x1xf32>
    %65 = vector.broadcast %64 : vector<4x1xf32> to vector<4x256xf32>
    %66 = arith.addf %63, %65 : vector<4x256xf32>
    %cst_32 = arith.constant dense<0.000000e+00> : vector<4xf32>
    %67 = vector.multi_reduction <add>, %66, %cst_32 [1] : vector<4x256xf32> to vector<4xf32>
    %68 = vector.shape_cast %67 : vector<4xf32> to vector<4x1xf32>
    %cst_33 = arith.constant 3.906250e-03 : f32
    %69 = vector.broadcast %cst_33 : f32 to vector<4x1xf32>
    %70 = arith.mulf %68, %69 : vector<4x1xf32>
    %71 = arith.mulf %66, %66 : vector<4x256xf32>
    %cst_34 = arith.constant dense<0.000000e+00> : vector<4xf32>
    %72 = vector.multi_reduction <add>, %71, %cst_34 [1] : vector<4x256xf32> to vector<4xf32>
    %73 = vector.shape_cast %72 : vector<4xf32> to vector<4x1xf32>
    %cst_35 = arith.constant 3.906250e-03 : f32
    %74 = vector.broadcast %cst_35 : f32 to vector<4x1xf32>
    %75 = arith.mulf %73, %74 : vector<4x1xf32>
    %76 = arith.mulf %70, %70 : vector<4x1xf32>
    %77 = arith.subf %75, %76 : vector<4x1xf32>
    %cst_36 = arith.constant 0.000000e+00 : f32
    %78 = vector.broadcast %cst_36 : f32 to vector<4x1xf32>
    %79 = arith.maximumf %77, %78 : vector<4x1xf32>
    %80 = vector.broadcast %70 : vector<4x1xf32> to vector<4x256xf32>
    %81 = arith.subf %66, %80 : vector<4x256xf32>
    %cst_37 = arith.constant 9.99999974E-6 : f32
    %82 = vector.broadcast %cst_37 : f32 to vector<4x1xf32>
    %83 = arith.addf %79, %82 : vector<4x1xf32>
    %84 = math.rsqrt %83 : vector<4x1xf32>
    %85 = vector.broadcast %84 : vector<4x1xf32> to vector<4x256xf32>
    %86 = arith.mulf %81, %85 : vector<4x256xf32>
    %cst_38 = arith.constant 0.000000e+00 : f32
    %87 = vector.broadcast %cst_38 : f32 to vector<4x256xf32>
    %88 = arith.maximumf %86, %87 : vector<4x256xf32>
    %89 = vector.shape_cast %88 : vector<4x256xf32> to vector<4x16x16xf32>
    %90 = vector.extract_strided_slice %89 {offsets = [0, 1, 0], sizes = [4, 1, 16], strides = [1, 1, 1]} : vector<4x16x16xf32> to vector<4x1x16xf32>
    %91 = vector.extract_strided_slice %89 {offsets = [0, 14, 0], sizes = [4, 1, 16], strides = [1, 1, 1]} : vector<4x16x16xf32> to vector<4x1x16xf32>
    %92 = tpu.concatenate %90, %89, %91 in 1 : vector<4x1x16xf32>, vector<4x16x16xf32>, vector<4x1x16xf32> -> vector<4x18x16xf32>
    %93 = vector.extract_strided_slice %92 {offsets = [0, 0, 1], sizes = [4, 18, 1], strides = [1, 1, 1]} : vector<4x18x16xf32> to vector<4x18x1xf32>
    %94 = vector.extract_strided_slice %92 {offsets = [0, 0, 14], sizes = [4, 18, 1], strides = [1, 1, 1]} : vector<4x18x16xf32> to vector<4x18x1xf32>
    %95 = tpu.concatenate %93, %92, %94 in 2 : vector<4x18x1xf32>, vector<4x18x16xf32>, vector<4x18x1xf32> -> vector<4x18x18xf32>
    %cst_39 = arith.constant 0.000000e+00 : f32
    %96 = vector.broadcast %cst_39 : f32 to vector<4x256xf32>
    %97 = vector.extract_strided_slice %95 {offsets = [0, 0, 0], sizes = [4, 16, 16], strides = [1, 1, 1]} : vector<4x18x18xf32> to vector<4x16x16xf32>
    %98 = vector.shape_cast %97 : vector<4x16x16xf32> to vector<4x256xf32>
    %c0_40 = arith.constant 0 : index
    %c0_41 = arith.constant 0 : index
    %c0_42 = arith.constant 0 : index
    %99 = vector.load %arg4[%c0_40, %c0_41, %c0_42] : memref<9x4x4xf32, #tpu.memory_space<vmem>>, vector<1x4x4xf32>
    %100 = vector.shape_cast %99 : vector<1x4x4xf32> to vector<4x4xf32>
    %cst_43 = arith.constant dense<0.000000e+00> : vector<4x256xf32>
    %101 = tpu.matmul %100, %98, %cst_43 {dimension_numbers = #tpu.dot_dimension_numbers<[1], [0], [0], [1], [0, 0, 1, 1], [], []>} : vector<4x4xf32>, vector<4x256xf32>, vector<4x256xf32> -> vector<4x256xf32>
    %102 = arith.addf %96, %101 : vector<4x256xf32>
    %103 = vector.extract_strided_slice %95 {offsets = [0, 0, 1], sizes = [4, 16, 16], strides = [1, 1, 1]} : vector<4x18x18xf32> to vector<4x16x16xf32>
    %104 = vector.shape_cast %103 : vector<4x16x16xf32> to vector<4x256xf32>
    %c1_44 = arith.constant 1 : index
    %c0_45 = arith.constant 0 : index
    %c0_46 = arith.constant 0 : index
    %105 = vector.load %arg4[%c1_44, %c0_45, %c0_46] : memref<9x4x4xf32, #tpu.memory_space<vmem>>, vector<1x4x4xf32>
    %106 = vector.shape_cast %105 : vector<1x4x4xf32> to vector<4x4xf32>
    %cst_47 = arith.constant dense<0.000000e+00> : vector<4x256xf32>
    %107 = tpu.matmul %106, %104, %cst_47 {dimension_numbers = #tpu.dot_dimension_numbers<[1], [0], [0], [1], [0, 0, 1, 1], [], []>} : vector<4x4xf32>, vector<4x256xf32>, vector<4x256xf32> -> vector<4x256xf32>
    %108 = arith.addf %102, %107 : vector<4x256xf32>
    %109 = vector.extract_strided_slice %95 {offsets = [0, 0, 2], sizes = [4, 16, 16], strides = [1, 1, 1]} : vector<4x18x18xf32> to vector<4x16x16xf32>
    %110 = vector.shape_cast %109 : vector<4x16x16xf32> to vector<4x256xf32>
    %c2_48 = arith.constant 2 : index
    %c0_49 = arith.constant 0 : index
    %c0_50 = arith.constant 0 : index
    %111 = vector.load %arg4[%c2_48, %c0_49, %c0_50] : memref<9x4x4xf32, #tpu.memory_space<vmem>>, vector<1x4x4xf32>
    %112 = vector.shape_cast %111 : vector<1x4x4xf32> to vector<4x4xf32>
    %cst_51 = arith.constant dense<0.000000e+00> : vector<4x256xf32>
    %113 = tpu.matmul %112, %110, %cst_51 {dimension_numbers = #tpu.dot_dimension_numbers<[1], [0], [0], [1], [0, 0, 1, 1], [], []>} : vector<4x4xf32>, vector<4x256xf32>, vector<4x256xf32> -> vector<4x256xf32>
    %114 = arith.addf %108, %113 : vector<4x256xf32>
    %115 = vector.extract_strided_slice %95 {offsets = [0, 1, 0], sizes = [4, 16, 16], strides = [1, 1, 1]} : vector<4x18x18xf32> to vector<4x16x16xf32>
    %116 = vector.shape_cast %115 : vector<4x16x16xf32> to vector<4x256xf32>
    %c3_52 = arith.constant 3 : index
    %c0_53 = arith.constant 0 : index
    %c0_54 = arith.constant 0 : index
    %117 = vector.load %arg4[%c3_52, %c0_53, %c0_54] : memref<9x4x4xf32, #tpu.memory_space<vmem>>, vector<1x4x4xf32>
    %118 = vector.shape_cast %117 : vector<1x4x4xf32> to vector<4x4xf32>
    %cst_55 = arith.constant dense<0.000000e+00> : vector<4x256xf32>
    %119 = tpu.matmul %118, %116, %cst_55 {dimension_numbers = #tpu.dot_dimension_numbers<[1], [0], [0], [1], [0, 0, 1, 1], [], []>} : vector<4x4xf32>, vector<4x256xf32>, vector<4x256xf32> -> vector<4x256xf32>
    %120 = arith.addf %114, %119 : vector<4x256xf32>
    %121 = vector.extract_strided_slice %95 {offsets = [0, 1, 1], sizes = [4, 16, 16], strides = [1, 1, 1]} : vector<4x18x18xf32> to vector<4x16x16xf32>
    %122 = vector.shape_cast %121 : vector<4x16x16xf32> to vector<4x256xf32>
    %c4_56 = arith.constant 4 : index
    %c0_57 = arith.constant 0 : index
    %c0_58 = arith.constant 0 : index
    %123 = vector.load %arg4[%c4_56, %c0_57, %c0_58] : memref<9x4x4xf32, #tpu.memory_space<vmem>>, vector<1x4x4xf32>
    %124 = vector.shape_cast %123 : vector<1x4x4xf32> to vector<4x4xf32>
    %cst_59 = arith.constant dense<0.000000e+00> : vector<4x256xf32>
    %125 = tpu.matmul %124, %122, %cst_59 {dimension_numbers = #tpu.dot_dimension_numbers<[1], [0], [0], [1], [0, 0, 1, 1], [], []>} : vector<4x4xf32>, vector<4x256xf32>, vector<4x256xf32> -> vector<4x256xf32>
    %126 = arith.addf %120, %125 : vector<4x256xf32>
    %127 = vector.extract_strided_slice %95 {offsets = [0, 1, 2], sizes = [4, 16, 16], strides = [1, 1, 1]} : vector<4x18x18xf32> to vector<4x16x16xf32>
    %128 = vector.shape_cast %127 : vector<4x16x16xf32> to vector<4x256xf32>
    %c5_60 = arith.constant 5 : index
    %c0_61 = arith.constant 0 : index
    %c0_62 = arith.constant 0 : index
    %129 = vector.load %arg4[%c5_60, %c0_61, %c0_62] : memref<9x4x4xf32, #tpu.memory_space<vmem>>, vector<1x4x4xf32>
    %130 = vector.shape_cast %129 : vector<1x4x4xf32> to vector<4x4xf32>
    %cst_63 = arith.constant dense<0.000000e+00> : vector<4x256xf32>
    %131 = tpu.matmul %130, %128, %cst_63 {dimension_numbers = #tpu.dot_dimension_numbers<[1], [0], [0], [1], [0, 0, 1, 1], [], []>} : vector<4x4xf32>, vector<4x256xf32>, vector<4x256xf32> -> vector<4x256xf32>
    %132 = arith.addf %126, %131 : vector<4x256xf32>
    %133 = vector.extract_strided_slice %95 {offsets = [0, 2, 0], sizes = [4, 16, 16], strides = [1, 1, 1]} : vector<4x18x18xf32> to vector<4x16x16xf32>
    %134 = vector.shape_cast %133 : vector<4x16x16xf32> to vector<4x256xf32>
    %c6_64 = arith.constant 6 : index
    %c0_65 = arith.constant 0 : index
    %c0_66 = arith.constant 0 : index
    %135 = vector.load %arg4[%c6_64, %c0_65, %c0_66] : memref<9x4x4xf32, #tpu.memory_space<vmem>>, vector<1x4x4xf32>
    %136 = vector.shape_cast %135 : vector<1x4x4xf32> to vector<4x4xf32>
    %cst_67 = arith.constant dense<0.000000e+00> : vector<4x256xf32>
    %137 = tpu.matmul %136, %134, %cst_67 {dimension_numbers = #tpu.dot_dimension_numbers<[1], [0], [0], [1], [0, 0, 1, 1], [], []>} : vector<4x4xf32>, vector<4x256xf32>, vector<4x256xf32> -> vector<4x256xf32>
    %138 = arith.addf %132, %137 : vector<4x256xf32>
    %139 = vector.extract_strided_slice %95 {offsets = [0, 2, 1], sizes = [4, 16, 16], strides = [1, 1, 1]} : vector<4x18x18xf32> to vector<4x16x16xf32>
    %140 = vector.shape_cast %139 : vector<4x16x16xf32> to vector<4x256xf32>
    %c7_68 = arith.constant 7 : index
    %c0_69 = arith.constant 0 : index
    %c0_70 = arith.constant 0 : index
    %141 = vector.load %arg4[%c7_68, %c0_69, %c0_70] : memref<9x4x4xf32, #tpu.memory_space<vmem>>, vector<1x4x4xf32>
    %142 = vector.shape_cast %141 : vector<1x4x4xf32> to vector<4x4xf32>
    %cst_71 = arith.constant dense<0.000000e+00> : vector<4x256xf32>
    %143 = tpu.matmul %142, %140, %cst_71 {dimension_numbers = #tpu.dot_dimension_numbers<[1], [0], [0], [1], [0, 0, 1, 1], [], []>} : vector<4x4xf32>, vector<4x256xf32>, vector<4x256xf32> -> vector<4x256xf32>
    %144 = arith.addf %138, %143 : vector<4x256xf32>
    %145 = vector.extract_strided_slice %95 {offsets = [0, 2, 2], sizes = [4, 16, 16], strides = [1, 1, 1]} : vector<4x18x18xf32> to vector<4x16x16xf32>
    %146 = vector.shape_cast %145 : vector<4x16x16xf32> to vector<4x256xf32>
    %c8_72 = arith.constant 8 : index
    %c0_73 = arith.constant 0 : index
    %c0_74 = arith.constant 0 : index
    %147 = vector.load %arg4[%c8_72, %c0_73, %c0_74] : memref<9x4x4xf32, #tpu.memory_space<vmem>>, vector<1x4x4xf32>
    %148 = vector.shape_cast %147 : vector<1x4x4xf32> to vector<4x4xf32>
    %cst_75 = arith.constant dense<0.000000e+00> : vector<4x256xf32>
    %149 = tpu.matmul %148, %146, %cst_75 {dimension_numbers = #tpu.dot_dimension_numbers<[1], [0], [0], [1], [0, 0, 1, 1], [], []>} : vector<4x4xf32>, vector<4x256xf32>, vector<4x256xf32> -> vector<4x256xf32>
    %150 = arith.addf %144, %149 : vector<4x256xf32>
    %c0_76 = arith.constant 0 : index
    %c0_77 = arith.constant 0 : index
    %151 = vector.load %arg5[%c0_76, %c0_77] : memref<4x1xf32, #tpu.memory_space<vmem>>, vector<4x1xf32>
    %152 = vector.broadcast %151 : vector<4x1xf32> to vector<4x256xf32>
    %153 = arith.addf %150, %152 : vector<4x256xf32>
    %cst_78 = arith.constant dense<0.000000e+00> : vector<4xf32>
    %154 = vector.multi_reduction <add>, %153, %cst_78 [1] : vector<4x256xf32> to vector<4xf32>
    %155 = vector.shape_cast %154 : vector<4xf32> to vector<4x1xf32>
    %cst_79 = arith.constant 3.906250e-03 : f32
    %156 = vector.broadcast %cst_79 : f32 to vector<4x1xf32>
    %157 = arith.mulf %155, %156 : vector<4x1xf32>
    %158 = arith.mulf %153, %153 : vector<4x256xf32>
    %cst_80 = arith.constant dense<0.000000e+00> : vector<4xf32>
    %159 = vector.multi_reduction <add>, %158, %cst_80 [1] : vector<4x256xf32> to vector<4xf32>
    %160 = vector.shape_cast %159 : vector<4xf32> to vector<4x1xf32>
    %cst_81 = arith.constant 3.906250e-03 : f32
    %161 = vector.broadcast %cst_81 : f32 to vector<4x1xf32>
    %162 = arith.mulf %160, %161 : vector<4x1xf32>
    %163 = arith.mulf %157, %157 : vector<4x1xf32>
    %164 = arith.subf %162, %163 : vector<4x1xf32>
    %cst_82 = arith.constant 0.000000e+00 : f32
    %165 = vector.broadcast %cst_82 : f32 to vector<4x1xf32>
    %166 = arith.maximumf %164, %165 : vector<4x1xf32>
    %167 = vector.broadcast %157 : vector<4x1xf32> to vector<4x256xf32>
    %168 = arith.subf %153, %167 : vector<4x256xf32>
    %cst_83 = arith.constant 9.99999974E-6 : f32
    %169 = vector.broadcast %cst_83 : f32 to vector<4x1xf32>
    %170 = arith.addf %166, %169 : vector<4x1xf32>
    %171 = math.rsqrt %170 : vector<4x1xf32>
    %172 = vector.broadcast %171 : vector<4x1xf32> to vector<4x256xf32>
    %173 = arith.mulf %168, %172 : vector<4x256xf32>
    %174 = arith.addf %1, %173 : vector<4x256xf32>
    %c0_84 = arith.constant 0 : index
    %c0_85 = arith.constant 0 : index
    %c0_86 = arith.constant 0 : index
    %175 = vector.load %arg6[%c0_84, %c0_85, %c0_86] : memref<1x4x256xf32, #tpu.memory_space<vmem>>, vector<1x4x256xf32>
    %176 = vector.shape_cast %175 : vector<1x4x256xf32> to vector<4x256xf32>
    %177 = vector.shape_cast %174 : vector<4x256xf32> to vector<1x4x256xf32>
    tpu.vector_store %arg6[%c0_84, %c0_85, %c0_86], %177 {strides = array<i32>} : memref<1x4x256xf32, #tpu.memory_space<vmem>>, vector<1x4x256xf32>,
    return
  }
  func.func @transform_0(%arg0: i32) -> (i32, i32, i32) {
    %c0_i32 = arith.constant 0 : i32
    %c0_i32_0 = arith.constant 0 : i32
    %c0_i32_1 = arith.constant 0 : i32
    return %arg0, %c0_i32, %c0_i32_0 : i32, i32, i32
  }
  func.func @transform_1(%arg0: i32) -> (i32, i32, i32) {
    %c0_i32 = arith.constant 0 : i32
    %c0_i32_0 = arith.constant 0 : i32
    %c0_i32_1 = arith.constant 0 : i32
    %c0_i32_2 = arith.constant 0 : i32
    return %c0_i32, %c0_i32_0, %c0_i32_1 : i32, i32, i32
  }
  func.func @transform_2(%arg0: i32) -> (i32, i32) {
    %c0_i32 = arith.constant 0 : i32
    %c0_i32_0 = arith.constant 0 : i32
    %c0_i32_1 = arith.constant 0 : i32
    return %c0_i32, %c0_i32_0 : i32, i32
  }
  func.func @transform_3(%arg0: i32) -> (i32, i32, i32) {
    %c0_i32 = arith.constant 0 : i32
    %c0_i32_0 = arith.constant 0 : i32
    %c0_i32_1 = arith.constant 0 : i32
    %c0_i32_2 = arith.constant 0 : i32
    return %c0_i32, %c0_i32_0, %c0_i32_1 : i32, i32, i32
  }
  func.func @transform_4(%arg0: i32) -> (i32, i32) {
    %c0_i32 = arith.constant 0 : i32
    %c0_i32_0 = arith.constant 0 : i32
    %c0_i32_1 = arith.constant 0 : i32
    return %c0_i32, %c0_i32_0 : i32, i32
  }
  func.func @transform_5(%arg0: i32) -> (i32, i32, i32) {
    %c0_i32 = arith.constant 0 : i32
    %c0_i32_0 = arith.constant 0 : i32
    %c0_i32_1 = arith.constant 0 : i32
    return %arg0, %c0_i32, %c0_i32_0 : i32, i32, i32
  }
}

</mosaic_0001>

<llo_original>
// kernel: tpu_custom_call.1
$region0: #{tpu_custom_call.1}
  #allocation0 [shape = 'u32[]', space=smem, size = 0x4, offset = 0x4, fixed_abs, tag = 'smem constant byte address 0x4 - core index']
  #allocation1 [shape = 'u32[144,128]{1,0:T(1,128)}', space=vmem, size = 0x12000, scoped, tag = 'internal scratch']
  %s0 = inlined_call_operand.vmem [shape: f32[2,4,256], index: 0, kind: input, shape index: {}]
  %s1 = inlined_call_operand.vmem [shape: f32[9,4,4], index: 1, kind: input, shape index: {}]
  %s2 = inlined_call_operand.vmem [shape: f32[4,1], index: 2, kind: input, shape index: {}]
  %s3 = inlined_call_operand.vmem [shape: f32[9,4,4], index: 3, kind: input, shape index: {}]
  %s4 = inlined_call_operand.vmem [shape: f32[4,1], index: 4, kind: input, shape index: {}]
  %s5 = inlined_call_operand.hbm [shape: f32[2,4,256], index: 5, kind: output, shape index: {}]
  %s6 = sld [smem:[#allocation0]]
  $region53: #{tpu_custom_call.1} parent=0
    _
  %s8 = ssub.s32 1, %s6
  %s9 = scalar_select 0, %s8, %s6
  $region1: #{tpu_custom_call.1} parent=0
    #allocation2 [shape = 'u8[8192]{0}', space=vmem, size = 0x2000, scoped, tag = 'output window, operand 0']
    #allocation3 [shape = 's32[2]{0}', space=sflag, size = 0x8, scoped, tag = 'scoped memory for tpu_custom_call.1']
    %10 = vsyncpa [#allocation3], 0
    %s11 = scalar_lea.sflag [#allocation3], 1
    %12 = vsyncpa %s11, 0
    loop: start=0, step=1, limit=4
    $region2: #{tpu_custom_call.1} parent=1 // loop_pre_header
      _
    $region3: #{tpu_custom_call.1} parent=1 // loop_header
      %s14 = sphi 0, %s18
      %p15 = scmp.ge.s32.totalorder %s14, 4
      %s24 = sphi 0, %s26
      %s27 = sphi 0, %s24
      %s28 = sphi 0, %s27
      %s44 = sphi 0, %s28
      %s48 = sphi 0, %s48
      %s50 = sphi 0, %s48
      %s51 = sphi 0, %s50
      %s65 = sphi 0, %s51
      %s69 = sphi 0, %s69
      %s71 = sphi 0, %s69
      %s72 = sphi 0, %s71
      %s86 = sphi 0, %s72
      %s90 = sphi 0, %s90
      %s92 = sphi 0, %s90
      %s93 = sphi 0, %s92
      %s107 = sphi 0, %s93
      %s111 = sphi 0, %s111
      %s113 = sphi 0, %s111
      %s114 = sphi 0, %s113
      %s128 = sphi 0, %s114
      %s134 = sphi 0, %s136
      %s137 = sphi 0, %s134
      %s138 = sphi 0, %s137
      %s154 = sphi 0, %s138
    $region4: #{tpu_custom_call.1} parent=1 // loop_header_branch
      %17 = sbr.rel (%p15) target = $region8
    $region5: #{tpu_custom_call.1} parent=1 // loop_body
      %s19 = ssub.s32 %s14, 1
      %s20 = ssub.s32 %s14, 2
      %s21 = sadd.s32 %s14, 1
      %s22 = ssub.s32 %s14, %s21
      %p23 = scmp.eq.s32.totalorder %s22, 0
      %s25 = sadd.s32 %s24, 1
      %s26 = scalar_select %p23, %s24, %s25
      %p29 = pneg %p23
      %p30 = scmp.eq.s32.totalorder %s14, 1
      %p31 = por %p29, %p30
      %p32 = scmp.ne.s32.totalorder %s24, %s27
      %p33 = scmp.eq.s32.totalorder %s14, 0
      %p34 = por %p32, %p33
      %p35 = scmp.ne.s32.totalorder %s24, %s27
      %p36 = scmp.eq.s32.totalorder %s19, 1
      %p37 = por %p35, %p36
      %p38 = scmp.ne.s32.totalorder %s27, %s28
      %p39 = scmp.eq.s32.totalorder %s19, 0
      %p40 = por %p38, %p39
      %p41 = scmp.ne.s32.totalorder %s27, %s28
      %p42 = scmp.eq.s32.totalorder %s20, 1
      %p43 = por %p41, %p42
      %p45 = scmp.ne.s32.totalorder %s28, %s44
      %p46 = scmp.eq.s32.totalorder %s20, 0
      %p47 = por %p45, %p46
      %s49 = sadd.s32 %s48, 1
      %p52 = scmp.eq.s32.totalorder %s14, 1
      %p53 = scmp.ne.s32.totalorder %s48, %s50
      %p54 = scmp.eq.s32.totalorder %s14, 0
      %p55 = por %p53, %p54
      %p56 = scmp.ne.s32.totalorder %s48, %s50
      %p57 = scmp.eq.s32.totalorder %s19, 1
      %p58 = por %p56, %p57
      %p59 = scmp.ne.s32.totalorder %s50, %s51
      %p60 = scmp.eq.s32.totalorder %s19, 0
      %p61 = por %p59, %p60
      %p62 = scmp.ne.s32.totalorder %s50, %s51
      %p63 = scmp.eq.s32.totalorder %s20, 1
      %p64 = por %p62, %p63
      %p66 = scmp.ne.s32.totalorder %s51, %s65
      %p67 = scmp.eq.s32.totalorder %s20, 0
      %p68 = por %p66, %p67
      %s70 = sadd.s32 %s69, 1
      %p73 = scmp.eq.s32.totalorder %s14, 1
      %p74 = scmp.ne.s32.totalorder %s69, %s71
      %p75 = scmp.eq.s32.totalorder %s14, 0
      %p76 = por %p74, %p75
      %p77 = scmp.ne.s32.totalorder %s69, %s71
      %p78 = scmp.eq.s32.totalorder %s19, 1
      %p79 = por %p77, %p78
      %p80 = scmp.ne.s32.totalorder %s71, %s72
      %p81 = scmp.eq.s32.totalorder %s19, 0
      %p82 = por %p80, %p81
      %p83 = scmp.ne.s32.totalorder %s71, %s72
      %p84 = scmp.eq.s32.totalorder %s20, 1
      %p85 = por %p83, %p84
      %p87 = scmp.ne.s32.totalorder %s72, %s86
      %p88 = scmp.eq.s32.totalorder %s20, 0
      %p89 = por %p87, %p88
      %s91 = sadd.s32 %s90, 1
      %p94 = scmp.eq.s32.totalorder %s14, 1
      %p95 = scmp.ne.s32.totalorder %s90, %s92
      %p96 = scmp.eq.s32.totalorder %s14, 0
      %p97 = por %p95, %p96
      %p98 = scmp.ne.s32.totalorder %s90, %s92
      %p99 = scmp.eq.s32.totalorder %s19, 1
      %p100 = por %p98, %p99
      %p101 = scmp.ne.s32.totalorder %s92, %s93
      %p102 = scmp.eq.s32.totalorder %s19, 0
      %p103 = por %p101, %p102
      %p104 = scmp.ne.s32.totalorder %s92, %s93
      %p105 = scmp.eq.s32.totalorder %s20, 1
      %p106 = por %p104, %p105
      %p108 = scmp.ne.s32.totalorder %s93, %s107
      %p109 = scmp.eq.s32.totalorder %s20, 0
      %p110 = por %p108, %p109
      %s112 = sadd.s32 %s111, 1
      %p115 = scmp.eq.s32.totalorder %s14, 1
      %p116 = scmp.ne.s32.totalorder %s111, %s113
      %p117 = scmp.eq.s32.totalorder %s14, 0
      %p118 = por %p116, %p117
      %p119 = scmp.ne.s32.totalorder %s111, %s113
      %p120 = scmp.eq.s32.totalorder %s19, 1
      %p121 = por %p119, %p120
      %p122 = scmp.ne.s32.totalorder %s113, %s114
      %p123 = scmp.eq.s32.totalorder %s19, 0
      %p124 = por %p122, %p123
      %p125 = scmp.ne.s32.totalorder %s113, %s114
      %p126 = scmp.eq.s32.totalorder %s20, 1
      %p127 = por %p125, %p126
      %p129 = scmp.ne.s32.totalorder %s114, %s128
      %p130 = scmp.eq.s32.totalorder %s20, 0
      %p131 = por %p129, %p130
      %s132 = ssub.s32 %s14, %s21
      %p133 = scmp.eq.s32.totalorder %s132, 0
      %s135 = sadd.s32 %s134, 1
      %s136 = scalar_select %p133, %s134, %s135
      %p139 = pneg %p133
      %p140 = scmp.eq.s32.totalorder %s14, 1
      %p141 = por %p139, %p140
      %p142 = scmp.ne.s32.totalorder %s134, %s137
      %p143 = scmp.eq.s32.totalorder %s14, 0
      %p144 = por %p142, %p143
      %p145 = scmp.ne.s32.totalorder %s134, %s137
      %p146 = scmp.eq.s32.totalorder %s19, 1
      %p147 = por %p145, %p146
      %p148 = scmp.ne.s32.totalorder %s137, %s138
      %p149 = scmp.eq.s32.totalorder %s19, 0
      %p150 = por %p148, %p149
      %p151 = scmp.ne.s32.totalorder %s137, %s138
      %p152 = scmp.eq.s32.totalorder %s20, 1
      %p153 = por %p151, %p152
      %p155 = scmp.ne.s32.totalorder %s138, %s154
      %p156 = scmp.eq.s32.totalorder %s20, 0
      %p157 = por %p155, %p156
      %p158 = scmp.le.s32.totalorder 1, %s14
      %p159 = scmp.lt.s32.totalorder %s14, 3
      %p160 = pnand %p158, %p159
      %p161 = pneg %p160
      // Predicated region
      $region9: #{tpu_custom_call.1} parent=5 // pred_check
        _
      $region10: #{tpu_custom_call.1} parent=5 // pred_check_branch
        %163 = sbr.rel (%p160) target = $region12
      $region11: #{tpu_custom_call.1} parent=5 // pred_region
        %s164 = ssub.s32 %s14, 1
        // Predicated region
        $region13: #{tpu_custom_call.1} parent=11 // pred_check
          %p165 = pneg %p61
        $region14: #{tpu_custom_call.1} parent=11 // pred_check_branch
          %167 = sbr.rel (%p165) target = $region16
        $region15: #{tpu_custom_call.1} parent=11 // pred_region
          _
        $region16: #{tpu_custom_call.1} parent=11 // pred_fallthru
          _
        // Predicated region
        $region17: #{tpu_custom_call.1} parent=11 // pred_check
          %p168 = pneg %p82
        $region18: #{tpu_custom_call.1} parent=11 // pred_check_branch
          %170 = sbr.rel (%p168) target = $region20
        $region19: #{tpu_custom_call.1} parent=11 // pred_region
          _
        $region20: #{tpu_custom_call.1} parent=11 // pred_fallthru
          _
        // Predicated region
        $region21: #{tpu_custom_call.1} parent=11 // pred_check
          %p171 = pneg %p103
        $region22: #{tpu_custom_call.1} parent=11 // pred_check_branch
          %173 = sbr.rel (%p171) target = $region24
        $region23: #{tpu_custom_call.1} parent=11 // pred_region
          _
        $region24: #{tpu_custom_call.1} parent=11 // pred_fallthru
          _
        // Predicated region
        $region25: #{tpu_custom_call.1} parent=11 // pred_check
          %p174 = pneg %p124
        $region26: #{tpu_custom_call.1} parent=11 // pred_check_branch
          %176 = sbr.rel (%p174) target = $region28
        $region27: #{tpu_custom_call.1} parent=11 // pred_region
          _
        $region28: #{tpu_custom_call.1} parent=11 // pred_fallthru
          _
      $region12: #{tpu_custom_call.1} parent=5 // pred_fallthru
        _
      %p177 = scmp.lt.s32.totalorder %s14, 2
      // Predicated region
      $region29: #{tpu_custom_call.1} parent=5 // pred_check
        %p178 = pneg %p177
      $region30: #{tpu_custom_call.1} parent=5 // pred_check_branch
        %180 = sbr.rel (%p178) target = $region32
      $region31: #{tpu_custom_call.1} parent=5 // pred_region
        // Predicated region
        $region33: #{tpu_custom_call.1} parent=31 // pred_check
          %p181 = pneg %p34
        $region34: #{tpu_custom_call.1} parent=31 // pred_check_branch
          %183 = sbr.rel (%p181) target = $region36
        $region35: #{tpu_custom_call.1} parent=31 // pred_region
          %p184 = scmp.lt.s32.totalorder %s14, 1
          %s185 = scalar_select %p184, %s14, 1
          %s186 = smul.addr %s185, 2
          %s187 = smul.addr %s186, 4
          %s188 = scalar_lea.vmem %s0, %s187
        $region36: #{tpu_custom_call.1} parent=31 // pred_fallthru
          _
      $region32: #{tpu_custom_call.1} parent=5 // pred_fallthru
        _
      %p189 = scmp.le.s32.totalorder 1, %s14
      %p190 = scmp.lt.s32.totalorder %s14, 3
      %p191 = pnand %p189, %p190
      %p192 = pneg %p191
      // Predicated region
      $region37: #{tpu_custom_call.1} parent=5 // pred_check
        _
      $region38: #{tpu_custom_call.1} parent=5 // pred_check_branch
        %194 = sbr.rel (%p191) target = $region40
      $region39: #{tpu_custom_call.1} parent=5 // pred_region
        %s195 = ssub.s32 %s14, 1
        %p196 = scmp.lt.s32.totalorder %s19, 1
        %s197 = scalar_select %p196, %s19, 1
        %s198 = smul.addr %s197, 2
        %s199 = smul.addr %s198, 4
        %s200 = scalar_lea.vmem %s0, %s199
        %p201 = pneg %p40
        %p202 = pneg %p37
        %p203 = pneg %p61
        %p204 = pneg %p58
        %p205 = pneg %p82
        %p206 = pneg %p79
        %p207 = pneg %p103
        %p208 = pneg %p100
        %p209 = pneg %p124
        %p210 = pneg %p121
        %p211 = pneg %p150
        %p212 = pneg %p147
        %s213 = sand.u32 %s137, 1
        %s214 = scalar_lea.sflag [#allocation3], %s213
        %s215 = sand.u32 %s137, 1
        %s216 = smul.addr %s215, 8
        %s217 = scalar_lea.vmem [#allocation2], %s216
        %p218 = scmp.lt.s32.totalorder %s19, 1
        %s219 = scalar_select %p218, %s19, 1
        %s220 = smul.addr %s219, 2
        %s221 = smul.addr %s220, 4
        %s222 = scalar_lea.vmem %s0, %s221
        %v223 = vld [vmem:[%s222] sm:$0xff]
        %v225 = vrot.slane %v223, 4
        %227 = vrot.lane.b32.xlu0 %v223, 112
        %v228 = vpop.permute.xlu0 %227
        %v229 = vrot.slane %v228, 4
        %231 = vrot.lane.b32.xlu0 %v223, 96
        %v232 = vpop.permute.xlu0 %231
        %v233 = vrot.slane %v232, 4
        %235 = vrot.lane.b32.xlu0 %v223, 80
        %v236 = vpop.permute.xlu0 %235
        %v237 = vrot.slane %v236, 4
        %239 = vrot.lane.b32.xlu0 %v223, 64
        %v240 = vpop.permute.xlu0 %239
        %v241 = vrot.slane %v240, 4
        %243 = vrot.lane.b32.xlu0 %v223, 48
        %v244 = vpop.permute.xlu0 %243
        %v245 = vrot.slane %v244, 4
        %247 = vrot.lane.b32.xlu0 %v223, 32
        %v248 = vpop.permute.xlu0 %247
        %v249 = vrot.slane %v248, 4
        %251 = vrot.lane.b32.xlu0 %v223, 16
        %v252 = vpop.permute.xlu0 %251
        %v253 = vrot.slane %v252, 4
        %v262 = vcombine.low %v223, %v232
        %v264 = vunpack.c.l.s4 1983009808
        %v265 = vunpack.c.0.s8 %v264
        %v266 = vlaneseq
        %v267 = vshrl.u32 %v266, 7
        %v268 = vsub.s32 %v265, %v267
        %v269 = vrot.slane %v262, %v268
        %v270 = vcombine.low %v228, %v236
        %v272 = vunpack.c.l.s4 1983009808
        %v273 = vunpack.c.0.s8 %v272
        %v274 = vlaneseq
        %v275 = vshrl.u32 %v274, 7
        %v276 = vsub.s32 %v273, %v275
        %v277 = vrot.slane %v270, %v276
        %v278 = vcombine.low %v269, %v277
        %v279 = vcombine.high %v269, %v277
        %v281 = vunpack.c.l.s4 1934713408
        %v282 = vunpack.c.0.s8 %v281
        %v283 = vlaneseq
        %v284 = vshrl.u32 %v283, 7
        %v285 = vsub.s32 %v282, %v284
        %v286 = vrot.slane %v278, %v285
        %v288 = vunpack.c.l.s4 1934713408
        %v289 = vunpack.c.0.s8 %v288
        %v290 = vlaneseq
        %v291 = vshrl.u32 %v290, 7
        %v292 = vsub.s32 %v289, %v291
        %v293 = vrot.slane %v279, %v292
        %v294 = vcombine.high %v286, 0.0
        %v295 = vcombine.high %v293, 0.0
        %v296 = vcombine.low %v240, %v248
        %v298 = vunpack.c.l.s4 1983009808
        %v299 = vunpack.c.0.s8 %v298
        %v300 = vlaneseq
        %v301 = vshrl.u32 %v300, 7
        %v302 = vsub.s32 %v299, %v301
        %v303 = vrot.slane %v296, %v302
        %v304 = vcombine.low %v244, %v252
        %v306 = vunpack.c.l.s4 1983009808
        %v307 = vunpack.c.0.s8 %v306
        %v308 = vlaneseq
        %v309 = vshrl.u32 %v308, 7
        %v310 = vsub.s32 %v307, %v309
        %v311 = vrot.slane %v304, %v310
        %v312 = vcombine.low %v303, %v311
        %v313 = vcombine.high %v303, %v311
        %v315 = vunpack.c.l.s4 1934713408
        %v316 = vunpack.c.0.s8 %v315
        %v317 = vlaneseq
        %v318 = vshrl.u32 %v317, 7
        %v319 = vsub.s32 %v316, %v318
        %v320 = vrot.slane %v312, %v319
        %v322 = vunpack.c.l.s4 1934713408
        %v323 = vunpack.c.0.s8 %v322
        %v324 = vlaneseq
        %v325 = vshrl.u32 %v324, 7
        %v326 = vsub.s32 %v323, %v325
        %v327 = vrot.slane %v313, %v326
        %v328 = vcombine.high %v320, 0.0
        %v329 = vcombine.high %v327, 0.0
        %v330 = vcombine.low %v225, %v233
        %v332 = vunpack.c.l.s4 1983009808
        %v333 = vunpack.c.0.s8 %v332
        %v334 = vlaneseq
        %v335 = vshrl.u32 %v334, 7
        %v336 = vsub.s32 %v333, %v335
        %v337 = vrot.slane %v330, %v336
        %v338 = vcombine.low %v229, %v237
        %v340 = vunpack.c.l.s4 1983009808
        %v341 = vunpack.c.0.s8 %v340
        %v342 = vlaneseq
        %v343 = vshrl.u32 %v342, 7
        %v344 = vsub.s32 %v341, %v343
        %v345 = vrot.slane %v338, %v344
        %v346 = vcombine.low %v337, %v345
        %v347 = vcombine.high %v337, %v345
        %v349 = vunpack.c.l.s4 1934713408
        %v350 = vunpack.c.0.s8 %v349
        %v351 = vlaneseq
        %v352 = vshrl.u32 %v351, 7
        %v353 = vsub.s32 %v350, %v352
        %v354 = vrot.slane %v346, %v353
        %v356 = vunpack.c.l.s4 1934713408
        %v357 = vunpack.c.0.s8 %v356
        %v358 = vlaneseq
        %v359 = vshrl.u32 %v358, 7
        %v360 = vsub.s32 %v357, %v359
        %v361 = vrot.slane %v347, %v360
        %v362 = vcombine.high %v354, 0.0
        %v363 = vcombine.high %v361, 0.0
        %v364 = vcombine.low %v241, %v249
        %v366 = vunpack.c.l.s4 1983009808
        %v367 = vunpack.c.0.s8 %v366
        %v368 = vlaneseq
        %v369 = vshrl.u32 %v368, 7
        %v370 = vsub.s32 %v367, %v369
        %v371 = vrot.slane %v364, %v370
        %v372 = vcombine.low %v245, %v253
        %v374 = vunpack.c.l.s4 1983009808
        %v375 = vunpack.c.0.s8 %v374
        %v376 = vlaneseq
        %v377 = vshrl.u32 %v376, 7
        %v378 = vsub.s32 %v375, %v377
        %v379 = vrot.slane %v372, %v378
        %v380 = vcombine.low %v371, %v379
        %v381 = vcombine.high %v371, %v379
        %v383 = vunpack.c.l.s4 1934713408
        %v384 = vunpack.c.0.s8 %v383
        %v385 = vlaneseq
        %v386 = vshrl.u32 %v385, 7
        %v387 = vsub.s32 %v384, %v386
        %v388 = vrot.slane %v380, %v387
        %v390 = vunpack.c.l.s4 1934713408
        %v391 = vunpack.c.0.s8 %v390
        %v392 = vlaneseq
        %v393 = vshrl.u32 %v392, 7
        %v394 = vsub.s32 %v391, %v393
        %v395 = vrot.slane %v381, %v394
        %v396 = vcombine.high %v388, 0.0
        %v397 = vcombine.high %v395, 0.0
        %v402 = vlaneseq
        %v403 = vshrl.u32 %v402, 7
        %v404 = vsub.s32 1, %v403
        %v405 = vrot.slane %v286, %v404
        %v406 = vlaneseq
        %v407 = vshrl.u32 %v406, 7
        %v408 = vsub.s32 1, %v407
        %v409 = vrot.slane %v294, %v408
        %v410 = vlaneseq
        %v411 = vshrl.u32 %v410, 7
        %v412 = vsub.s32 1, %v411
        %v413 = vrot.slane %v293, %v412
        %v414 = vlaneseq
        %v415 = vshrl.u32 %v414, 7
        %v416 = vsub.s32 1, %v415
        %v417 = vrot.slane %v295, %v416
        %v434 = vcombine.low %v286, %v320
        %v435 = vcombine.low %v354, %v388
        %v436 = vcombine.low %v294, %v328
        %v437 = vcombine.low %v362, %v396
        %v438 = vcombine.low %v293, %v327
        %v439 = vcombine.low %v361, %v395
        %v440 = vcombine.low %v295, %v329
        %v441 = vcombine.low %v363, %v397
        %vm442 = vcmask 1040384
        %v443 = vrot.slane %v434, 7
        %v444 = vrot.slane %v435, 7
        %v445 = vsel %vm442, %v443, %v444
        %v446 = vrot.slane %v436, 7
        %v447 = vrot.slane %v437, 7
        %v448 = vsel %vm442, %v446, %v447
        %v449 = vrot.slane %v438, 7
        %v450 = vrot.slane %v439, 7
        %v451 = vsel %vm442, %v449, %v450
        %v452 = vrot.slane %v440, 7
        %v453 = vrot.slane %v441, 7
        %v454 = vsel %vm442, %v452, %v453
        %v463 = vlaneseq
        %v464 = vshrl.u32 %v463, 7
        %v465 = vsub.s32 2, %v464
        %v466 = vrot.slane %v388, %v465
        %v467 = vlaneseq
        %v468 = vshrl.u32 %v467, 7
        %v469 = vsub.s32 2, %v468
        %v470 = vrot.slane %v396, %v469
        %v471 = vlaneseq
        %v472 = vshrl.u32 %v471, 7
        %v473 = vsub.s32 2, %v472
        %v474 = vrot.slane %v395, %v473
        %v475 = vlaneseq
        %v476 = vshrl.u32 %v475, 7
        %v477 = vsub.s32 2, %v476
        %v478 = vrot.slane %v397, %v477
        %v483 = vsel %vm442, %v405, %v443
        %v484 = vsel %vm442, %v409, %v446
        %v485 = vsel %vm442, %v413, %v449
        %v486 = vsel %vm442, %v417, %v452
        %v487 = vsel %vm442, %v444, %v466
        %v488 = vsel %vm442, %v447, %v470
        %v489 = vsel %vm442, %v450, %v474
        %v490 = vsel %vm442, %v453, %v478
        %499 = vrot.lane.b32.xlu0 %v483, 127
        %v500 = vpop.permute.xlu0 %499
        %501 = vrot.lane.b32.xlu0 %v445, 127
        %v502 = vpop.permute.xlu0 %501
        %503 = vrot.lane.b32.xlu0 %v487, 127
        %v504 = vpop.permute.xlu0 %503
        %505 = vrot.lane.b32.xlu0 %v484, 127
        %v506 = vpop.permute.xlu0 %505
        %507 = vrot.lane.b32.xlu0 %v448, 127
        %v508 = vpop.permute.xlu0 %507
        %509 = vrot.lane.b32.xlu0 %v488, 127
        %v510 = vpop.permute.xlu0 %509
        %511 = vrot.lane.b32.xlu0 %v485, 127
        %v512 = vpop.permute.xlu0 %511
        %513 = vrot.lane.b32.xlu0 %v451, 127
        %v514 = vpop.permute.xlu0 %513
        %515 = vrot.lane.b32.xlu0 %v489, 127
        %v516 = vpop.permute.xlu0 %515
        %517 = vrot.lane.b32.xlu0 %v486, 127
        %v518 = vpop.permute.xlu0 %517
        %519 = vrot.lane.b32.xlu0 %v454, 127
        %v520 = vpop.permute.xlu0 %519
        %521 = vrot.lane.b32.xlu0 %v490, 127
        %v522 = vpop.permute.xlu0 %521
        %535 = vrot.lane.b32.xlu0 %v483, 1
        %v536 = vpop.permute.xlu0 %535
        %537 = vrot.lane.b32.xlu0 %v445, 1
        %v538 = vpop.permute.xlu0 %537
        %539 = vrot.lane.b32.xlu0 %v487, 1
        %v540 = vpop.permute.xlu0 %539
        %541 = vrot.lane.b32.xlu0 %v484, 1
        %v542 = vpop.permute.xlu0 %541
        %543 = vrot.lane.b32.xlu0 %v448, 1
        %v544 = vpop.permute.xlu0 %543
        %545 = vrot.lane.b32.xlu0 %v488, 1
        %v546 = vpop.permute.xlu0 %545
        %547 = vrot.lane.b32.xlu0 %v485, 1
        %v548 = vpop.permute.xlu0 %547
        %549 = vrot.lane.b32.xlu0 %v451, 1
        %v550 = vpop.permute.xlu0 %549
        %551 = vrot.lane.b32.xlu0 %v489, 1
        %v552 = vpop.permute.xlu0 %551
        %553 = vrot.lane.b32.xlu0 %v486, 1
        %v554 = vpop.permute.xlu0 %553
        %555 = vrot.lane.b32.xlu0 %v454, 1
        %v556 = vpop.permute.xlu0 %555
        %557 = vrot.lane.b32.xlu0 %v490, 1
        %v558 = vpop.permute.xlu0 %557
        %571 = vrot.lane.b32.xlu0 %v483, 3
        %v572 = vpop.permute.xlu0 %571
        %573 = vrot.lane.b32.xlu0 %v445, 3
        %v574 = vpop.permute.xlu0 %573
        %575 = vrot.lane.b32.xlu0 %v487, 3
        %v576 = vpop.permute.xlu0 %575
        %577 = vrot.lane.b32.xlu0 %v484, 3
        %v578 = vpop.permute.xlu0 %577
        %579 = vrot.lane.b32.xlu0 %v448, 3
        %v580 = vpop.permute.xlu0 %579
        %581 = vrot.lane.b32.xlu0 %v488, 3
        %v582 = vpop.permute.xlu0 %581
        %583 = vrot.lane.b32.xlu0 %v485, 3
        %v584 = vpop.permute.xlu0 %583
        %585 = vrot.lane.b32.xlu0 %v451, 3
        %v586 = vpop.permute.xlu0 %585
        %587 = vrot.lane.b32.xlu0 %v489, 3
        %v588 = vpop.permute.xlu0 %587
        %589 = vrot.lane.b32.xlu0 %v486, 3
        %v590 = vpop.permute.xlu0 %589
        %591 = vrot.lane.b32.xlu0 %v454, 3
        %v592 = vpop.permute.xlu0 %591
        %593 = vrot.lane.b32.xlu0 %v490, 3
        %v594 = vpop.permute.xlu0 %593
        %vm607 = vcmask 7168
        %v608 = vsel %vm607, %v500, %v536
        %v609 = vsel %vm607, %v502, %v538
        %v610 = vsel %vm607, %v504, %v540
        %v611 = vsel %vm607, %v506, %v542
        %v612 = vsel %vm607, %v508, %v544
        %v613 = vsel %vm607, %v510, %v546
        %v614 = vsel %vm607, %v512, %v548
        %v615 = vsel %vm607, %v514, %v550
        %v616 = vsel %vm607, %v516, %v552
        %v617 = vsel %vm607, %v518, %v554
        %v618 = vsel %vm607, %v520, %v556
        %v619 = vsel %vm607, %v522, %v558
        %vm620 = vcmask 138240
        %v621 = vsel %vm620, %v608, %v572
        %v622 = vsel %vm620, %v609, %v574
        %v623 = vsel %vm620, %v610, %v576
        %v624 = vsel %vm620, %v611, %v578
        %v625 = vsel %vm620, %v612, %v580
        %v626 = vsel %vm620, %v613, %v582
        %v627 = vsel %vm620, %v614, %v584
        %v628 = vsel %vm620, %v615, %v586
        %v629 = vsel %vm620, %v616, %v588
        %v630 = vsel %vm620, %v617, %v590
        %v631 = vsel %vm620, %v618, %v592
        %v632 = vsel %vm620, %v619, %v594
        %v633 = vcombine.low %v621, %v627
        %v634 = vcombine.high %v621, %v627
        %v636 = vunpack.c.l.s4 1983009808
        %v637 = vunpack.c.0.s8 %v636
        %v638 = vlaneseq
        %v639 = vshrl.u32 %v638, 7
        %v640 = vsub.s32 %v637, %v639
        %v641 = vrot.slane %v633, %v640
        %v643 = vunpack.c.l.s4 1983009808
        %v644 = vunpack.c.0.s8 %v643
        %v645 = vlaneseq
        %v646 = vshrl.u32 %v645, 7
        %v647 = vsub.s32 %v644, %v646
        %v648 = vrot.slane %v634, %v647
        %v649 = vcombine.low %v624, %v630
        %v650 = vcombine.high %v624, %v630
        %v652 = vunpack.c.l.s4 1983009808
        %v653 = vunpack.c.0.s8 %v652
        %v654 = vlaneseq
        %v655 = vshrl.u32 %v654, 7
        %v656 = vsub.s32 %v653, %v655
        %v657 = vrot.slane %v649, %v656
        %v659 = vunpack.c.l.s4 1983009808
        %v660 = vunpack.c.0.s8 %v659
        %v661 = vlaneseq
        %v662 = vshrl.u32 %v661, 7
        %v663 = vsub.s32 %v660, %v662
        %v664 = vrot.slane %v650, %v663
        %v665 = vcombine.low %v641, %v657
        %v666 = vcombine.high %v641, %v657
        %v668 = vunpack.c.l.s4 1934713408
        %v669 = vunpack.c.0.s8 %v668
        %v670 = vlaneseq
        %v671 = vshrl.u32 %v670, 7
        %v672 = vsub.s32 %v669, %v671
        %v673 = vrot.slane %v665, %v672
        %v675 = vunpack.c.l.s4 1934713408
        %v676 = vunpack.c.0.s8 %v675
        %v677 = vlaneseq
        %v678 = vshrl.u32 %v677, 7
        %v679 = vsub.s32 %v676, %v678
        %v680 = vrot.slane %v666, %v679
        %v681 = vcombine.low %v648, %v664
        %v682 = vcombine.high %v648, %v664
        %v684 = vunpack.c.l.s4 1934713408
        %v685 = vunpack.c.0.s8 %v684
        %v686 = vlaneseq
        %v687 = vshrl.u32 %v686, 7
        %v688 = vsub.s32 %v685, %v687
        %v689 = vrot.slane %v681, %v688
        %v691 = vunpack.c.l.s4 1934713408
        %v692 = vunpack.c.0.s8 %v691
        %v693 = vlaneseq
        %v694 = vshrl.u32 %v693, 7
        %v695 = vsub.s32 %v692, %v694
        %v696 = vrot.slane %v682, %v695
        %v697 = vcombine.high %v673, 0.0
        %v698 = vcombine.high %v680, 0.0
        %v699 = vcombine.high %v689, 0.0
        %v700 = vcombine.high %v696, 0.0
        %v701 = vcombine.low %v622, %v628
        %v702 = vcombine.high %v622, %v628
        %v704 = vunpack.c.l.s4 1983009808
        %v705 = vunpack.c.0.s8 %v704
        %v706 = vlaneseq
        %v707 = vshrl.u32 %v706, 7
        %v708 = vsub.s32 %v705, %v707
        %v709 = vrot.slane %v701, %v708
        %v711 = vunpack.c.l.s4 1983009808
        %v712 = vunpack.c.0.s8 %v711
        %v713 = vlaneseq
        %v714 = vshrl.u32 %v713, 7
        %v715 = vsub.s32 %v712, %v714
        %v716 = vrot.slane %v702, %v715
        %v717 = vcombine.low %v625, %v631
        %v718 = vcombine.high %v625, %v631
        %v720 = vunpack.c.l.s4 1983009808
        %v721 = vunpack.c.0.s8 %v720
        %v722 = vlaneseq
        %v723 = vshrl.u32 %v722, 7
        %v724 = vsub.s32 %v721, %v723
        %v725 = vrot.slane %v717, %v724
        %v727 = vunpack.c.l.s4 1983009808
        %v728 = vunpack.c.0.s8 %v727
        %v729 = vlaneseq
        %v730 = vshrl.u32 %v729, 7
        %v731 = vsub.s32 %v728, %v730
        %v732 = vrot.slane %v718, %v731
        %v733 = vcombine.low %v709, %v725
        %v734 = vcombine.high %v709, %v725
        %v736 = vunpack.c.l.s4 1934713408
        %v737 = vunpack.c.0.s8 %v736
        %v738 = vlaneseq
        %v739 = vshrl.u32 %v738, 7
        %v740 = vsub.s32 %v737, %v739
        %v741 = vrot.slane %v733, %v740
        %v743 = vunpack.c.l.s4 1934713408
        %v744 = vunpack.c.0.s8 %v743
        %v745 = vlaneseq
        %v746 = vshrl.u32 %v745, 7
        %v747 = vsub.s32 %v744, %v746
        %v748 = vrot.slane %v734, %v747
        %v749 = vcombine.low %v716, %v732
        %v750 = vcombine.high %v716, %v732
        %v752 = vunpack.c.l.s4 1934713408
        %v753 = vunpack.c.0.s8 %v752
        %v754 = vlaneseq
        %v755 = vshrl.u32 %v754, 7
        %v756 = vsub.s32 %v753, %v755
        %v757 = vrot.slane %v749, %v756
        %v759 = vunpack.c.l.s4 1934713408
        %v760 = vunpack.c.0.s8 %v759
        %v761 = vlaneseq
        %v762 = vshrl.u32 %v761, 7
        %v763 = vsub.s32 %v760, %v762
        %v764 = vrot.slane %v750, %v763
        %v765 = vcombine.high %v741, 0.0
        %v766 = vcombine.high %v748, 0.0
        %v767 = vcombine.high %v757, 0.0
        %v768 = vcombine.high %v764, 0.0
        %770 = vrot.lane.b32.xlu0 %v697, 16
        %v771 = vpop.permute.xlu0 %770
        %774 = vrot.lane.b32.xlu0 %v680, 32
        %v775 = vpop.permute.xlu0 %774
        %778 = vrot.lane.b32.xlu0 %v698, 48
        %v779 = vpop.permute.xlu0 %778
        %782 = vrot.lane.b32.xlu0 %v689, 64
        %v783 = vpop.permute.xlu0 %782
        %786 = vrot.lane.b32.xlu0 %v699, 80
        %v787 = vpop.permute.xlu0 %786
        %790 = vrot.lane.b32.xlu0 %v696, 96
        %v791 = vpop.permute.xlu0 %790
        %794 = vrot.lane.b32.xlu0 %v700, 112
        %v795 = vpop.permute.xlu0 %794
        %798 = vrot.lane.b32.xlu0 %v765, 16
        %v799 = vpop.permute.xlu0 %798
        %802 = vrot.lane.b32.xlu0 %v748, 32
        %v803 = vpop.permute.xlu0 %802
        %806 = vrot.lane.b32.xlu0 %v766, 48
        %v807 = vpop.permute.xlu0 %806
        %810 = vrot.lane.b32.xlu0 %v757, 64
        %v811 = vpop.permute.xlu0 %810
        %814 = vrot.lane.b32.xlu0 %v767, 80
        %v815 = vpop.permute.xlu0 %814
        %818 = vrot.lane.b32.xlu0 %v764, 96
        %v819 = vpop.permute.xlu0 %818
        %822 = vrot.lane.b32.xlu0 %v768, 112
        %v823 = vpop.permute.xlu0 %822
        %vm825 = vcmask 130048
        %v826 = vsel %vm825, %v673, %v771
        %vm827 = vcmask 261120
        %v828 = vsel %vm827, %v826, %v775
        %vm829 = vcmask 392192
        %v830 = vsel %vm829, %v828, %v779
        %vm831 = vcmask 523264
        %v832 = vsel %vm831, %v830, %v783
        %vm833 = vcmask 654336
        %v834 = vsel %vm833, %v832, %v787
        %vm835 = vcmask 785408
        %v836 = vsel %vm835, %v834, %v791
        %vm837 = vcmask 916480
        %v838 = vsel %vm837, %v836, %v795
        %v839 = vsel %vm825, %v741, %v799
        %v840 = vsel %vm827, %v839, %v803
        %v841 = vsel %vm829, %v840, %v807
        %v842 = vsel %vm831, %v841, %v811
        %v843 = vsel %vm833, %v842, %v815
        %v844 = vsel %vm835, %v843, %v819
        %v845 = vsel %vm837, %v844, %v823
        %v846 = vld [vmem:[%s1] sm:$0xf]
        %855 = vrot.lane.b32.xlu0 %v621, 127
        %v856 = vpop.permute.xlu0 %855
        %857 = vrot.lane.b32.xlu0 %v622, 127
        %v858 = vpop.permute.xlu0 %857
        %859 = vrot.lane.b32.xlu0 %v624, 127
        %v860 = vpop.permute.xlu0 %859
        %861 = vrot.lane.b32.xlu0 %v625, 127
        %v862 = vpop.permute.xlu0 %861
        %863 = vrot.lane.b32.xlu0 %v627, 127
        %v864 = vpop.permute.xlu0 %863
        %865 = vrot.lane.b32.xlu0 %v628, 127
        %v866 = vpop.permute.xlu0 %865
        %867 = vrot.lane.b32.xlu0 %v630, 127
        %v868 = vpop.permute.xlu0 %867
        %869 = vrot.lane.b32.xlu0 %v631, 127
        %v870 = vpop.permute.xlu0 %869
        %v879 = vcombine.low %v856, %v864
        %v880 = vcombine.high %v856, %v864
        %v882 = vunpack.c.l.s4 1983009808
        %v883 = vunpack.c.0.s8 %v882
        %v884 = vlaneseq
        %v885 = vshrl.u32 %v884, 7
        %v886 = vsub.s32 %v883, %v885
        %v887 = vrot.slane %v879, %v886
        %v889 = vunpack.c.l.s4 1983009808
        %v890 = vunpack.c.0.s8 %v889
        %v891 = vlaneseq
        %v892 = vshrl.u32 %v891, 7
        %v893 = vsub.s32 %v890, %v892
        %v894 = vrot.slane %v880, %v893
        %v895 = vcombine.low %v860, %v868
        %v896 = vcombine.high %v860, %v868
        %v898 = vunpack.c.l.s4 1983009808
        %v899 = vunpack.c.0.s8 %v898
        %v900 = vlaneseq
        %v901 = vshrl.u32 %v900, 7
        %v902 = vsub.s32 %v899, %v901
        %v903 = vrot.slane %v895, %v902
        %v905 = vunpack.c.l.s4 1983009808
        %v906 = vunpack.c.0.s8 %v905
        %v907 = vlaneseq
        %v908 = vshrl.u32 %v907, 7
        %v909 = vsub.s32 %v906, %v908
        %v910 = vrot.slane %v896, %v909
        %v911 = vcombine.low %v887, %v903
        %v912 = vcombine.high %v887, %v903
        %v914 = vunpack.c.l.s4 1934713408
        %v915 = vunpack.c.0.s8 %v914
        %v916 = vlaneseq
        %v917 = vshrl.u32 %v916, 7
        %v918 = vsub.s32 %v915, %v917
        %v919 = vrot.slane %v911, %v918
        %v921 = vunpack.c.l.s4 1934713408
        %v922 = vunpack.c.0.s8 %v921
        %v923 = vlaneseq
        %v924 = vshrl.u32 %v923, 7
        %v925 = vsub.s32 %v922, %v924
        %v926 = vrot.slane %v912, %v925
        %v927 = vcombine.low %v894, %v910
        %v928 = vcombine.high %v894, %v910
        %v930 = vunpack.c.l.s4 1934713408
        %v931 = vunpack.c.0.s8 %v930
        %v932 = vlaneseq
        %v933 = vshrl.u32 %v932, 7
        %v934 = vsub.s32 %v931, %v933
        %v935 = vrot.slane %v927, %v934
        %v937 = vunpack.c.l.s4 1934713408
        %v938 = vunpack.c.0.s8 %v937
        %v939 = vlaneseq
        %v940 = vshrl.u32 %v939, 7
        %v941 = vsub.s32 %v938, %v940
        %v942 = vrot.slane %v928, %v941
        %v943 = vcombine.high %v919, 0.0
        %v944 = vcombine.high %v926, 0.0
        %v945 = vcombine.high %v935, 0.0
        %v946 = vcombine.high %v942, 0.0
        %v947 = vcombine.low %v858, %v866
        %v948 = vcombine.high %v858, %v866
        %v950 = vunpack.c.l.s4 1983009808
        %v951 = vunpack.c.0.s8 %v950
        %v952 = vlaneseq
        %v953 = vshrl.u32 %v952, 7
        %v954 = vsub.s32 %v951, %v953
        %v955 = vrot.slane %v947, %v954
        %v957 = vunpack.c.l.s4 1983009808
        %v958 = vunpack.c.0.s8 %v957
        %v959 = vlaneseq
        %v960 = vshrl.u32 %v959, 7
        %v961 = vsub.s32 %v958, %v960
        %v962 = vrot.slane %v948, %v961
        %v963 = vcombine.low %v862, %v870
        %v964 = vcombine.high %v862, %v870
        %v966 = vunpack.c.l.s4 1983009808
        %v967 = vunpack.c.0.s8 %v966
        %v968 = vlaneseq
        %v969 = vshrl.u32 %v968, 7
        %v970 = vsub.s32 %v967, %v969
        %v971 = vrot.slane %v963, %v970
        %v973 = vunpack.c.l.s4 1983009808
        %v974 = vunpack.c.0.s8 %v973
        %v975 = vlaneseq
        %v976 = vshrl.u32 %v975, 7
        %v977 = vsub.s32 %v974, %v976
        %v978 = vrot.slane %v964, %v977
        %v979 = vcombine.low %v955, %v971
        %v980 = vcombine.high %v955, %v971
        %v982 = vunpack.c.l.s4 1934713408
        %v983 = vunpack.c.0.s8 %v982
        %v984 = vlaneseq
        %v985 = vshrl.u32 %v984, 7
        %v986 = vsub.s32 %v983, %v985
        %v987 = vrot.slane %v979, %v986
        %v989 = vunpack.c.l.s4 1934713408
        %v990 = vunpack.c.0.s8 %v989
        %v991 = vlaneseq
        %v992 = vshrl.u32 %v991, 7
        %v993 = vsub.s32 %v990, %v992
        %v994 = vrot.slane %v980, %v993
        %v995 = vcombine.low %v962, %v978
        %v996 = vcombine.high %v962, %v978
        %v998 = vunpack.c.l.s4 1934713408
        %v999 = vunpack.c.0.s8 %v998
        %v1000 = vlaneseq
        %v1001 = vshrl.u32 %v1000, 7
        %v1002 = vsub.s32 %v999, %v1001
        %v1003 = vrot.slane %v995, %v1002
        %v1005 = vunpack.c.l.s4 1934713408
        %v1006 = vunpack.c.0.s8 %v1005
        %v1007 = vlaneseq
        %v1008 = vshrl.u32 %v1007, 7
        %v1009 = vsub.s32 %v1006, %v1008
        %v1010 = vrot.slane %v996, %v1009
        %v1011 = vcombine.high %v987, 0.0
        %v1012 = vcombine.high %v994, 0.0
        %v1013 = vcombine.high %v1003, 0.0
        %v1014 = vcombine.high %v1010, 0.0
        %1016 = vrot.lane.b32.xlu0 %v943, 16
        %v1017 = vpop.permute.xlu0 %1016
        %1020 = vrot.lane.b32.xlu0 %v926, 32
        %v1021 = vpop.permute.xlu0 %1020
        %1024 = vrot.lane.b32.xlu0 %v944, 48
        %v1025 = vpop.permute.xlu0 %1024
        %1028 = vrot.lane.b32.xlu0 %v935, 64
        %v1029 = vpop.permute.xlu0 %1028
        %1032 = vrot.lane.b32.xlu0 %v945, 80
        %v1033 = vpop.permute.xlu0 %1032
        %1036 = vrot.lane.b32.xlu0 %v942, 96
        %v1037 = vpop.permute.xlu0 %1036
        %1040 = vrot.lane.b32.xlu0 %v946, 112
        %v1041 = vpop.permute.xlu0 %1040
        %1044 = vrot.lane.b32.xlu0 %v1011, 16
        %v1045 = vpop.permute.xlu0 %1044
        %1048 = vrot.lane.b32.xlu0 %v994, 32
        %v1049 = vpop.permute.xlu0 %1048
        %1052 = vrot.lane.b32.xlu0 %v1012, 48
        %v1053 = vpop.permute.xlu0 %1052
        %1056 = vrot.lane.b32.xlu0 %v1003, 64
        %v1057 = vpop.permute.xlu0 %1056
        %1060 = vrot.lane.b32.xlu0 %v1013, 80
        %v1061 = vpop.permute.xlu0 %1060
        %1064 = vrot.lane.b32.xlu0 %v1010, 96
        %v1065 = vpop.permute.xlu0 %1064
        %1068 = vrot.lane.b32.xlu0 %v1014, 112
        %v1069 = vpop.permute.xlu0 %1068
        %v1071 = vsel %vm825, %v919, %v1017
        %v1072 = vsel %vm827, %v1071, %v1021
        %v1073 = vsel %vm829, %v1072, %v1025
        %v1074 = vsel %vm831, %v1073, %v1029
        %v1075 = vsel %vm833, %v1074, %v1033
        %v1076 = vsel %vm835, %v1075, %v1037
        %v1077 = vsel %vm837, %v1076, %v1041
        %v1078 = vsel %vm825, %v987, %v1045
        %v1079 = vsel %vm827, %v1078, %v1049
        %v1080 = vsel %vm829, %v1079, %v1053
        %v1081 = vsel %vm831, %v1080, %v1057
        %v1082 = vsel %vm833, %v1081, %v1061
        %v1083 = vsel %vm835, %v1082, %v1065
        %v1084 = vsel %vm837, %v1083, %v1069
        %s1085 = scalar_lea.vmem %s1, 4
        %v1086 = vld [vmem:[%s1085] sm:$0xf]
        %vm1087 = vcmask 31744
        %v1089 = vsel %vm1087, %v1086, 0
        %vm1091 = vcmask 1043456
        %v1093 = vsel %vm1091, %v1077, 0
        %v1096 = vsel %vm1091, %v1084, 0
        %1098 = vmatprep.subr.mxu0 0.0
        %1099 = vmatpush1.msra.mxu0 0.0
        %1100 = vmatprep.subr.mxu0 0.0
        %1101 = vmatpush1.msra.mxu0 0.0
        %1102 = vmatprep.subr.mxu0 0.0
        %1103 = vmatpush1.msra.mxu0 0.0
        %1104 = vmatprep.subr.mxu0 0.0
        %1105 = vmatpush1.msra.mxu0 0.0
        %1106 = vmatprep.subr.mxu0 0.0
        %1107 = vmatpush1.msra.mxu0 0.0
        %1108 = vmatprep.subr.mxu0 0.0
        %1109 = vmatpush1.msra.mxu0 0.0
        %1110 = vmatprep.subr.mxu0 0.0
        %1111 = vmatpush1.msra.mxu0 0.0
        %1112 = vmatprep.subr.mxu0 0.0
        %1113 = vmatpush1.msra.mxu0 0.0
        %1114 = vmatprep.subr.mxu0 0.0
        %1115 = vmatpush1.msra.mxu0 0.0
        %1116 = vmatprep.subr.mxu0 0.0
        %1117 = vmatpush1.msra.mxu0 0.0
        %1118 = vmatprep.subr.mxu0 0.0
        %1119 = vmatpush1.msra.mxu0 0.0
        %1120 = vmatprep.subr.mxu0 0.0
        %1121 = vmatpush1.msra.mxu0 0.0
        %1122 = vmatprep.subr.mxu0 0.0
        %1123 = vmatpush1.msra.mxu0 0.0
        %1124 = vmatprep.subr.mxu0 0.0
        %1125 = vmatpush1.msra.mxu0 0.0
        %1126 = vmatprep.subr.mxu0 0.0
        %1127 = vmatpush1.msra.mxu0 0.0
        %1128 = vmatprep.subr.mxu0 %v1096
        %1129 = vmatpush1.msra.mxu0 %v1093
        %1130 = vmatprep.subr.mxu0 0.0
        %1131 = vmatpush2.msra.mxu0 0.0
        %1132 = vmatprep.subr.mxu0 0.0
        %1133 = vmatpush2.msra.mxu0 0.0
        %1134 = vmatprep.subr.mxu0 0.0
        %1135 = vmatpush2.msra.mxu0 0.0
        %1136 = vmatprep.subr.mxu0 0.0
        %1137 = vmatpush2.msra.mxu0 0.0
        %1138 = vmatprep.subr.mxu0 0.0
        %1139 = vmatpush2.msra.mxu0 0.0
        %1140 = vmatprep.subr.mxu0 0.0
        %1141 = vmatpush2.msra.mxu0 0.0
        %1142 = vmatprep.subr.mxu0 0.0
        %1143 = vmatpush2.msra.mxu0 0.0
        %1144 = vmatprep.subr.mxu0 0.0
        %1145 = vmatpush2.msra.mxu0 0.0
        %1146 = vmatprep.subr.mxu0 0.0
        %1147 = vmatpush2.msra.mxu0 0.0
        %1148 = vmatprep.subr.mxu0 0.0
        %1149 = vmatpush2.msra.mxu0 0.0
        %1150 = vmatprep.subr.mxu0 0.0
        %1151 = vmatpush2.msra.mxu0 0.0
        %1152 = vmatprep.subr.mxu0 0.0
        %1153 = vmatpush2.msra.mxu0 0.0
        %1154 = vmatprep.subr.mxu0 0.0
        %1155 = vmatpush2.msra.mxu0 0.0
        %1156 = vmatprep.subr.mxu0 0.0
        %1157 = vmatpush2.msra.mxu0 0.0
        %1158 = vmatprep.subr.mxu0 0.0
        %1159 = vmatpush2.msra.mxu0 0.0
        %1160 = vmatprep.subr.mxu0 0.0
        %1161 = vmatpush2.msra.mxu0 0.0
        %1162 = vmatprep.mubr.f32.mxu0 0.0
        %1163 = vmatmul.mubr.f32.gmra.mxu0 %v1089
        %v1164 = vpop.f32.mrf.mxu0
        %v1165 = vadd.f32 0.0, %v1164
        %v1166 = vpop.f32.mrf.mxu0
        %v1167 = vadd.f32 0.0, %v1166
        %1168 = vdwg.mxu0
        %v1170 = vsel %vm1087, %v846, 0
        %v1173 = vsel %vm1091, %v838, 0
        %v1176 = vsel %vm1091, %v845, 0
        %1178 = vmatprep.subr.mxu0 0.0
        %1179 = vmatpush1.msra.mxu0 0.0
        %1180 = vmatprep.subr.mxu0 0.0
        %1181 = vmatpush1.msra.mxu0 0.0
        %1182 = vmatprep.subr.mxu0 0.0
        %1183 = vmatpush1.msra.mxu0 0.0
        %1184 = vmatprep.subr.mxu0 0.0
        %1185 = vmatpush1.msra.mxu0 0.0
        %1186 = vmatprep.subr.mxu0 0.0
        %1187 = vmatpush1.msra.mxu0 0.0
        %1188 = vmatprep.subr.mxu0 0.0
        %1189 = vmatpush1.msra.mxu0 0.0
        %1190 = vmatprep.subr.mxu0 0.0
        %1191 = vmatpush1.msra.mxu0 0.0
        %1192 = vmatprep.subr.mxu0 0.0
        %1193 = vmatpush1.msra.mxu0 0.0
        %1194 = vmatprep.subr.mxu0 0.0
        %1195 = vmatpush1.msra.mxu0 0.0
        %1196 = vmatprep.subr.mxu0 0.0
        %1197 = vmatpush1.msra.mxu0 0.0
        %1198 = vmatprep.subr.mxu0 0.0
        %1199 = vmatpush1.msra.mxu0 0.0
        %1200 = vmatprep.subr.mxu0 0.0
        %1201 = vmatpush1.msra.mxu0 0.0
        %1202 = vmatprep.subr.mxu0 0.0
        %1203 = vmatpush1.msra.mxu0 0.0
        %1204 = vmatprep.subr.mxu0 0.0
        %1205 = vmatpush1.msra.mxu0 0.0
        %1206 = vmatprep.subr.mxu0 0.0
        %1207 = vmatpush1.msra.mxu0 0.0
        %1208 = vmatprep.subr.mxu0 %v1176
        %1209 = vmatpush1.msra.mxu0 %v1173
        %1210 = vmatprep.subr.mxu0 0.0
        %1211 = vmatpush2.msra.mxu0 0.0
        %1212 = vmatprep.subr.mxu0 0.0
        %1213 = vmatpush2.msra.mxu0 0.0
        %1214 = vmatprep.subr.mxu0 0.0
        %1215 = vmatpush2.msra.mxu0 0.0
        %1216 = vmatprep.subr.mxu0 0.0
        %1217 = vmatpush2.msra.mxu0 0.0
        %1218 = vmatprep.subr.mxu0 0.0
        %1219 = vmatpush2.msra.mxu0 0.0
        %1220 = vmatprep.subr.mxu0 0.0
        %1221 = vmatpush2.msra.mxu0 0.0
        %1222 = vmatprep.subr.mxu0 0.0
        %1223 = vmatpush2.msra.mxu0 0.0
        %1224 = vmatprep.subr.mxu0 0.0
        %1225 = vmatpush2.msra.mxu0 0.0
        %1226 = vmatprep.subr.mxu0 0.0
        %1227 = vmatpush2.msra.mxu0 0.0
        %1228 = vmatprep.subr.mxu0 0.0
        %1229 = vmatpush2.msra.mxu0 0.0
        %1230 = vmatprep.subr.mxu0 0.0
        %1231 = vmatpush2.msra.mxu0 0.0
        %1232 = vmatprep.subr.mxu0 0.0
        %1233 = vmatpush2.msra.mxu0 0.0
        %1234 = vmatprep.subr.mxu0 0.0
        %1235 = vmatpush2.msra.mxu0 0.0
        %1236 = vmatprep.subr.mxu0 0.0
        %1237 = vmatpush2.msra.mxu0 0.0
        %1238 = vmatprep.subr.mxu0 0.0
        %1239 = vmatpush2.msra.mxu0 0.0
        %1240 = vmatprep.subr.mxu0 0.0
        %1241 = vmatpush2.msra.mxu0 0.0
        %1242 = vmatprep.mubr.f32.mxu0 0.0
        %1243 = vmatmul.mubr.f32.gmra.mxu0 %v1170
        %v1244 = vpop.f32.mrf.mxu0
        %v1245 = vadd.f32 %v1165, %v1244
        %v1246 = vpop.f32.mrf.mxu0
        %v1247 = vadd.f32 %v1167, %v1246
        %1248 = vdwg.mxu0
        %1249 = vrot.lane.b32.xlu0 %v621, 126
        %v1250 = vpop.permute.xlu0 %1249
        %1251 = vrot.lane.b32.xlu0 %v622, 126
        %v1252 = vpop.permute.xlu0 %1251
        %1253 = vrot.lane.b32.xlu0 %v624, 126
        %v1254 = vpop.permute.xlu0 %1253
        %1255 = vrot.lane.b32.xlu0 %v625, 126
        %v1256 = vpop.permute.xlu0 %1255
        %1257 = vrot.lane.b32.xlu0 %v627, 126
        %v1258 = vpop.permute.xlu0 %1257
        %1259 = vrot.lane.b32.xlu0 %v628, 126
        %v1260 = vpop.permute.xlu0 %1259
        %1261 = vrot.lane.b32.xlu0 %v630, 126
        %v1262 = vpop.permute.xlu0 %1261
        %1263 = vrot.lane.b32.xlu0 %v631, 126
        %v1264 = vpop.permute.xlu0 %1263
        %v1273 = vcombine.low %v1250, %v1258
        %v1274 = vcombine.high %v1250, %v1258
        %v1276 = vunpack.c.l.s4 1983009808
        %v1277 = vunpack.c.0.s8 %v1276
        %v1278 = vlaneseq
        %v1279 = vshrl.u32 %v1278, 7
        %v1280 = vsub.s32 %v1277, %v1279
        %v1281 = vrot.slane %v1273, %v1280
        %v1283 = vunpack.c.l.s4 1983009808
        %v1284 = vunpack.c.0.s8 %v1283
        %v1285 = vlaneseq
        %v1286 = vshrl.u32 %v1285, 7
        %v1287 = vsub.s32 %v1284, %v1286
        %v1288 = vrot.slane %v1274, %v1287
        %v1289 = vcombine.low %v1254, %v1262
        %v1290 = vcombine.high %v1254, %v1262
        %v1292 = vunpack.c.l.s4 1983009808
        %v1293 = vunpack.c.0.s8 %v1292
        %v1294 = vlaneseq
        %v1295 = vshrl.u32 %v1294, 7
        %v1296 = vsub.s32 %v1293, %v1295
        %v1297 = vrot.slane %v1289, %v1296
        %v1299 = vunpack.c.l.s4 1983009808
        %v1300 = vunpack.c.0.s8 %v1299
        %v1301 = vlaneseq
        %v1302 = vshrl.u32 %v1301, 7
        %v1303 = vsub.s32 %v1300, %v1302
        %v1304 = vrot.slane %v1290, %v1303
        %v1305 = vcombine.low %v1281, %v1297
        %v1306 = vcombine.high %v1281, %v1297
        %v1308 = vunpack.c.l.s4 1934713408
        %v1309 = vunpack.c.0.s8 %v1308
        %v1310 = vlaneseq
        %v1311 = vshrl.u32 %v1310, 7
        %v1312 = vsub.s32 %v1309, %v1311
        %v1313 = vrot.slane %v1305, %v1312
        %v1315 = vunpack.c.l.s4 1934713408
        %v1316 = vunpack.c.0.s8 %v1315
        %v1317 = vlaneseq
        %v1318 = vshrl.u32 %v1317, 7
        %v1319 = vsub.s32 %v1316, %v1318
        %v1320 = vrot.slane %v1306, %v1319
        %v1321 = vcombine.low %v1288, %v1304
        %v1322 = vcombine.high %v1288, %v1304
        %v1324 = vunpack.c.l.s4 1934713408
        %v1325 = vunpack.c.0.s8 %v1324
        %v1326 = vlaneseq
        %v1327 = vshrl.u32 %v1326, 7
        %v1328 = vsub.s32 %v1325, %v1327
        %v1329 = vrot.slane %v1321, %v1328
        %v1331 = vunpack.c.l.s4 1934713408
        %v1332 = vunpack.c.0.s8 %v1331
        %v1333 = vlaneseq
        %v1334 = vshrl.u32 %v1333, 7
        %v1335 = vsub.s32 %v1332, %v1334
        %v1336 = vrot.slane %v1322, %v1335
        %v1337 = vcombine.high %v1313, 0.0
        %v1338 = vcombine.high %v1320, 0.0
        %v1339 = vcombine.high %v1329, 0.0
        %v1340 = vcombine.high %v1336, 0.0
        %v1341 = vcombine.low %v1252, %v1260
        %v1342 = vcombine.high %v1252, %v1260
        %v1344 = vunpack.c.l.s4 1983009808
        %v1345 = vunpack.c.0.s8 %v1344
        %v1346 = vlaneseq
        %v1347 = vshrl.u32 %v1346, 7
        %v1348 = vsub.s32 %v1345, %v1347
        %v1349 = vrot.slane %v1341, %v1348
        %v1351 = vunpack.c.l.s4 1983009808
        %v1352 = vunpack.c.0.s8 %v1351
        %v1353 = vlaneseq
        %v1354 = vshrl.u32 %v1353, 7
        %v1355 = vsub.s32 %v1352, %v1354
        %v1356 = vrot.slane %v1342, %v1355
        %v1357 = vcombine.low %v1256, %v1264
        %v1358 = vcombine.high %v1256, %v1264
        %v1360 = vunpack.c.l.s4 1983009808
        %v1361 = vunpack.c.0.s8 %v1360
        %v1362 = vlaneseq
        %v1363 = vshrl.u32 %v1362, 7
        %v1364 = vsub.s32 %v1361, %v1363
        %v1365 = vrot.slane %v1357, %v1364
        %v1367 = vunpack.c.l.s4 1983009808
        %v1368 = vunpack.c.0.s8 %v1367
        %v1369 = vlaneseq
        %v1370 = vshrl.u32 %v1369, 7
        %v1371 = vsub.s32 %v1368, %v1370
        %v1372 = vrot.slane %v1358, %v1371
        %v1373 = vcombine.low %v1349, %v1365
        %v1374 = vcombine.high %v1349, %v1365
        %v1376 = vunpack.c.l.s4 1934713408
        %v1377 = vunpack.c.0.s8 %v1376
        %v1378 = vlaneseq
        %v1379 = vshrl.u32 %v1378, 7
        %v1380 = vsub.s32 %v1377, %v1379
        %v1381 = vrot.slane %v1373, %v1380
        %v1383 = vunpack.c.l.s4 1934713408
        %v1384 = vunpack.c.0.s8 %v1383
        %v1385 = vlaneseq
        %v1386 = vshrl.u32 %v1385, 7
        %v1387 = vsub.s32 %v1384, %v1386
        %v1388 = vrot.slane %v1374, %v1387
        %v1389 = vcombine.low %v1356, %v1372
        %v1390 = vcombine.high %v1356, %v1372
        %v1392 = vunpack.c.l.s4 1934713408
        %v1393 = vunpack.c.0.s8 %v1392
        %v1394 = vlaneseq
        %v1395 = vshrl.u32 %v1394, 7
        %v1396 = vsub.s32 %v1393, %v1395
        %v1397 = vrot.slane %v1389, %v1396
        %v1399 = vunpack.c.l.s4 1934713408
        %v1400 = vunpack.c.0.s8 %v1399
        %v1401 = vlaneseq
        %v1402 = vshrl.u32 %v1401, 7
        %v1403 = vsub.s32 %v1400, %v1402
        %v1404 = vrot.slane %v1390, %v1403
        %v1405 = vcombine.high %v1381, 0.0
        %v1406 = vcombine.high %v1388, 0.0
        %v1407 = vcombine.high %v1397, 0.0
        %v1408 = vcombine.high %v1404, 0.0
        %1410 = vrot.lane.b32.xlu0 %v1337, 16
        %v1411 = vpop.permute.xlu0 %1410
        %1414 = vrot.lane.b32.xlu0 %v1320, 32
        %v1415 = vpop.permute.xlu0 %1414
        %1418 = vrot.lane.b32.xlu0 %v1338, 48
        %v1419 = vpop.permute.xlu0 %1418
        %1422 = vrot.lane.b32.xlu0 %v1329, 64
        %v1423 = vpop.permute.xlu0 %1422
        %1426 = vrot.lane.b32.xlu0 %v1339, 80
        %v1427 = vpop.permute.xlu0 %1426
        %1430 = vrot.lane.b32.xlu0 %v1336, 96
        %v1431 = vpop.permute.xlu0 %1430
        %1434 = vrot.lane.b32.xlu0 %v1340, 112
        %v1435 = vpop.permute.xlu0 %1434
        %1438 = vrot.lane.b32.xlu0 %v1405, 16
        %v1439 = vpop.permute.xlu0 %1438
        %1442 = vrot.lane.b32.xlu0 %v1388, 32
        %v1443 = vpop.permute.xlu0 %1442
        %1446 = vrot.lane.b32.xlu0 %v1406, 48
        %v1447 = vpop.permute.xlu0 %1446
        %1450 = vrot.lane.b32.xlu0 %v1397, 64
        %v1451 = vpop.permute.xlu0 %1450
        %1454 = vrot.lane.b32.xlu0 %v1407, 80
        %v1455 = vpop.permute.xlu0 %1454
        %1458 = vrot.lane.b32.xlu0 %v1404, 96
        %v1459 = vpop.permute.xlu0 %1458
        %1462 = vrot.lane.b32.xlu0 %v1408, 112
        %v1463 = vpop.permute.xlu0 %1462
        %v1465 = vsel %vm825, %v1313, %v1411
        %v1466 = vsel %vm827, %v1465, %v1415
        %v1467 = vsel %vm829, %v1466, %v1419
        %v1468 = vsel %vm831, %v1467, %v1423
        %v1469 = vsel %vm833, %v1468, %v1427
        %v1470 = vsel %vm835, %v1469, %v1431
        %v1471 = vsel %vm837, %v1470, %v1435
        %v1472 = vsel %vm825, %v1381, %v1439
        %v1473 = vsel %vm827, %v1472, %v1443
        %v1474 = vsel %vm829, %v1473, %v1447
        %v1475 = vsel %vm831, %v1474, %v1451
        %v1476 = vsel %vm833, %v1475, %v1455
        %v1477 = vsel %vm835, %v1476, %v1459
        %v1478 = vsel %vm837, %v1477, %v1463
        %s1479 = scalar_lea.vmem %s1, 8
        %v1480 = vld [vmem:[%s1479] sm:$0xf]
        %v1482 = vsel %vm1087, %v1480, 0
        %v1485 = vsel %vm1091, %v1471, 0
        %v1488 = vsel %vm1091, %v1478, 0
        %1490 = vmatprep.subr.mxu0 0.0
        %1491 = vmatpush1.msra.mxu0 0.0
        %1492 = vmatprep.subr.mxu0 0.0
        %1493 = vmatpush1.msra.mxu0 0.0
        %1494 = vmatprep.subr.mxu0 0.0
        %1495 = vmatpush1.msra.mxu0 0.0
        %1496 = vmatprep.subr.mxu0 0.0
        %1497 = vmatpush1.msra.mxu0 0.0
        %1498 = vmatprep.subr.mxu0 0.0
        %1499 = vmatpush1.msra.mxu0 0.0
        %1500 = vmatprep.subr.mxu0 0.0
        %1501 = vmatpush1.msra.mxu0 0.0
        %1502 = vmatprep.subr.mxu0 0.0
        %1503 = vmatpush1.msra.mxu0 0.0
        %1504 = vmatprep.subr.mxu0 0.0
        %1505 = vmatpush1.msra.mxu0 0.0
        %1506 = vmatprep.subr.mxu0 0.0
        %1507 = vmatpush1.msra.mxu0 0.0
        %1508 = vmatprep.subr.mxu0 0.0
        %1509 = vmatpush1.msra.mxu0 0.0
        %1510 = vmatprep.subr.mxu0 0.0
        %1511 = vmatpush1.msra.mxu0 0.0
        %1512 = vmatprep.subr.mxu0 0.0
        %1513 = vmatpush1.msra.mxu0 0.0
        %1514 = vmatprep.subr.mxu0 0.0
        %1515 = vmatpush1.msra.mxu0 0.0
        %1516 = vmatprep.subr.mxu0 0.0
        %1517 = vmatpush1.msra.mxu0 0.0
        %1518 = vmatprep.subr.mxu0 0.0
        %1519 = vmatpush1.msra.mxu0 0.0
        %1520 = vmatprep.subr.mxu0 %v1488
        %1521 = vmatpush1.msra.mxu0 %v1485
        %1522 = vmatprep.subr.mxu0 0.0
        %1523 = vmatpush2.msra.mxu0 0.0
        %1524 = vmatprep.subr.mxu0 0.0
        %1525 = vmatpush2.msra.mxu0 0.0
        %1526 = vmatprep.subr.mxu0 0.0
        %1527 = vmatpush2.msra.mxu0 0.0
        %1528 = vmatprep.subr.mxu0 0.0
        %1529 = vmatpush2.msra.mxu0 0.0
        %1530 = vmatprep.subr.mxu0 0.0
        %1531 = vmatpush2.msra.mxu0 0.0
        %1532 = vmatprep.subr.mxu0 0.0
        %1533 = vmatpush2.msra.mxu0 0.0
        %1534 = vmatprep.subr.mxu0 0.0
        %1535 = vmatpush2.msra.mxu0 0.0
        %1536 = vmatprep.subr.mxu0 0.0
        %1537 = vmatpush2.msra.mxu0 0.0
        %1538 = vmatprep.subr.mxu0 0.0
        %1539 = vmatpush2.msra.mxu0 0.0
        %1540 = vmatprep.subr.mxu0 0.0
        %1541 = vmatpush2.msra.mxu0 0.0
        %1542 = vmatprep.subr.mxu0 0.0
        %1543 = vmatpush2.msra.mxu0 0.0
        %1544 = vmatprep.subr.mxu0 0.0
        %1545 = vmatpush2.msra.mxu0 0.0
        %1546 = vmatprep.subr.mxu0 0.0
        %1547 = vmatpush2.msra.mxu0 0.0
        %1548 = vmatprep.subr.mxu0 0.0
        %1549 = vmatpush2.msra.mxu0 0.0
        %1550 = vmatprep.subr.mxu0 0.0
        %1551 = vmatpush2.msra.mxu0 0.0
        %1552 = vmatprep.subr.mxu0 0.0
        %1553 = vmatpush2.msra.mxu0 0.0
        %1554 = vmatprep.mubr.f32.mxu0 0.0
        %1555 = vmatmul.mubr.f32.gmra.mxu0 %v1482
        %v1556 = vpop.f32.mrf.mxu0
        %v1557 = vadd.f32 0.0, %v1556
        %v1558 = vpop.f32.mrf.mxu0
        %v1559 = vadd.f32 0.0, %v1558
        %1560 = vdwg.mxu0
        %v1561 = vadd.f32 %v1245, %v1557
        %v1562 = vadd.f32 %v1247, %v1559
        %vm1567 = vcmask 1046528
        %v1568 = vrot.slane %v621, 1
        %v1569 = vrot.slane %v622, 1
        %v1570 = vsel %vm1567, %v1568, %v1569
        %v1571 = vrot.slane %v623, 1
        %v1572 = vsel %vm1567, %v1569, %v1571
        %v1573 = vrot.slane %v624, 1
        %v1574 = vrot.slane %v625, 1
        %v1575 = vsel %vm1567, %v1573, %v1574
        %v1576 = vrot.slane %v626, 1
        %v1577 = vsel %vm1567, %v1574, %v1576
        %v1578 = vrot.slane %v627, 1
        %v1579 = vrot.slane %v628, 1
        %v1580 = vsel %vm1567, %v1578, %v1579
        %v1581 = vrot.slane %v629, 1
        %v1582 = vsel %vm1567, %v1579, %v1581
        %v1583 = vrot.slane %v630, 1
        %v1584 = vrot.slane %v631, 1
        %v1585 = vsel %vm1567, %v1583, %v1584
        %v1586 = vrot.slane %v632, 1
        %v1587 = vsel %vm1567, %v1584, %v1586
        %v1596 = vcombine.low %v1570, %v1580
        %v1597 = vcombine.high %v1570, %v1580
        %v1599 = vunpack.c.l.s4 1983009808
        %v1600 = vunpack.c.0.s8 %v1599
        %v1601 = vlaneseq
        %v1602 = vshrl.u32 %v1601, 7
        %v1603 = vsub.s32 %v1600, %v1602
        %v1604 = vrot.slane %v1596, %v1603
        %v1606 = vunpack.c.l.s4 1983009808
        %v1607 = vunpack.c.0.s8 %v1606
        %v1608 = vlaneseq
        %v1609 = vshrl.u32 %v1608, 7
        %v1610 = vsub.s32 %v1607, %v1609
        %v1611 = vrot.slane %v1597, %v1610
        %v1612 = vcombine.low %v1575, %v1585
        %v1613 = vcombine.high %v1575, %v1585
        %v1615 = vunpack.c.l.s4 1983009808
        %v1616 = vunpack.c.0.s8 %v1615
        %v1617 = vlaneseq
        %v1618 = vshrl.u32 %v1617, 7
        %v1619 = vsub.s32 %v1616, %v1618
        %v1620 = vrot.slane %v1612, %v1619
        %v1622 = vunpack.c.l.s4 1983009808
        %v1623 = vunpack.c.0.s8 %v1622
        %v1624 = vlaneseq
        %v1625 = vshrl.u32 %v1624, 7
        %v1626 = vsub.s32 %v1623, %v1625
        %v1627 = vrot.slane %v1613, %v1626
        %v1628 = vcombine.low %v1604, %v1620
        %v1629 = vcombine.high %v1604, %v1620
        %v1631 = vunpack.c.l.s4 1934713408
        %v1632 = vunpack.c.0.s8 %v1631
        %v1633 = vlaneseq
        %v1634 = vshrl.u32 %v1633, 7
        %v1635 = vsub.s32 %v1632, %v1634
        %v1636 = vrot.slane %v1628, %v1635
        %v1638 = vunpack.c.l.s4 1934713408
        %v1639 = vunpack.c.0.s8 %v1638
        %v1640 = vlaneseq
        %v1641 = vshrl.u32 %v1640, 7
        %v1642 = vsub.s32 %v1639, %v1641
        %v1643 = vrot.slane %v1629, %v1642
        %v1644 = vcombine.low %v1611, %v1627
        %v1645 = vcombine.high %v1611, %v1627
        %v1647 = vunpack.c.l.s4 1934713408
        %v1648 = vunpack.c.0.s8 %v1647
        %v1649 = vlaneseq
        %v1650 = vshrl.u32 %v1649, 7
        %v1651 = vsub.s32 %v1648, %v1650
        %v1652 = vrot.slane %v1644, %v1651
        %v1654 = vunpack.c.l.s4 1934713408
        %v1655 = vunpack.c.0.s8 %v1654
        %v1656 = vlaneseq
        %v1657 = vshrl.u32 %v1656, 7
        %v1658 = vsub.s32 %v1655, %v1657
        %v1659 = vrot.slane %v1645, %v1658
        %v1660 = vcombine.high %v1636, 0.0
        %v1661 = vcombine.high %v1643, 0.0
        %v1662 = vcombine.high %v1652, 0.0
        %v1663 = vcombine.high %v1659, 0.0
        %v1664 = vcombine.low %v1572, %v1582
        %v1665 = vcombine.high %v1572, %v1582
        %v1667 = vunpack.c.l.s4 1983009808
        %v1668 = vunpack.c.0.s8 %v1667
        %v1669 = vlaneseq
        %v1670 = vshrl.u32 %v1669, 7
        %v1671 = vsub.s32 %v1668, %v1670
        %v1672 = vrot.slane %v1664, %v1671
        %v1674 = vunpack.c.l.s4 1983009808
        %v1675 = vunpack.c.0.s8 %v1674
        %v1676 = vlaneseq
        %v1677 = vshrl.u32 %v1676, 7
        %v1678 = vsub.s32 %v1675, %v1677
        %v1679 = vrot.slane %v1665, %v1678
        %v1680 = vcombine.low %v1577, %v1587
        %v1681 = vcombine.high %v1577, %v1587
        %v1683 = vunpack.c.l.s4 1983009808
        %v1684 = vunpack.c.0.s8 %v1683
        %v1685 = vlaneseq
        %v1686 = vshrl.u32 %v1685, 7
        %v1687 = vsub.s32 %v1684, %v1686
        %v1688 = vrot.slane %v1680, %v1687
        %v1690 = vunpack.c.l.s4 1983009808
        %v1691 = vunpack.c.0.s8 %v1690
        %v1692 = vlaneseq
        %v1693 = vshrl.u32 %v1692, 7
        %v1694 = vsub.s32 %v1691, %v1693
        %v1695 = vrot.slane %v1681, %v1694
        %v1696 = vcombine.low %v1672, %v1688
        %v1697 = vcombine.high %v1672, %v1688
        %v1699 = vunpack.c.l.s4 1934713408
        %v1700 = vunpack.c.0.s8 %v1699
        %v1701 = vlaneseq
        %v1702 = vshrl.u32 %v1701, 7
        %v1703 = vsub.s32 %v1700, %v1702
        %v1704 = vrot.slane %v1696, %v1703
        %v1706 = vunpack.c.l.s4 1934713408
        %v1707 = vunpack.c.0.s8 %v1706
        %v1708 = vlaneseq
        %v1709 = vshrl.u32 %v1708, 7
        %v1710 = vsub.s32 %v1707, %v1709
        %v1711 = vrot.slane %v1697, %v1710
        %v1712 = vcombine.low %v1679, %v1695
        %v1713 = vcombine.high %v1679, %v1695
        %v1715 = vunpack.c.l.s4 1934713408
        %v1716 = vunpack.c.0.s8 %v1715
        %v1717 = vlaneseq
        %v1718 = vshrl.u32 %v1717, 7
        %v1719 = vsub.s32 %v1716, %v1718
        %v1720 = vrot.slane %v1712, %v1719
        %v1722 = vunpack.c.l.s4 1934713408
        %v1723 = vunpack.c.0.s8 %v1722
        %v1724 = vlaneseq
        %v1725 = vshrl.u32 %v1724, 7
        %v1726 = vsub.s32 %v1723, %v1725
        %v1727 = vrot.slane %v1713, %v1726
        %v1728 = vcombine.high %v1704, 0.0
        %v1729 = vcombine.high %v1711, 0.0
        %v1730 = vcombine.high %v1720, 0.0
        %v1731 = vcombine.high %v1727, 0.0
        %1733 = vrot.lane.b32.xlu0 %v1660, 16
        %v1734 = vpop.permute.xlu0 %1733
        %1737 = vrot.lane.b32.xlu0 %v1643, 32
        %v1738 = vpop.permute.xlu0 %1737
        %1741 = vrot.lane.b32.xlu0 %v1661, 48
        %v1742 = vpop.permute.xlu0 %1741
        %1745 = vrot.lane.b32.xlu0 %v1652, 64
        %v1746 = vpop.permute.xlu0 %1745
        %1749 = vrot.lane.b32.xlu0 %v1662, 80
        %v1750 = vpop.permute.xlu0 %1749
        %1753 = vrot.lane.b32.xlu0 %v1659, 96
        %v1754 = vpop.permute.xlu0 %1753
        %1757 = vrot.lane.b32.xlu0 %v1663, 112
        %v1758 = vpop.permute.xlu0 %1757
        %1761 = vrot.lane.b32.xlu0 %v1728, 16
        %v1762 = vpop.permute.xlu0 %1761
        %1765 = vrot.lane.b32.xlu0 %v1711, 32
        %v1766 = vpop.permute.xlu0 %1765
        %1769 = vrot.lane.b32.xlu0 %v1729, 48
        %v1770 = vpop.permute.xlu0 %1769
        %1773 = vrot.lane.b32.xlu0 %v1720, 64
        %v1774 = vpop.permute.xlu0 %1773
        %1777 = vrot.lane.b32.xlu0 %v1730, 80
        %v1778 = vpop.permute.xlu0 %1777
        %1781 = vrot.lane.b32.xlu0 %v1727, 96
        %v1782 = vpop.permute.xlu0 %1781
        %1785 = vrot.lane.b32.xlu0 %v1731, 112
        %v1786 = vpop.permute.xlu0 %1785
        %v1788 = vsel %vm825, %v1636, %v1734
        %v1789 = vsel %vm827, %v1788, %v1738
        %v1790 = vsel %vm829, %v1789, %v1742
        %v1791 = vsel %vm831, %v1790, %v1746
        %v1792 = vsel %vm833, %v1791, %v1750
        %v1793 = vsel %vm835, %v1792, %v1754
        %v1794 = vsel %vm837, %v1793, %v1758
        %v1795 = vsel %vm825, %v1704, %v1762
        %v1796 = vsel %vm827, %v1795, %v1766
        %v1797 = vsel %vm829, %v1796, %v1770
        %v1798 = vsel %vm831, %v1797, %v1774
        %v1799 = vsel %vm833, %v1798, %v1778
        %v1800 = vsel %vm835, %v1799, %v1782
        %v1801 = vsel %vm837, %v1800, %v1786
        %s1802 = scalar_lea.vmem %s1, 12
        %v1803 = vld [vmem:[%s1802] sm:$0xf]
        %v1805 = vsel %vm1087, %v1803, 0
        %v1808 = vsel %vm1091, %v1794, 0
        %v1811 = vsel %vm1091, %v1801, 0
        %1813 = vmatprep.subr.mxu0 0.0
        %1814 = vmatpush1.msra.mxu0 0.0
        %1815 = vmatprep.subr.mxu0 0.0
        %1816 = vmatpush1.msra.mxu0 0.0
        %1817 = vmatprep.subr.mxu0 0.0
        %1818 = vmatpush1.msra.mxu0 0.0
        %1819 = vmatprep.subr.mxu0 0.0
        %1820 = vmatpush1.msra.mxu0 0.0
        %1821 = vmatprep.subr.mxu0 0.0
        %1822 = vmatpush1.msra.mxu0 0.0
        %1823 = vmatprep.subr.mxu0 0.0
        %1824 = vmatpush1.msra.mxu0 0.0
        %1825 = vmatprep.subr.mxu0 0.0
        %1826 = vmatpush1.msra.mxu0 0.0
        %1827 = vmatprep.subr.mxu0 0.0
        %1828 = vmatpush1.msra.mxu0 0.0
        %1829 = vmatprep.subr.mxu0 0.0
        %1830 = vmatpush1.msra.mxu0 0.0
        %1831 = vmatprep.subr.mxu0 0.0
        %1832 = vmatpush1.msra.mxu0 0.0
        %1833 = vmatprep.subr.mxu0 0.0
        %1834 = vmatpush1.msra.mxu0 0.0
        %1835 = vmatprep.subr.mxu0 0.0
        %1836 = vmatpush1.msra.mxu0 0.0
        %1837 = vmatprep.subr.mxu0 0.0
        %1838 = vmatpush1.msra.mxu0 0.0
        %1839 = vmatprep.subr.mxu0 0.0
        %1840 = vmatpush1.msra.mxu0 0.0
        %1841 = vmatprep.subr.mxu0 0.0
        %1842 = vmatpush1.msra.mxu0 0.0
        %1843 = vmatprep.subr.mxu0 %v1811
        %1844 = vmatpush1.msra.mxu0 %v1808
        %1845 = vmatprep.subr.mxu0 0.0
        %1846 = vmatpush2.msra.mxu0 0.0
        %1847 = vmatprep.subr.mxu0 0.0
        %1848 = vmatpush2.msra.mxu0 0.0
        %1849 = vmatprep.subr.mxu0 0.0
        %1850 = vmatpush2.msra.mxu0 0.0
        %1851 = vmatprep.subr.mxu0 0.0
        %1852 = vmatpush2.msra.mxu0 0.0
        %1853 = vmatprep.subr.mxu0 0.0
        %1854 = vmatpush2.msra.mxu0 0.0
        %1855 = vmatprep.subr.mxu0 0.0
        %1856 = vmatpush2.msra.mxu0 0.0
        %1857 = vmatprep.subr.mxu0 0.0
        %1858 = vmatpush2.msra.mxu0 0.0
        %1859 = vmatprep.subr.mxu0 0.0
        %1860 = vmatpush2.msra.mxu0 0.0
        %1861 = vmatprep.subr.mxu0 0.0
        %1862 = vmatpush2.msra.mxu0 0.0
        %1863 = vmatprep.subr.mxu0 0.0
        %1864 = vmatpush2.msra.mxu0 0.0
        %1865 = vmatprep.subr.mxu0 0.0
        %1866 = vmatpush2.msra.mxu0 0.0
        %1867 = vmatprep.subr.mxu0 0.0
        %1868 = vmatpush2.msra.mxu0 0.0
        %1869 = vmatprep.subr.mxu0 0.0
        %1870 = vmatpush2.msra.mxu0 0.0
        %1871 = vmatprep.subr.mxu0 0.0
        %1872 = vmatpush2.msra.mxu0 0.0
        %1873 = vmatprep.subr.mxu0 0.0
        %1874 = vmatpush2.msra.mxu0 0.0
        %1875 = vmatprep.subr.mxu0 0.0
        %1876 = vmatpush2.msra.mxu0 0.0
        %1877 = vmatprep.mubr.f32.mxu0 0.0
        %1878 = vmatmul.mubr.f32.gmra.mxu0 %v1805
        %v1879 = vpop.f32.mrf.mxu0
        %v1880 = vadd.f32 0.0, %v1879
        %v1881 = vpop.f32.mrf.mxu0
        %v1882 = vadd.f32 0.0, %v1881
        %1883 = vdwg.mxu0
        %v1884 = vadd.f32 %v1561, %v1880
        %v1885 = vadd.f32 %v1562, %v1882
        %1886 = vrot.lane.b32.xlu0 %v1570, 127
        %v1887 = vpop.permute.xlu0 %1886
        %1888 = vrot.lane.b32.xlu0 %v1572, 127
        %v1889 = vpop.permute.xlu0 %1888
        %1890 = vrot.lane.b32.xlu0 %v1575, 127
        %v1891 = vpop.permute.xlu0 %1890
        %1892 = vrot.lane.b32.xlu0 %v1577, 127
        %v1893 = vpop.permute.xlu0 %1892
        %1894 = vrot.lane.b32.xlu0 %v1580, 127
        %v1895 = vpop.permute.xlu0 %1894
        %1896 = vrot.lane.b32.xlu0 %v1582, 127
        %v1897 = vpop.permute.xlu0 %1896
        %1898 = vrot.lane.b32.xlu0 %v1585, 127
        %v1899 = vpop.permute.xlu0 %1898
        %1900 = vrot.lane.b32.xlu0 %v1587, 127
        %v1901 = vpop.permute.xlu0 %1900
        %v1910 = vcombine.low %v1887, %v1895
        %v1911 = vcombine.high %v1887, %v1895
        %v1913 = vunpack.c.l.s4 1983009808
        %v1914 = vunpack.c.0.s8 %v1913
        %v1915 = vlaneseq
        %v1916 = vshrl.u32 %v1915, 7
        %v1917 = vsub.s32 %v1914, %v1916
        %v1918 = vrot.slane %v1910, %v1917
        %v1920 = vunpack.c.l.s4 1983009808
        %v1921 = vunpack.c.0.s8 %v1920
        %v1922 = vlaneseq
        %v1923 = vshrl.u32 %v1922, 7
        %v1924 = vsub.s32 %v1921, %v1923
        %v1925 = vrot.slane %v1911, %v1924
        %v1926 = vcombine.low %v1891, %v1899
        %v1927 = vcombine.high %v1891, %v1899
        %v1929 = vunpack.c.l.s4 1983009808
        %v1930 = vunpack.c.0.s8 %v1929
        %v1931 = vlaneseq
        %v1932 = vshrl.u32 %v1931, 7
        %v1933 = vsub.s32 %v1930, %v1932
        %v1934 = vrot.slane %v1926, %v1933
        %v1936 = vunpack.c.l.s4 1983009808
        %v1937 = vunpack.c.0.s8 %v1936
        %v1938 = vlaneseq
        %v1939 = vshrl.u32 %v1938, 7
        %v1940 = vsub.s32 %v1937, %v1939
        %v1941 = vrot.slane %v1927, %v1940
        %v1942 = vcombine.low %v1918, %v1934
        %v1943 = vcombine.high %v1918, %v1934
        %v1945 = vunpack.c.l.s4 1934713408
        %v1946 = vunpack.c.0.s8 %v1945
        %v1947 = vlaneseq
        %v1948 = vshrl.u32 %v1947, 7
        %v1949 = vsub.s32 %v1946, %v1948
        %v1950 = vrot.slane %v1942, %v1949
        %v1952 = vunpack.c.l.s4 1934713408
        %v1953 = vunpack.c.0.s8 %v1952
        %v1954 = vlaneseq
        %v1955 = vshrl.u32 %v1954, 7
        %v1956 = vsub.s32 %v1953, %v1955
        %v1957 = vrot.slane %v1943, %v1956
        %v1958 = vcombine.low %v1925, %v1941
        %v1959 = vcombine.high %v1925, %v1941
        %v1961 = vunpack.c.l.s4 1934713408
        %v1962 = vunpack.c.0.s8 %v1961
        %v1963 = vlaneseq
        %v1964 = vshrl.u32 %v1963, 7
        %v1965 = vsub.s32 %v1962, %v1964
        %v1966 = vrot.slane %v1958, %v1965
        %v1968 = vunpack.c.l.s4 1934713408
        %v1969 = vunpack.c.0.s8 %v1968
        %v1970 = vlaneseq
        %v1971 = vshrl.u32 %v1970, 7
        %v1972 = vsub.s32 %v1969, %v1971
        %v1973 = vrot.slane %v1959, %v1972
        %v1974 = vcombine.high %v1950, 0.0
        %v1975 = vcombine.high %v1957, 0.0
        %v1976 = vcombine.high %v1966, 0.0
        %v1977 = vcombine.high %v1973, 0.0
        %v1978 = vcombine.low %v1889, %v1897
        %v1979 = vcombine.high %v1889, %v1897
        %v1981 = vunpack.c.l.s4 1983009808
        %v1982 = vunpack.c.0.s8 %v1981
        %v1983 = vlaneseq
        %v1984 = vshrl.u32 %v1983, 7
        %v1985 = vsub.s32 %v1982, %v1984
        %v1986 = vrot.slane %v1978, %v1985
        %v1988 = vunpack.c.l.s4 1983009808
        %v1989 = vunpack.c.0.s8 %v1988
        %v1990 = vlaneseq
        %v1991 = vshrl.u32 %v1990, 7
        %v1992 = vsub.s32 %v1989, %v1991
        %v1993 = vrot.slane %v1979, %v1992
        %v1994 = vcombine.low %v1893, %v1901
        %v1995 = vcombine.high %v1893, %v1901
        %v1997 = vunpack.c.l.s4 1983009808
        %v1998 = vunpack.c.0.s8 %v1997
        %v1999 = vlaneseq
        %v2000 = vshrl.u32 %v1999, 7
        %v2001 = vsub.s32 %v1998, %v2000
        %v2002 = vrot.slane %v1994, %v2001
        %v2004 = vunpack.c.l.s4 1983009808
        %v2005 = vunpack.c.0.s8 %v2004
        %v2006 = vlaneseq
        %v2007 = vshrl.u32 %v2006, 7
        %v2008 = vsub.s32 %v2005, %v2007
        %v2009 = vrot.slane %v1995, %v2008
        %v2010 = vcombine.low %v1986, %v2002
        %v2011 = vcombine.high %v1986, %v2002
        %v2013 = vunpack.c.l.s4 1934713408
        %v2014 = vunpack.c.0.s8 %v2013
        %v2015 = vlaneseq
        %v2016 = vshrl.u32 %v2015, 7
        %v2017 = vsub.s32 %v2014, %v2016
        %v2018 = vrot.slane %v2010, %v2017
        %v2020 = vunpack.c.l.s4 1934713408
        %v2021 = vunpack.c.0.s8 %v2020
        %v2022 = vlaneseq
        %v2023 = vshrl.u32 %v2022, 7
        %v2024 = vsub.s32 %v2021, %v2023
        %v2025 = vrot.slane %v2011, %v2024
        %v2026 = vcombine.low %v1993, %v2009
        %v2027 = vcombine.high %v1993, %v2009
        %v2029 = vunpack.c.l.s4 1934713408
        %v2030 = vunpack.c.0.s8 %v2029
        %v2031 = vlaneseq
        %v2032 = vshrl.u32 %v2031, 7
        %v2033 = vsub.s32 %v2030, %v2032
        %v2034 = vrot.slane %v2026, %v2033
        %v2036 = vunpack.c.l.s4 1934713408
        %v2037 = vunpack.c.0.s8 %v2036
        %v2038 = vlaneseq
        %v2039 = vshrl.u32 %v2038, 7
        %v2040 = vsub.s32 %v2037, %v2039
        %v2041 = vrot.slane %v2027, %v2040
        %v2042 = vcombine.high %v2018, 0.0
        %v2043 = vcombine.high %v2025, 0.0
        %v2044 = vcombine.high %v2034, 0.0
        %v2045 = vcombine.high %v2041, 0.0
        %2047 = vrot.lane.b32.xlu0 %v1974, 16
        %v2048 = vpop.permute.xlu0 %2047
        %2051 = vrot.lane.b32.xlu0 %v1957, 32
        %v2052 = vpop.permute.xlu0 %2051
        %2055 = vrot.lane.b32.xlu0 %v1975, 48
        %v2056 = vpop.permute.xlu0 %2055
        %2059 = vrot.lane.b32.xlu0 %v1966, 64
        %v2060 = vpop.permute.xlu0 %2059
        %2063 = vrot.lane.b32.xlu0 %v1976, 80
        %v2064 = vpop.permute.xlu0 %2063
        %2067 = vrot.lane.b32.xlu0 %v1973, 96
        %v2068 = vpop.permute.xlu0 %2067
        %2071 = vrot.lane.b32.xlu0 %v1977, 112
        %v2072 = vpop.permute.xlu0 %2071
        %2075 = vrot.lane.b32.xlu0 %v2042, 16
        %v2076 = vpop.permute.xlu0 %2075
        %2079 = vrot.lane.b32.xlu0 %v2025, 32
        %v2080 = vpop.permute.xlu0 %2079
        %2083 = vrot.lane.b32.xlu0 %v2043, 48
        %v2084 = vpop.permute.xlu0 %2083
        %2087 = vrot.lane.b32.xlu0 %v2034, 64
        %v2088 = vpop.permute.xlu0 %2087
        %2091 = vrot.lane.b32.xlu0 %v2044, 80
        %v2092 = vpop.permute.xlu0 %2091
        %2095 = vrot.lane.b32.xlu0 %v2041, 96
        %v2096 = vpop.permute.xlu0 %2095
        %2099 = vrot.lane.b32.xlu0 %v2045, 112
        %v2100 = vpop.permute.xlu0 %2099
        %v2102 = vsel %vm825, %v1950, %v2048
        %v2103 = vsel %vm827, %v2102, %v2052
        %v2104 = vsel %vm829, %v2103, %v2056
        %v2105 = vsel %vm831, %v2104, %v2060
        %v2106 = vsel %vm833, %v2105, %v2064
        %v2107 = vsel %vm835, %v2106, %v2068
        %v2108 = vsel %vm837, %v2107, %v2072
        %v2109 = vsel %vm825, %v2018, %v2076
        %v2110 = vsel %vm827, %v2109, %v2080
        %v2111 = vsel %vm829, %v2110, %v2084
        %v2112 = vsel %vm831, %v2111, %v2088
        %v2113 = vsel %vm833, %v2112, %v2092
        %v2114 = vsel %vm835, %v2113, %v2096
        %v2115 = vsel %vm837, %v2114, %v2100
        %s2116 = scalar_lea.vmem %s1, 16
        %v2117 = vld [vmem:[%s2116] sm:$0xf]
        %v2119 = vsel %vm1087, %v2117, 0
        %v2122 = vsel %vm1091, %v2108, 0
        %v2125 = vsel %vm1091, %v2115, 0
        %2127 = vmatprep.subr.mxu0 0.0
        %2128 = vmatpush1.msra.mxu0 0.0
        %2129 = vmatprep.subr.mxu0 0.0
        %2130 = vmatpush1.msra.mxu0 0.0
        %2131 = vmatprep.subr.mxu0 0.0
        %2132 = vmatpush1.msra.mxu0 0.0
        %2133 = vmatprep.subr.mxu0 0.0
        %2134 = vmatpush1.msra.mxu0 0.0
        %2135 = vmatprep.subr.mxu0 0.0
        %2136 = vmatpush1.msra.mxu0 0.0
        %2137 = vmatprep.subr.mxu0 0.0
        %2138 = vmatpush1.msra.mxu0 0.0
        %2139 = vmatprep.subr.mxu0 0.0
        %2140 = vmatpush1.msra.mxu0 0.0
        %2141 = vmatprep.subr.mxu0 0.0
        %2142 = vmatpush1.msra.mxu0 0.0
        %2143 = vmatprep.subr.mxu0 0.0
        %2144 = vmatpush1.msra.mxu0 0.0
        %2145 = vmatprep.subr.mxu0 0.0
        %2146 = vmatpush1.msra.mxu0 0.0
        %2147 = vmatprep.subr.mxu0 0.0
        %2148 = vmatpush1.msra.mxu0 0.0
        %2149 = vmatprep.subr.mxu0 0.0
        %2150 = vmatpush1.msra.mxu0 0.0
        %2151 = vmatprep.subr.mxu0 0.0
        %2152 = vmatpush1.msra.mxu0 0.0
        %2153 = vmatprep.subr.mxu0 0.0
        %2154 = vmatpush1.msra.mxu0 0.0
        %2155 = vmatprep.subr.mxu0 0.0
        %2156 = vmatpush1.msra.mxu0 0.0
        %2157 = vmatprep.subr.mxu0 %v2125
        %2158 = vmatpush1.msra.mxu0 %v2122
        %2159 = vmatprep.subr.mxu0 0.0
        %2160 = vmatpush2.msra.mxu0 0.0
        %2161 = vmatprep.subr.mxu0 0.0
        %2162 = vmatpush2.msra.mxu0 0.0
        %2163 = vmatprep.subr.mxu0 0.0
        %2164 = vmatpush2.msra.mxu0 0.0
        %2165 = vmatprep.subr.mxu0 0.0
        %2166 = vmatpush2.msra.mxu0 0.0
        %2167 = vmatprep.subr.mxu0 0.0
        %2168 = vmatpush2.msra.mxu0 0.0
        %2169 = vmatprep.subr.mxu0 0.0
        %2170 = vmatpush2.msra.mxu0 0.0
        %2171 = vmatprep.subr.mxu0 0.0
        %2172 = vmatpush2.msra.mxu0 0.0
        %2173 = vmatprep.subr.mxu0 0.0
        %2174 = vmatpush2.msra.mxu0 0.0
        %2175 = vmatprep.subr.mxu0 0.0
        %2176 = vmatpush2.msra.mxu0 0.0
        %2177 = vmatprep.subr.mxu0 0.0
        %2178 = vmatpush2.msra.mxu0 0.0
        %2179 = vmatprep.subr.mxu0 0.0
        %2180 = vmatpush2.msra.mxu0 0.0
        %2181 = vmatprep.subr.mxu0 0.0
        %2182 = vmatpush2.msra.mxu0 0.0
        %2183 = vmatprep.subr.mxu0 0.0
        %2184 = vmatpush2.msra.mxu0 0.0
        %2185 = vmatprep.subr.mxu0 0.0
        %2186 = vmatpush2.msra.mxu0 0.0
        %2187 = vmatprep.subr.mxu0 0.0
        %2188 = vmatpush2.msra.mxu0 0.0
        %2189 = vmatprep.subr.mxu0 0.0
        %2190 = vmatpush2.msra.mxu0 0.0
        %2191 = vmatprep.mubr.f32.mxu0 0.0
        %2192 = vmatmul.mubr.f32.gmra.mxu0 %v2119
        %v2193 = vpop.f32.mrf.mxu0
        %v2194 = vadd.f32 0.0, %v2193
        %v2195 = vpop.f32.mrf.mxu0
        %v2196 = vadd.f32 0.0, %v2195
        %2197 = vdwg.mxu0
        %v2198 = vadd.f32 %v1884, %v2194
        %v2199 = vadd.f32 %v1885, %v2196
        %2200 = vrot.lane.b32.xlu0 %v1570, 126
        %v2201 = vpop.permute.xlu0 %2200
        %2202 = vrot.lane.b32.xlu0 %v1572, 126
        %v2203 = vpop.permute.xlu0 %2202
        %2204 = vrot.lane.b32.xlu0 %v1575, 126
        %v2205 = vpop.permute.xlu0 %2204
        %2206 = vrot.lane.b32.xlu0 %v1577, 126
        %v2207 = vpop.permute.xlu0 %2206
        %2208 = vrot.lane.b32.xlu0 %v1580, 126
        %v2209 = vpop.permute.xlu0 %2208
        %2210 = vrot.lane.b32.xlu0 %v1582, 126
        %v2211 = vpop.permute.xlu0 %2210
        %2212 = vrot.lane.b32.xlu0 %v1585, 126
        %v2213 = vpop.permute.xlu0 %2212
        %2214 = vrot.lane.b32.xlu0 %v1587, 126
        %v2215 = vpop.permute.xlu0 %2214
        %v2224 = vcombine.low %v2201, %v2209
        %v2225 = vcombine.high %v2201, %v2209
        %v2227 = vunpack.c.l.s4 1983009808
        %v2228 = vunpack.c.0.s8 %v2227
        %v2229 = vlaneseq
        %v2230 = vshrl.u32 %v2229, 7
        %v2231 = vsub.s32 %v2228, %v2230
        %v2232 = vrot.slane %v2224, %v2231
        %v2234 = vunpack.c.l.s4 1983009808
        %v2235 = vunpack.c.0.s8 %v2234
        %v2236 = vlaneseq
        %v2237 = vshrl.u32 %v2236, 7
        %v2238 = vsub.s32 %v2235, %v2237
        %v2239 = vrot.slane %v2225, %v2238
        %v2240 = vcombine.low %v2205, %v2213
        %v2241 = vcombine.high %v2205, %v2213
        %v2243 = vunpack.c.l.s4 1983009808
        %v2244 = vunpack.c.0.s8 %v2243
        %v2245 = vlaneseq
        %v2246 = vshrl.u32 %v2245, 7
        %v2247 = vsub.s32 %v2244, %v2246
        %v2248 = vrot.slane %v2240, %v2247
        %v2250 = vunpack.c.l.s4 1983009808
        %v2251 = vunpack.c.0.s8 %v2250
        %v2252 = vlaneseq
        %v2253 = vshrl.u32 %v2252, 7
        %v2254 = vsub.s32 %v2251, %v2253
        %v2255 = vrot.slane %v2241, %v2254
        %v2256 = vcombine.low %v2232, %v2248
        %v2257 = vcombine.high %v2232, %v2248
        %v2259 = vunpack.c.l.s4 1934713408
        %v2260 = vunpack.c.0.s8 %v2259
        %v2261 = vlaneseq
        %v2262 = vshrl.u32 %v2261, 7
        %v2263 = vsub.s32 %v2260, %v2262
        %v2264 = vrot.slane %v2256, %v2263
        %v2266 = vunpack.c.l.s4 1934713408
        %v2267 = vunpack.c.0.s8 %v2266
        %v2268 = vlaneseq
        %v2269 = vshrl.u32 %v2268, 7
        %v2270 = vsub.s32 %v2267, %v2269
        %v2271 = vrot.slane %v2257, %v2270
        %v2272 = vcombine.low %v2239, %v2255
        %v2273 = vcombine.high %v2239, %v2255
        %v2275 = vunpack.c.l.s4 1934713408
        %v2276 = vunpack.c.0.s8 %v2275
        %v2277 = vlaneseq
        %v2278 = vshrl.u32 %v2277, 7
        %v2279 = vsub.s32 %v2276, %v2278
        %v2280 = vrot.slane %v2272, %v2279
        %v2282 = vunpack.c.l.s4 1934713408
        %v2283 = vunpack.c.0.s8 %v2282
        %v2284 = vlaneseq
        %v2285 = vshrl.u32 %v2284, 7
        %v2286 = vsub.s32 %v2283, %v2285
        %v2287 = vrot.slane %v2273, %v2286
        %v2288 = vcombine.high %v2264, 0.0
        %v2289 = vcombine.high %v2271, 0.0
        %v2290 = vcombine.high %v2280, 0.0
        %v2291 = vcombine.high %v2287, 0.0
        %v2292 = vcombine.low %v2203, %v2211
        %v2293 = vcombine.high %v2203, %v2211
        %v2295 = vunpack.c.l.s4 1983009808
        %v2296 = vunpack.c.0.s8 %v2295
        %v2297 = vlaneseq
        %v2298 = vshrl.u32 %v2297, 7
        %v2299 = vsub.s32 %v2296, %v2298
        %v2300 = vrot.slane %v2292, %v2299
        %v2302 = vunpack.c.l.s4 1983009808
        %v2303 = vunpack.c.0.s8 %v2302
        %v2304 = vlaneseq
        %v2305 = vshrl.u32 %v2304, 7
        %v2306 = vsub.s32 %v2303, %v2305
        %v2307 = vrot.slane %v2293, %v2306
        %v2308 = vcombine.low %v2207, %v2215
        %v2309 = vcombine.high %v2207, %v2215
        %v2311 = vunpack.c.l.s4 1983009808
        %v2312 = vunpack.c.0.s8 %v2311
        %v2313 = vlaneseq
        %v2314 = vshrl.u32 %v2313, 7
        %v2315 = vsub.s32 %v2312, %v2314
        %v2316 = vrot.slane %v2308, %v2315
        %v2318 = vunpack.c.l.s4 1983009808
        %v2319 = vunpack.c.0.s8 %v2318
        %v2320 = vlaneseq
        %v2321 = vshrl.u32 %v2320, 7
        %v2322 = vsub.s32 %v2319, %v2321
        %v2323 = vrot.slane %v2309, %v2322
        %v2324 = vcombine.low %v2300, %v2316
        %v2325 = vcombine.high %v2300, %v2316
        %v2327 = vunpack.c.l.s4 1934713408
        %v2328 = vunpack.c.0.s8 %v2327
        %v2329 = vlaneseq
        %v2330 = vshrl.u32 %v2329, 7
        %v2331 = vsub.s32 %v2328, %v2330
        %v2332 = vrot.slane %v2324, %v2331
        %v2334 = vunpack.c.l.s4 1934713408
        %v2335 = vunpack.c.0.s8 %v2334
        %v2336 = vlaneseq
        %v2337 = vshrl.u32 %v2336, 7
        %v2338 = vsub.s32 %v2335, %v2337
        %v2339 = vrot.slane %v2325, %v2338
        %v2340 = vcombine.low %v2307, %v2323
        %v2341 = vcombine.high %v2307, %v2323
        %v2343 = vunpack.c.l.s4 1934713408
        %v2344 = vunpack.c.0.s8 %v2343
        %v2345 = vlaneseq
        %v2346 = vshrl.u32 %v2345, 7
        %v2347 = vsub.s32 %v2344, %v2346
        %v2348 = vrot.slane %v2340, %v2347
        %v2350 = vunpack.c.l.s4 1934713408
        %v2351 = vunpack.c.0.s8 %v2350
        %v2352 = vlaneseq
        %v2353 = vshrl.u32 %v2352, 7
        %v2354 = vsub.s32 %v2351, %v2353
        %v2355 = vrot.slane %v2341, %v2354
        %v2356 = vcombine.high %v2332, 0.0
        %v2357 = vcombine.high %v2339, 0.0
        %v2358 = vcombine.high %v2348, 0.0
        %v2359 = vcombine.high %v2355, 0.0
        %2361 = vrot.lane.b32.xlu0 %v2288, 16
        %v2362 = vpop.permute.xlu0 %2361
        %2365 = vrot.lane.b32.xlu0 %v2271, 32
        %v2366 = vpop.permute.xlu0 %2365
        %2369 = vrot.lane.b32.xlu0 %v2289, 48
        %v2370 = vpop.permute.xlu0 %2369
        %2373 = vrot.lane.b32.xlu0 %v2280, 64
        %v2374 = vpop.permute.xlu0 %2373
        %2377 = vrot.lane.b32.xlu0 %v2290, 80
        %v2378 = vpop.permute.xlu0 %2377
        %2381 = vrot.lane.b32.xlu0 %v2287, 96
        %v2382 = vpop.permute.xlu0 %2381
        %2385 = vrot.lane.b32.xlu0 %v2291, 112
        %v2386 = vpop.permute.xlu0 %2385
        %2389 = vrot.lane.b32.xlu0 %v2356, 16
        %v2390 = vpop.permute.xlu0 %2389
        %2393 = vrot.lane.b32.xlu0 %v2339, 32
        %v2394 = vpop.permute.xlu0 %2393
        %2397 = vrot.lane.b32.xlu0 %v2357, 48
        %v2398 = vpop.permute.xlu0 %2397
        %2401 = vrot.lane.b32.xlu0 %v2348, 64
        %v2402 = vpop.permute.xlu0 %2401
        %2405 = vrot.lane.b32.xlu0 %v2358, 80
        %v2406 = vpop.permute.xlu0 %2405
        %2409 = vrot.lane.b32.xlu0 %v2355, 96
        %v2410 = vpop.permute.xlu0 %2409
        %2413 = vrot.lane.b32.xlu0 %v2359, 112
        %v2414 = vpop.permute.xlu0 %2413
        %v2416 = vsel %vm825, %v2264, %v2362
        %v2417 = vsel %vm827, %v2416, %v2366
        %v2418 = vsel %vm829, %v2417, %v2370
        %v2419 = vsel %vm831, %v2418, %v2374
        %v2420 = vsel %vm833, %v2419, %v2378
        %v2421 = vsel %vm835, %v2420, %v2382
        %v2422 = vsel %vm837, %v2421, %v2386
        %v2423 = vsel %vm825, %v2332, %v2390
        %v2424 = vsel %vm827, %v2423, %v2394
        %v2425 = vsel %vm829, %v2424, %v2398
        %v2426 = vsel %vm831, %v2425, %v2402
        %v2427 = vsel %vm833, %v2426, %v2406
        %v2428 = vsel %vm835, %v2427, %v2410
        %v2429 = vsel %vm837, %v2428, %v2414
        %s2430 = scalar_lea.vmem %s1, 20
        %v2431 = vld [vmem:[%s2430] sm:$0xf]
        %v2433 = vsel %vm1087, %v2431, 0
        %v2436 = vsel %vm1091, %v2422, 0
        %v2439 = vsel %vm1091, %v2429, 0
        %2441 = vmatprep.subr.mxu0 0.0
        %2442 = vmatpush1.msra.mxu0 0.0
        %2443 = vmatprep.subr.mxu0 0.0
        %2444 = vmatpush1.msra.mxu0 0.0
        %2445 = vmatprep.subr.mxu0 0.0
        %2446 = vmatpush1.msra.mxu0 0.0
        %2447 = vmatprep.subr.mxu0 0.0
        %2448 = vmatpush1.msra.mxu0 0.0
        %2449 = vmatprep.subr.mxu0 0.0
        %2450 = vmatpush1.msra.mxu0 0.0
        %2451 = vmatprep.subr.mxu0 0.0
        %2452 = vmatpush1.msra.mxu0 0.0
        %2453 = vmatprep.subr.mxu0 0.0
        %2454 = vmatpush1.msra.mxu0 0.0
        %2455 = vmatprep.subr.mxu0 0.0
        %2456 = vmatpush1.msra.mxu0 0.0
        %2457 = vmatprep.subr.mxu0 0.0
        %2458 = vmatpush1.msra.mxu0 0.0
        %2459 = vmatprep.subr.mxu0 0.0
        %2460 = vmatpush1.msra.mxu0 0.0
        %2461 = vmatprep.subr.mxu0 0.0
        %2462 = vmatpush1.msra.mxu0 0.0
        %2463 = vmatprep.subr.mxu0 0.0
        %2464 = vmatpush1.msra.mxu0 0.0
        %2465 = vmatprep.subr.mxu0 0.0
        %2466 = vmatpush1.msra.mxu0 0.0
        %2467 = vmatprep.subr.mxu0 0.0
        %2468 = vmatpush1.msra.mxu0 0.0
        %2469 = vmatprep.subr.mxu0 0.0
        %2470 = vmatpush1.msra.mxu0 0.0
        %2471 = vmatprep.subr.mxu0 %v2439
        %2472 = vmatpush1.msra.mxu0 %v2436
        %2473 = vmatprep.subr.mxu0 0.0
        %2474 = vmatpush2.msra.mxu0 0.0
        %2475 = vmatprep.subr.mxu0 0.0
        %2476 = vmatpush2.msra.mxu0 0.0
        %2477 = vmatprep.subr.mxu0 0.0
        %2478 = vmatpush2.msra.mxu0 0.0
        %2479 = vmatprep.subr.mxu0 0.0
        %2480 = vmatpush2.msra.mxu0 0.0
        %2481 = vmatprep.subr.mxu0 0.0
        %2482 = vmatpush2.msra.mxu0 0.0
        %2483 = vmatprep.subr.mxu0 0.0
        %2484 = vmatpush2.msra.mxu0 0.0
        %2485 = vmatprep.subr.mxu0 0.0
        %2486 = vmatpush2.msra.mxu0 0.0
        %2487 = vmatprep.subr.mxu0 0.0
        %2488 = vmatpush2.msra.mxu0 0.0
        %2489 = vmatprep.subr.mxu0 0.0
        %2490 = vmatpush2.msra.mxu0 0.0
        %2491 = vmatprep.subr.mxu0 0.0
        %2492 = vmatpush2.msra.mxu0 0.0
        %2493 = vmatprep.subr.mxu0 0.0
        %2494 = vmatpush2.msra.mxu0 0.0
        %2495 = vmatprep.subr.mxu0 0.0
        %2496 = vmatpush2.msra.mxu0 0.0
        %2497 = vmatprep.subr.mxu0 0.0
        %2498 = vmatpush2.msra.mxu0 0.0
        %2499 = vmatprep.subr.mxu0 0.0
        %2500 = vmatpush2.msra.mxu0 0.0
        %2501 = vmatprep.subr.mxu0 0.0
        %2502 = vmatpush2.msra.mxu0 0.0
        %2503 = vmatprep.subr.mxu0 0.0
        %2504 = vmatpush2.msra.mxu0 0.0
        %2505 = vmatprep.mubr.f32.mxu0 0.0
        %2506 = vmatmul.mubr.f32.gmra.mxu0 %v2433
        %v2507 = vpop.f32.mrf.mxu0
        %v2508 = vadd.f32 0.0, %v2507
        %v2509 = vpop.f32.mrf.mxu0
        %v2510 = vadd.f32 0.0, %v2509
        %2511 = vdwg.mxu0
        %v2512 = vadd.f32 %v2198, %v2508
        %v2513 = vadd.f32 %v2199, %v2510
        %vm2514 = vcmask 1045504
        %v2515 = vrot.slane %v621, 2
        %v2516 = vrot.slane %v622, 2
        %v2517 = vsel %vm2514, %v2515, %v2516
        %v2518 = vrot.slane %v623, 2
        %v2519 = vsel %vm2514, %v2516, %v2518
        %v2520 = vrot.slane %v624, 2
        %v2521 = vrot.slane %v625, 2
        %v2522 = vsel %vm2514, %v2520, %v2521
        %v2523 = vrot.slane %v626, 2
        %v2524 = vsel %vm2514, %v2521, %v2523
        %v2525 = vrot.slane %v627, 2
        %v2526 = vrot.slane %v628, 2
        %v2527 = vsel %vm2514, %v2525, %v2526
        %v2528 = vrot.slane %v629, 2
        %v2529 = vsel %vm2514, %v2526, %v2528
        %v2530 = vrot.slane %v630, 2
        %v2531 = vrot.slane %v631, 2
        %v2532 = vsel %vm2514, %v2530, %v2531
        %v2533 = vrot.slane %v632, 2
        %v2534 = vsel %vm2514, %v2531, %v2533
        %v2543 = vcombine.low %v2517, %v2527
        %v2544 = vcombine.high %v2517, %v2527
        %v2546 = vunpack.c.l.s4 1983009808
        %v2547 = vunpack.c.0.s8 %v2546
        %v2548 = vlaneseq
        %v2549 = vshrl.u32 %v2548, 7
        %v2550 = vsub.s32 %v2547, %v2549
        %v2551 = vrot.slane %v2543, %v2550
        %v2553 = vunpack.c.l.s4 1983009808
        %v2554 = vunpack.c.0.s8 %v2553
        %v2555 = vlaneseq
        %v2556 = vshrl.u32 %v2555, 7
        %v2557 = vsub.s32 %v2554, %v2556
        %v2558 = vrot.slane %v2544, %v2557
        %v2559 = vcombine.low %v2522, %v2532
        %v2560 = vcombine.high %v2522, %v2532
        %v2562 = vunpack.c.l.s4 1983009808
        %v2563 = vunpack.c.0.s8 %v2562
        %v2564 = vlaneseq
        %v2565 = vshrl.u32 %v2564, 7
        %v2566 = vsub.s32 %v2563, %v2565
        %v2567 = vrot.slane %v2559, %v2566
        %v2569 = vunpack.c.l.s4 1983009808
        %v2570 = vunpack.c.0.s8 %v2569
        %v2571 = vlaneseq
        %v2572 = vshrl.u32 %v2571, 7
        %v2573 = vsub.s32 %v2570, %v2572
        %v2574 = vrot.slane %v2560, %v2573
        %v2575 = vcombine.low %v2551, %v2567
        %v2576 = vcombine.high %v2551, %v2567
        %v2578 = vunpack.c.l.s4 1934713408
        %v2579 = vunpack.c.0.s8 %v2578
        %v2580 = vlaneseq
        %v2581 = vshrl.u32 %v2580, 7
        %v2582 = vsub.s32 %v2579, %v2581
        %v2583 = vrot.slane %v2575, %v2582
        %v2585 = vunpack.c.l.s4 1934713408
        %v2586 = vunpack.c.0.s8 %v2585
        %v2587 = vlaneseq
        %v2588 = vshrl.u32 %v2587, 7
        %v2589 = vsub.s32 %v2586, %v2588
        %v2590 = vrot.slane %v2576, %v2589
        %v2591 = vcombine.low %v2558, %v2574
        %v2592 = vcombine.high %v2558, %v2574
        %v2594 = vunpack.c.l.s4 1934713408
        %v2595 = vunpack.c.0.s8 %v2594
        %v2596 = vlaneseq
        %v2597 = vshrl.u32 %v2596, 7
        %v2598 = vsub.s32 %v2595, %v2597
        %v2599 = vrot.slane %v2591, %v2598
        %v2601 = vunpack.c.l.s4 1934713408
        %v2602 = vunpack.c.0.s8 %v2601
        %v2603 = vlaneseq
        %v2604 = vshrl.u32 %v2603, 7
        %v2605 = vsub.s32 %v2602, %v2604
        %v2606 = vrot.slane %v2592, %v2605
        %v2607 = vcombine.high %v2583, 0.0
        %v2608 = vcombine.high %v2590, 0.0
        %v2609 = vcombine.high %v2599, 0.0
        %v2610 = vcombine.high %v2606, 0.0
        %v2611 = vcombine.low %v2519, %v2529
        %v2612 = vcombine.high %v2519, %v2529
        %v2614 = vunpack.c.l.s4 1983009808
        %v2615 = vunpack.c.0.s8 %v2614
        %v2616 = vlaneseq
        %v2617 = vshrl.u32 %v2616, 7
        %v2618 = vsub.s32 %v2615, %v2617
        %v2619 = vrot.slane %v2611, %v2618
        %v2621 = vunpack.c.l.s4 1983009808
        %v2622 = vunpack.c.0.s8 %v2621
        %v2623 = vlaneseq
        %v2624 = vshrl.u32 %v2623, 7
        %v2625 = vsub.s32 %v2622, %v2624
        %v2626 = vrot.slane %v2612, %v2625
        %v2627 = vcombine.low %v2524, %v2534
        %v2628 = vcombine.high %v2524, %v2534
        %v2630 = vunpack.c.l.s4 1983009808
        %v2631 = vunpack.c.0.s8 %v2630
        %v2632 = vlaneseq
        %v2633 = vshrl.u32 %v2632, 7
        %v2634 = vsub.s32 %v2631, %v2633
        %v2635 = vrot.slane %v2627, %v2634
        %v2637 = vunpack.c.l.s4 1983009808
        %v2638 = vunpack.c.0.s8 %v2637
        %v2639 = vlaneseq
        %v2640 = vshrl.u32 %v2639, 7
        %v2641 = vsub.s32 %v2638, %v2640
        %v2642 = vrot.slane %v2628, %v2641
        %v2643 = vcombine.low %v2619, %v2635
        %v2644 = vcombine.high %v2619, %v2635
        %v2646 = vunpack.c.l.s4 1934713408
        %v2647 = vunpack.c.0.s8 %v2646
        %v2648 = vlaneseq
        %v2649 = vshrl.u32 %v2648, 7
        %v2650 = vsub.s32 %v2647, %v2649
        %v2651 = vrot.slane %v2643, %v2650
        %v2653 = vunpack.c.l.s4 1934713408
        %v2654 = vunpack.c.0.s8 %v2653
        %v2655 = vlaneseq
        %v2656 = vshrl.u32 %v2655, 7
        %v2657 = vsub.s32 %v2654, %v2656
        %v2658 = vrot.slane %v2644, %v2657
        %v2659 = vcombine.low %v2626, %v2642
        %v2660 = vcombine.high %v2626, %v2642
        %v2662 = vunpack.c.l.s4 1934713408
        %v2663 = vunpack.c.0.s8 %v2662
        %v2664 = vlaneseq
        %v2665 = vshrl.u32 %v2664, 7
        %v2666 = vsub.s32 %v2663, %v2665
        %v2667 = vrot.slane %v2659, %v2666
        %v2669 = vunpack.c.l.s4 1934713408
        %v2670 = vunpack.c.0.s8 %v2669
        %v2671 = vlaneseq
        %v2672 = vshrl.u32 %v2671, 7
        %v2673 = vsub.s32 %v2670, %v2672
        %v2674 = vrot.slane %v2660, %v2673
        %v2675 = vcombine.high %v2651, 0.0
        %v2676 = vcombine.high %v2658, 0.0
        %v2677 = vcombine.high %v2667, 0.0
        %v2678 = vcombine.high %v2674, 0.0
        %2680 = vrot.lane.b32.xlu0 %v2607, 16
        %v2681 = vpop.permute.xlu0 %2680
        %2684 = vrot.lane.b32.xlu0 %v2590, 32
        %v2685 = vpop.permute.xlu0 %2684
        %2688 = vrot.lane.b32.xlu0 %v2608, 48
        %v2689 = vpop.permute.xlu0 %2688
        %2692 = vrot.lane.b32.xlu0 %v2599, 64
        %v2693 = vpop.permute.xlu0 %2692
        %2696 = vrot.lane.b32.xlu0 %v2609, 80
        %v2697 = vpop.permute.xlu0 %2696
        %2700 = vrot.lane.b32.xlu0 %v2606, 96
        %v2701 = vpop.permute.xlu0 %2700
        %2704 = vrot.lane.b32.xlu0 %v2610, 112
        %v2705 = vpop.permute.xlu0 %2704
        %2708 = vrot.lane.b32.xlu0 %v2675, 16
        %v2709 = vpop.permute.xlu0 %2708
        %2712 = vrot.lane.b32.xlu0 %v2658, 32
        %v2713 = vpop.permute.xlu0 %2712
        %2716 = vrot.lane.b32.xlu0 %v2676, 48
        %v2717 = vpop.permute.xlu0 %2716
        %2720 = vrot.lane.b32.xlu0 %v2667, 64
        %v2721 = vpop.permute.xlu0 %2720
        %2724 = vrot.lane.b32.xlu0 %v2677, 80
        %v2725 = vpop.permute.xlu0 %2724
        %2728 = vrot.lane.b32.xlu0 %v2674, 96
        %v2729 = vpop.permute.xlu0 %2728
        %2732 = vrot.lane.b32.xlu0 %v2678, 112
        %v2733 = vpop.permute.xlu0 %2732
        %v2735 = vsel %vm825, %v2583, %v2681
        %v2736 = vsel %vm827, %v2735, %v2685
        %v2737 = vsel %vm829, %v2736, %v2689
        %v2738 = vsel %vm831, %v2737, %v2693
        %v2739 = vsel %vm833, %v2738, %v2697
        %v2740 = vsel %vm835, %v2739, %v2701
        %v2741 = vsel %vm837, %v2740, %v2705
        %v2742 = vsel %vm825, %v2651, %v2709
        %v2743 = vsel %vm827, %v2742, %v2713
        %v2744 = vsel %vm829, %v2743, %v2717
        %v2745 = vsel %vm831, %v2744, %v2721
        %v2746 = vsel %vm833, %v2745, %v2725
        %v2747 = vsel %vm835, %v2746, %v2729
        %v2748 = vsel %vm837, %v2747, %v2733
        %s2749 = scalar_lea.vmem %s1, 24
        %v2750 = vld [vmem:[%s2749] sm:$0xf]
        %v2752 = vsel %vm1087, %v2750, 0
        %v2755 = vsel %vm1091, %v2741, 0
        %v2758 = vsel %vm1091, %v2748, 0
        %2760 = vmatprep.subr.mxu0 0.0
        %2761 = vmatpush1.msra.mxu0 0.0
        %2762 = vmatprep.subr.mxu0 0.0
        %2763 = vmatpush1.msra.mxu0 0.0
        %2764 = vmatprep.subr.mxu0 0.0
        %2765 = vmatpush1.msra.mxu0 0.0
        %2766 = vmatprep.subr.mxu0 0.0
        %2767 = vmatpush1.msra.mxu0 0.0
        %2768 = vmatprep.subr.mxu0 0.0
        %2769 = vmatpush1.msra.mxu0 0.0
        %2770 = vmatprep.subr.mxu0 0.0
        %2771 = vmatpush1.msra.mxu0 0.0
        %2772 = vmatprep.subr.mxu0 0.0
        %2773 = vmatpush1.msra.mxu0 0.0
        %2774 = vmatprep.subr.mxu0 0.0
        %2775 = vmatpush1.msra.mxu0 0.0
        %2776 = vmatprep.subr.mxu0 0.0
        %2777 = vmatpush1.msra.mxu0 0.0
        %2778 = vmatprep.subr.mxu0 0.0
        %2779 = vmatpush1.msra.mxu0 0.0
        %2780 = vmatprep.subr.mxu0 0.0
        %2781 = vmatpush1.msra.mxu0 0.0
        %2782 = vmatprep.subr.mxu0 0.0
        %2783 = vmatpush1.msra.mxu0 0.0
        %2784 = vmatprep.subr.mxu0 0.0
        %2785 = vmatpush1.msra.mxu0 0.0
        %2786 = vmatprep.subr.mxu0 0.0
        %2787 = vmatpush1.msra.mxu0 0.0
        %2788 = vmatprep.subr.mxu0 0.0
        %2789 = vmatpush1.msra.mxu0 0.0
        %2790 = vmatprep.subr.mxu0 %v2758
        %2791 = vmatpush1.msra.mxu0 %v2755
        %2792 = vmatprep.subr.mxu0 0.0
        %2793 = vmatpush2.msra.mxu0 0.0
        %2794 = vmatprep.subr.mxu0 0.0
        %2795 = vmatpush2.msra.mxu0 0.0
        %2796 = vmatprep.subr.mxu0 0.0
        %2797 = vmatpush2.msra.mxu0 0.0
        %2798 = vmatprep.subr.mxu0 0.0
        %2799 = vmatpush2.msra.mxu0 0.0
        %2800 = vmatprep.subr.mxu0 0.0
        %2801 = vmatpush2.msra.mxu0 0.0
        %2802 = vmatprep.subr.mxu0 0.0
        %2803 = vmatpush2.msra.mxu0 0.0
        %2804 = vmatprep.subr.mxu0 0.0
        %2805 = vmatpush2.msra.mxu0 0.0
        %2806 = vmatprep.subr.mxu0 0.0
        %2807 = vmatpush2.msra.mxu0 0.0
        %2808 = vmatprep.subr.mxu0 0.0
        %2809 = vmatpush2.msra.mxu0 0.0
        %2810 = vmatprep.subr.mxu0 0.0
        %2811 = vmatpush2.msra.mxu0 0.0
        %2812 = vmatprep.subr.mxu0 0.0
        %2813 = vmatpush2.msra.mxu0 0.0
        %2814 = vmatprep.subr.mxu0 0.0
        %2815 = vmatpush2.msra.mxu0 0.0
        %2816 = vmatprep.subr.mxu0 0.0
        %2817 = vmatpush2.msra.mxu0 0.0
        %2818 = vmatprep.subr.mxu0 0.0
        %2819 = vmatpush2.msra.mxu0 0.0
        %2820 = vmatprep.subr.mxu0 0.0
        %2821 = vmatpush2.msra.mxu0 0.0
        %2822 = vmatprep.subr.mxu0 0.0
        %2823 = vmatpush2.msra.mxu0 0.0
        %2824 = vmatprep.mubr.f32.mxu0 0.0
        %2825 = vmatmul.mubr.f32.gmra.mxu0 %v2752
        %v2826 = vpop.f32.mrf.mxu0
        %v2827 = vadd.f32 0.0, %v2826
        %v2828 = vpop.f32.mrf.mxu0
        %v2829 = vadd.f32 0.0, %v2828
        %2830 = vdwg.mxu0
        %v2831 = vadd.f32 %v2512, %v2827
        %v2832 = vadd.f32 %v2513, %v2829
        %2833 = vrot.lane.b32.xlu0 %v2517, 127
        %v2834 = vpop.permute.xlu0 %2833
        %2835 = vrot.lane.b32.xlu0 %v2519, 127
        %v2836 = vpop.permute.xlu0 %2835
        %2837 = vrot.lane.b32.xlu0 %v2522, 127
        %v2838 = vpop.permute.xlu0 %2837
        %2839 = vrot.lane.b32.xlu0 %v2524, 127
        %v2840 = vpop.permute.xlu0 %2839
        %2841 = vrot.lane.b32.xlu0 %v2527, 127
        %v2842 = vpop.permute.xlu0 %2841
        %2843 = vrot.lane.b32.xlu0 %v2529, 127
        %v2844 = vpop.permute.xlu0 %2843
        %2845 = vrot.lane.b32.xlu0 %v2532, 127
        %v2846 = vpop.permute.xlu0 %2845
        %2847 = vrot.lane.b32.xlu0 %v2534, 127
        %v2848 = vpop.permute.xlu0 %2847
        %v2857 = vcombine.low %v2834, %v2842
        %v2858 = vcombine.high %v2834, %v2842
        %v2860 = vunpack.c.l.s4 1983009808
        %v2861 = vunpack.c.0.s8 %v2860
        %v2862 = vlaneseq
        %v2863 = vshrl.u32 %v2862, 7
        %v2864 = vsub.s32 %v2861, %v2863
        %v2865 = vrot.slane %v2857, %v2864
        %v2867 = vunpack.c.l.s4 1983009808
        %v2868 = vunpack.c.0.s8 %v2867
        %v2869 = vlaneseq
        %v2870 = vshrl.u32 %v2869, 7
        %v2871 = vsub.s32 %v2868, %v2870
        %v2872 = vrot.slane %v2858, %v2871
        %v2873 = vcombine.low %v2838, %v2846
        %v2874 = vcombine.high %v2838, %v2846
        %v2876 = vunpack.c.l.s4 1983009808
        %v2877 = vunpack.c.0.s8 %v2876
        %v2878 = vlaneseq
        %v2879 = vshrl.u32 %v2878, 7
        %v2880 = vsub.s32 %v2877, %v2879
        %v2881 = vrot.slane %v2873, %v2880
        %v2883 = vunpack.c.l.s4 1983009808
        %v2884 = vunpack.c.0.s8 %v2883
        %v2885 = vlaneseq
        %v2886 = vshrl.u32 %v2885, 7
        %v2887 = vsub.s32 %v2884, %v2886
        %v2888 = vrot.slane %v2874, %v2887
        %v2889 = vcombine.low %v2865, %v2881
        %v2890 = vcombine.high %v2865, %v2881
        %v2892 = vunpack.c.l.s4 1934713408
        %v2893 = vunpack.c.0.s8 %v2892
        %v2894 = vlaneseq
        %v2895 = vshrl.u32 %v2894, 7
        %v2896 = vsub.s32 %v2893, %v2895
        %v2897 = vrot.slane %v2889, %v2896
        %v2899 = vunpack.c.l.s4 1934713408
        %v2900 = vunpack.c.0.s8 %v2899
        %v2901 = vlaneseq
        %v2902 = vshrl.u32 %v2901, 7
        %v2903 = vsub.s32 %v2900, %v2902
        %v2904 = vrot.slane %v2890, %v2903
        %v2905 = vcombine.low %v2872, %v2888
        %v2906 = vcombine.high %v2872, %v2888
        %v2908 = vunpack.c.l.s4 1934713408
        %v2909 = vunpack.c.0.s8 %v2908
        %v2910 = vlaneseq
        %v2911 = vshrl.u32 %v2910, 7
        %v2912 = vsub.s32 %v2909, %v2911
        %v2913 = vrot.slane %v2905, %v2912
        %v2915 = vunpack.c.l.s4 1934713408
        %v2916 = vunpack.c.0.s8 %v2915
        %v2917 = vlaneseq
        %v2918 = vshrl.u32 %v2917, 7
        %v2919 = vsub.s32 %v2916, %v2918
        %v2920 = vrot.slane %v2906, %v2919
        %v2921 = vcombine.high %v2897, 0.0
        %v2922 = vcombine.high %v2904, 0.0
        %v2923 = vcombine.high %v2913, 0.0
        %v2924 = vcombine.high %v2920, 0.0
        %v2925 = vcombine.low %v2836, %v2844
        %v2926 = vcombine.high %v2836, %v2844
        %v2928 = vunpack.c.l.s4 1983009808
        %v2929 = vunpack.c.0.s8 %v2928
        %v2930 = vlaneseq
        %v2931 = vshrl.u32 %v2930, 7
        %v2932 = vsub.s32 %v2929, %v2931
        %v2933 = vrot.slane %v2925, %v2932
        %v2935 = vunpack.c.l.s4 1983009808
        %v2936 = vunpack.c.0.s8 %v2935
        %v2937 = vlaneseq
        %v2938 = vshrl.u32 %v2937, 7
        %v2939 = vsub.s32 %v2936, %v2938
        %v2940 = vrot.slane %v2926, %v2939
        %v2941 = vcombine.low %v2840, %v2848
        %v2942 = vcombine.high %v2840, %v2848
        %v2944 = vunpack.c.l.s4 1983009808
        %v2945 = vunpack.c.0.s8 %v2944
        %v2946 = vlaneseq
        %v2947 = vshrl.u32 %v2946, 7
        %v2948 = vsub.s32 %v2945, %v2947
        %v2949 = vrot.slane %v2941, %v2948
        %v2951 = vunpack.c.l.s4 1983009808
        %v2952 = vunpack.c.0.s8 %v2951
        %v2953 = vlaneseq
        %v2954 = vshrl.u32 %v2953, 7
        %v2955 = vsub.s32 %v2952, %v2954
        %v2956 = vrot.slane %v2942, %v2955
        %v2957 = vcombine.low %v2933, %v2949
        %v2958 = vcombine.high %v2933, %v2949
        %v2960 = vunpack.c.l.s4 1934713408
        %v2961 = vunpack.c.0.s8 %v2960
        %v2962 = vlaneseq
        %v2963 = vshrl.u32 %v2962, 7
        %v2964 = vsub.s32 %v2961, %v2963
        %v2965 = vrot.slane %v2957, %v2964
        %v2967 = vunpack.c.l.s4 1934713408
        %v2968 = vunpack.c.0.s8 %v2967
        %v2969 = vlaneseq
        %v2970 = vshrl.u32 %v2969, 7
        %v2971 = vsub.s32 %v2968, %v2970
        %v2972 = vrot.slane %v2958, %v2971
        %v2973 = vcombine.low %v2940, %v2956
        %v2974 = vcombine.high %v2940, %v2956
        %v2976 = vunpack.c.l.s4 1934713408
        %v2977 = vunpack.c.0.s8 %v2976
        %v2978 = vlaneseq
        %v2979 = vshrl.u32 %v2978, 7
        %v2980 = vsub.s32 %v2977, %v2979
        %v2981 = vrot.slane %v2973, %v2980
        %v2983 = vunpack.c.l.s4 1934713408
        %v2984 = vunpack.c.0.s8 %v2983
        %v2985 = vlaneseq
        %v2986 = vshrl.u32 %v2985, 7
        %v2987 = vsub.s32 %v2984, %v2986
        %v2988 = vrot.slane %v2974, %v2987
        %v2989 = vcombine.high %v2965, 0.0
        %v2990 = vcombine.high %v2972, 0.0
        %v2991 = vcombine.high %v2981, 0.0
        %v2992 = vcombine.high %v2988, 0.0
        %2994 = vrot.lane.b32.xlu0 %v2921, 16
        %v2995 = vpop.permute.xlu0 %2994
        %2998 = vrot.lane.b32.xlu0 %v2904, 32
        %v2999 = vpop.permute.xlu0 %2998
        %3002 = vrot.lane.b32.xlu0 %v2922, 48
        %v3003 = vpop.permute.xlu0 %3002
        %3006 = vrot.lane.b32.xlu0 %v2913, 64
        %v3007 = vpop.permute.xlu0 %3006
        %3010 = vrot.lane.b32.xlu0 %v2923, 80
        %v3011 = vpop.permute.xlu0 %3010
        %3014 = vrot.lane.b32.xlu0 %v2920, 96
        %v3015 = vpop.permute.xlu0 %3014
        %3018 = vrot.lane.b32.xlu0 %v2924, 112
        %v3019 = vpop.permute.xlu0 %3018
        %3022 = vrot.lane.b32.xlu0 %v2989, 16
        %v3023 = vpop.permute.xlu0 %3022
        %3026 = vrot.lane.b32.xlu0 %v2972, 32
        %v3027 = vpop.permute.xlu0 %3026
        %3030 = vrot.lane.b32.xlu0 %v2990, 48
        %v3031 = vpop.permute.xlu0 %3030
        %3034 = vrot.lane.b32.xlu0 %v2981, 64
        %v3035 = vpop.permute.xlu0 %3034
        %3038 = vrot.lane.b32.xlu0 %v2991, 80
        %v3039 = vpop.permute.xlu0 %3038
        %3042 = vrot.lane.b32.xlu0 %v2988, 96
        %v3043 = vpop.permute.xlu0 %3042
        %3046 = vrot.lane.b32.xlu0 %v2992, 112
        %v3047 = vpop.permute.xlu0 %3046
        %v3049 = vsel %vm825, %v2897, %v2995
        %v3050 = vsel %vm827, %v3049, %v2999
        %v3051 = vsel %vm829, %v3050, %v3003
        %v3052 = vsel %vm831, %v3051, %v3007
        %v3053 = vsel %vm833, %v3052, %v3011
        %v3054 = vsel %vm835, %v3053, %v3015
        %v3055 = vsel %vm837, %v3054, %v3019
        %v3056 = vsel %vm825, %v2965, %v3023
        %v3057 = vsel %vm827, %v3056, %v3027
        %v3058 = vsel %vm829, %v3057, %v3031
        %v3059 = vsel %vm831, %v3058, %v3035
        %v3060 = vsel %vm833, %v3059, %v3039
        %v3061 = vsel %vm835, %v3060, %v3043
        %v3062 = vsel %vm837, %v3061, %v3047
        %s3063 = scalar_lea.vmem %s1, 28
        %v3064 = vld [vmem:[%s3063] sm:$0xf]
        %v3066 = vsel %vm1087, %v3064, 0
        %v3069 = vsel %vm1091, %v3055, 0
        %v3072 = vsel %vm1091, %v3062, 0
        %3074 = vmatprep.subr.mxu0 0.0
        %3075 = vmatpush1.msra.mxu0 0.0
        %3076 = vmatprep.subr.mxu0 0.0
        %3077 = vmatpush1.msra.mxu0 0.0
        %3078 = vmatprep.subr.mxu0 0.0
        %3079 = vmatpush1.msra.mxu0 0.0
        %3080 = vmatprep.subr.mxu0 0.0
        %3081 = vmatpush1.msra.mxu0 0.0
        %3082 = vmatprep.subr.mxu0 0.0
        %3083 = vmatpush1.msra.mxu0 0.0
        %3084 = vmatprep.subr.mxu0 0.0
        %3085 = vmatpush1.msra.mxu0 0.0
        %3086 = vmatprep.subr.mxu0 0.0
        %3087 = vmatpush1.msra.mxu0 0.0
        %3088 = vmatprep.subr.mxu0 0.0
        %3089 = vmatpush1.msra.mxu0 0.0
        %3090 = vmatprep.subr.mxu0 0.0
        %3091 = vmatpush1.msra.mxu0 0.0
        %3092 = vmatprep.subr.mxu0 0.0
        %3093 = vmatpush1.msra.mxu0 0.0
        %3094 = vmatprep.subr.mxu0 0.0
        %3095 = vmatpush1.msra.mxu0 0.0
        %3096 = vmatprep.subr.mxu0 0.0
        %3097 = vmatpush1.msra.mxu0 0.0
        %3098 = vmatprep.subr.mxu0 0.0
        %3099 = vmatpush1.msra.mxu0 0.0
        %3100 = vmatprep.subr.mxu0 0.0
        %3101 = vmatpush1.msra.mxu0 0.0
        %3102 = vmatprep.subr.mxu0 0.0
        %3103 = vmatpush1.msra.mxu0 0.0
        %3104 = vmatprep.subr.mxu0 %v3072
        %3105 = vmatpush1.msra.mxu0 %v3069
        %3106 = vmatprep.subr.mxu0 0.0
        %3107 = vmatpush2.msra.mxu0 0.0
        %3108 = vmatprep.subr.mxu0 0.0
        %3109 = vmatpush2.msra.mxu0 0.0
        %3110 = vmatprep.subr.mxu0 0.0
        %3111 = vmatpush2.msra.mxu0 0.0
        %3112 = vmatprep.subr.mxu0 0.0
        %3113 = vmatpush2.msra.mxu0 0.0
        %3114 = vmatprep.subr.mxu0 0.0
        %3115 = vmatpush2.msra.mxu0 0.0
        %3116 = vmatprep.subr.mxu0 0.0
        %3117 = vmatpush2.msra.mxu0 0.0
        %3118 = vmatprep.subr.mxu0 0.0
        %3119 = vmatpush2.msra.mxu0 0.0
        %3120 = vmatprep.subr.mxu0 0.0
        %3121 = vmatpush2.msra.mxu0 0.0
        %3122 = vmatprep.subr.mxu0 0.0
        %3123 = vmatpush2.msra.mxu0 0.0
        %3124 = vmatprep.subr.mxu0 0.0
        %3125 = vmatpush2.msra.mxu0 0.0
        %3126 = vmatprep.subr.mxu0 0.0
        %3127 = vmatpush2.msra.mxu0 0.0
        %3128 = vmatprep.subr.mxu0 0.0
        %3129 = vmatpush2.msra.mxu0 0.0
        %3130 = vmatprep.subr.mxu0 0.0
        %3131 = vmatpush2.msra.mxu0 0.0
        %3132 = vmatprep.subr.mxu0 0.0
        %3133 = vmatpush2.msra.mxu0 0.0
        %3134 = vmatprep.subr.mxu0 0.0
        %3135 = vmatpush2.msra.mxu0 0.0
        %3136 = vmatprep.subr.mxu0 0.0
        %3137 = vmatpush2.msra.mxu0 0.0
        %3138 = vmatprep.mubr.f32.mxu0 0.0
        %3139 = vmatmul.mubr.f32.gmra.mxu0 %v3066
        %v3140 = vpop.f32.mrf.mxu0
        %v3141 = vadd.f32 0.0, %v3140
        %v3142 = vpop.f32.mrf.mxu0
        %v3143 = vadd.f32 0.0, %v3142
        %3144 = vdwg.mxu0
        %v3145 = vadd.f32 %v2831, %v3141
        %v3146 = vadd.f32 %v2832, %v3143
        %3147 = vrot.lane.b32.xlu0 %v2517, 126
        %v3148 = vpop.permute.xlu0 %3147
        %3149 = vrot.lane.b32.xlu0 %v2519, 126
        %v3150 = vpop.permute.xlu0 %3149
        %3151 = vrot.lane.b32.xlu0 %v2522, 126
        %v3152 = vpop.permute.xlu0 %3151
        %3153 = vrot.lane.b32.xlu0 %v2524, 126
        %v3154 = vpop.permute.xlu0 %3153
        %3155 = vrot.lane.b32.xlu0 %v2527, 126
        %v3156 = vpop.permute.xlu0 %3155
        %3157 = vrot.lane.b32.xlu0 %v2529, 126
        %v3158 = vpop.permute.xlu0 %3157
        %3159 = vrot.lane.b32.xlu0 %v2532, 126
        %v3160 = vpop.permute.xlu0 %3159
        %3161 = vrot.lane.b32.xlu0 %v2534, 126
        %v3162 = vpop.permute.xlu0 %3161
        %v3171 = vcombine.low %v3148, %v3156
        %v3172 = vcombine.high %v3148, %v3156
        %v3174 = vunpack.c.l.s4 1983009808
        %v3175 = vunpack.c.0.s8 %v3174
        %v3176 = vlaneseq
        %v3177 = vshrl.u32 %v3176, 7
        %v3178 = vsub.s32 %v3175, %v3177
        %v3179 = vrot.slane %v3171, %v3178
        %v3181 = vunpack.c.l.s4 1983009808
        %v3182 = vunpack.c.0.s8 %v3181
        %v3183 = vlaneseq
        %v3184 = vshrl.u32 %v3183, 7
        %v3185 = vsub.s32 %v3182, %v3184
        %v3186 = vrot.slane %v3172, %v3185
        %v3187 = vcombine.low %v3152, %v3160
        %v3188 = vcombine.high %v3152, %v3160
        %v3190 = vunpack.c.l.s4 1983009808
        %v3191 = vunpack.c.0.s8 %v3190
        %v3192 = vlaneseq
        %v3193 = vshrl.u32 %v3192, 7
        %v3194 = vsub.s32 %v3191, %v3193
        %v3195 = vrot.slane %v3187, %v3194
        %v3197 = vunpack.c.l.s4 1983009808
        %v3198 = vunpack.c.0.s8 %v3197
        %v3199 = vlaneseq
        %v3200 = vshrl.u32 %v3199, 7
        %v3201 = vsub.s32 %v3198, %v3200
        %v3202 = vrot.slane %v3188, %v3201
        %v3203 = vcombine.low %v3179, %v3195
        %v3204 = vcombine.high %v3179, %v3195
        %v3206 = vunpack.c.l.s4 1934713408
        %v3207 = vunpack.c.0.s8 %v3206
        %v3208 = vlaneseq
        %v3209 = vshrl.u32 %v3208, 7
        %v3210 = vsub.s32 %v3207, %v3209
        %v3211 = vrot.slane %v3203, %v3210
        %v3213 = vunpack.c.l.s4 1934713408
        %v3214 = vunpack.c.0.s8 %v3213
        %v3215 = vlaneseq
        %v3216 = vshrl.u32 %v3215, 7
        %v3217 = vsub.s32 %v3214, %v3216
        %v3218 = vrot.slane %v3204, %v3217
        %v3219 = vcombine.low %v3186, %v3202
        %v3220 = vcombine.high %v3186, %v3202
        %v3222 = vunpack.c.l.s4 1934713408
        %v3223 = vunpack.c.0.s8 %v3222
        %v3224 = vlaneseq
        %v3225 = vshrl.u32 %v3224, 7
        %v3226 = vsub.s32 %v3223, %v3225
        %v3227 = vrot.slane %v3219, %v3226
        %v3229 = vunpack.c.l.s4 1934713408
        %v3230 = vunpack.c.0.s8 %v3229
        %v3231 = vlaneseq
        %v3232 = vshrl.u32 %v3231, 7
        %v3233 = vsub.s32 %v3230, %v3232
        %v3234 = vrot.slane %v3220, %v3233
        %v3235 = vcombine.high %v3211, 0.0
        %v3236 = vcombine.high %v3218, 0.0
        %v3237 = vcombine.high %v3227, 0.0
        %v3238 = vcombine.high %v3234, 0.0
        %v3239 = vcombine.low %v3150, %v3158
        %v3240 = vcombine.high %v3150, %v3158
        %v3242 = vunpack.c.l.s4 1983009808
        %v3243 = vunpack.c.0.s8 %v3242
        %v3244 = vlaneseq
        %v3245 = vshrl.u32 %v3244, 7
        %v3246 = vsub.s32 %v3243, %v3245
        %v3247 = vrot.slane %v3239, %v3246
        %v3249 = vunpack.c.l.s4 1983009808
        %v3250 = vunpack.c.0.s8 %v3249
        %v3251 = vlaneseq
        %v3252 = vshrl.u32 %v3251, 7
        %v3253 = vsub.s32 %v3250, %v3252
        %v3254 = vrot.slane %v3240, %v3253
        %v3255 = vcombine.low %v3154, %v3162
        %v3256 = vcombine.high %v3154, %v3162
        %v3258 = vunpack.c.l.s4 1983009808
        %v3259 = vunpack.c.0.s8 %v3258
        %v3260 = vlaneseq
        %v3261 = vshrl.u32 %v3260, 7
        %v3262 = vsub.s32 %v3259, %v3261
        %v3263 = vrot.slane %v3255, %v3262
        %v3265 = vunpack.c.l.s4 1983009808
        %v3266 = vunpack.c.0.s8 %v3265
        %v3267 = vlaneseq
        %v3268 = vshrl.u32 %v3267, 7
        %v3269 = vsub.s32 %v3266, %v3268
        %v3270 = vrot.slane %v3256, %v3269
        %v3271 = vcombine.low %v3247, %v3263
        %v3272 = vcombine.high %v3247, %v3263
        %v3274 = vunpack.c.l.s4 1934713408
        %v3275 = vunpack.c.0.s8 %v3274
        %v3276 = vlaneseq
        %v3277 = vshrl.u32 %v3276, 7
        %v3278 = vsub.s32 %v3275, %v3277
        %v3279 = vrot.slane %v3271, %v3278
        %v3281 = vunpack.c.l.s4 1934713408
        %v3282 = vunpack.c.0.s8 %v3281
        %v3283 = vlaneseq
        %v3284 = vshrl.u32 %v3283, 7
        %v3285 = vsub.s32 %v3282, %v3284
        %v3286 = vrot.slane %v3272, %v3285
        %v3287 = vcombine.low %v3254, %v3270
        %v3288 = vcombine.high %v3254, %v3270
        %v3290 = vunpack.c.l.s4 1934713408
        %v3291 = vunpack.c.0.s8 %v3290
        %v3292 = vlaneseq
        %v3293 = vshrl.u32 %v3292, 7
        %v3294 = vsub.s32 %v3291, %v3293
        %v3295 = vrot.slane %v3287, %v3294
        %v3297 = vunpack.c.l.s4 1934713408
        %v3298 = vunpack.c.0.s8 %v3297
        %v3299 = vlaneseq
        %v3300 = vshrl.u32 %v3299, 7
        %v3301 = vsub.s32 %v3298, %v3300
        %v3302 = vrot.slane %v3288, %v3301
        %v3303 = vcombine.high %v3279, 0.0
        %v3304 = vcombine.high %v3286, 0.0
        %v3305 = vcombine.high %v3295, 0.0
        %v3306 = vcombine.high %v3302, 0.0
        %3308 = vrot.lane.b32.xlu0 %v3235, 16
        %v3309 = vpop.permute.xlu0 %3308
        %3312 = vrot.lane.b32.xlu0 %v3218, 32
        %v3313 = vpop.permute.xlu0 %3312
        %3316 = vrot.lane.b32.xlu0 %v3236, 48
        %v3317 = vpop.permute.xlu0 %3316
        %3320 = vrot.lane.b32.xlu0 %v3227, 64
        %v3321 = vpop.permute.xlu0 %3320
        %3324 = vrot.lane.b32.xlu0 %v3237, 80
        %v3325 = vpop.permute.xlu0 %3324
        %3328 = vrot.lane.b32.xlu0 %v3234, 96
        %v3329 = vpop.permute.xlu0 %3328
        %3332 = vrot.lane.b32.xlu0 %v3238, 112
        %v3333 = vpop.permute.xlu0 %3332
        %3336 = vrot.lane.b32.xlu0 %v3303, 16
        %v3337 = vpop.permute.xlu0 %3336
        %3340 = vrot.lane.b32.xlu0 %v3286, 32
        %v3341 = vpop.permute.xlu0 %3340
        %3344 = vrot.lane.b32.xlu0 %v3304, 48
        %v3345 = vpop.permute.xlu0 %3344
        %3348 = vrot.lane.b32.xlu0 %v3295, 64
        %v3349 = vpop.permute.xlu0 %3348
        %3352 = vrot.lane.b32.xlu0 %v3305, 80
        %v3353 = vpop.permute.xlu0 %3352
        %3356 = vrot.lane.b32.xlu0 %v3302, 96
        %v3357 = vpop.permute.xlu0 %3356
        %3360 = vrot.lane.b32.xlu0 %v3306, 112
        %v3361 = vpop.permute.xlu0 %3360
        %v3363 = vsel %vm825, %v3211, %v3309
        %v3364 = vsel %vm827, %v3363, %v3313
        %v3365 = vsel %vm829, %v3364, %v3317
        %v3366 = vsel %vm831, %v3365, %v3321
        %v3367 = vsel %vm833, %v3366, %v3325
        %v3368 = vsel %vm835, %v3367, %v3329
        %v3369 = vsel %vm837, %v3368, %v3333
        %v3370 = vsel %vm825, %v3279, %v3337
        %v3371 = vsel %vm827, %v3370, %v3341
        %v3372 = vsel %vm829, %v3371, %v3345
        %v3373 = vsel %vm831, %v3372, %v3349
        %v3374 = vsel %vm833, %v3373, %v3353
        %v3375 = vsel %vm835, %v3374, %v3357
        %v3376 = vsel %vm837, %v3375, %v3361
        %s3377 = scalar_lea.vmem %s1, 32
        %v3378 = vld [vmem:[%s3377] sm:$0xf]
        %v3380 = vsel %vm1087, %v3378, 0
        %v3383 = vsel %vm1091, %v3369, 0
        %v3386 = vsel %vm1091, %v3376, 0
        %3388 = vmatprep.subr.mxu0 0.0
        %3389 = vmatpush1.msra.mxu0 0.0
        %3390 = vmatprep.subr.mxu0 0.0
        %3391 = vmatpush1.msra.mxu0 0.0
        %3392 = vmatprep.subr.mxu0 0.0
        %3393 = vmatpush1.msra.mxu0 0.0
        %3394 = vmatprep.subr.mxu0 0.0
        %3395 = vmatpush1.msra.mxu0 0.0
        %3396 = vmatprep.subr.mxu0 0.0
        %3397 = vmatpush1.msra.mxu0 0.0
        %3398 = vmatprep.subr.mxu0 0.0
        %3399 = vmatpush1.msra.mxu0 0.0
        %3400 = vmatprep.subr.mxu0 0.0
        %3401 = vmatpush1.msra.mxu0 0.0
        %3402 = vmatprep.subr.mxu0 0.0
        %3403 = vmatpush1.msra.mxu0 0.0
        %3404 = vmatprep.subr.mxu0 0.0
        %3405 = vmatpush1.msra.mxu0 0.0
        %3406 = vmatprep.subr.mxu0 0.0
        %3407 = vmatpush1.msra.mxu0 0.0
        %3408 = vmatprep.subr.mxu0 0.0
        %3409 = vmatpush1.msra.mxu0 0.0
        %3410 = vmatprep.subr.mxu0 0.0
        %3411 = vmatpush1.msra.mxu0 0.0
        %3412 = vmatprep.subr.mxu0 0.0
        %3413 = vmatpush1.msra.mxu0 0.0
        %3414 = vmatprep.subr.mxu0 0.0
        %3415 = vmatpush1.msra.mxu0 0.0
        %3416 = vmatprep.subr.mxu0 0.0
        %3417 = vmatpush1.msra.mxu0 0.0
        %3418 = vmatprep.subr.mxu0 %v3386
        %3419 = vmatpush1.msra.mxu0 %v3383
        %3420 = vmatprep.subr.mxu0 0.0
        %3421 = vmatpush2.msra.mxu0 0.0
        %3422 = vmatprep.subr.mxu0 0.0
        %3423 = vmatpush2.msra.mxu0 0.0
        %3424 = vmatprep.subr.mxu0 0.0
        %3425 = vmatpush2.msra.mxu0 0.0
        %3426 = vmatprep.subr.mxu0 0.0
        %3427 = vmatpush2.msra.mxu0 0.0
        %3428 = vmatprep.subr.mxu0 0.0
        %3429 = vmatpush2.msra.mxu0 0.0
        %3430 = vmatprep.subr.mxu0 0.0
        %3431 = vmatpush2.msra.mxu0 0.0
        %3432 = vmatprep.subr.mxu0 0.0
        %3433 = vmatpush2.msra.mxu0 0.0
        %3434 = vmatprep.subr.mxu0 0.0
        %3435 = vmatpush2.msra.mxu0 0.0
        %3436 = vmatprep.subr.mxu0 0.0
        %3437 = vmatpush2.msra.mxu0 0.0
        %3438 = vmatprep.subr.mxu0 0.0
        %3439 = vmatpush2.msra.mxu0 0.0
        %3440 = vmatprep.subr.mxu0 0.0
        %3441 = vmatpush2.msra.mxu0 0.0
        %3442 = vmatprep.subr.mxu0 0.0
        %3443 = vmatpush2.msra.mxu0 0.0
        %3444 = vmatprep.subr.mxu0 0.0
        %3445 = vmatpush2.msra.mxu0 0.0
        %3446 = vmatprep.subr.mxu0 0.0
        %3447 = vmatpush2.msra.mxu0 0.0
        %3448 = vmatprep.subr.mxu0 0.0
        %3449 = vmatpush2.msra.mxu0 0.0
        %3450 = vmatprep.subr.mxu0 0.0
        %3451 = vmatpush2.msra.mxu0 0.0
        %3452 = vmatprep.mubr.f32.mxu0 0.0
        %3453 = vmatmul.mubr.f32.gmra.mxu0 %v3380
        %v3454 = vpop.f32.mrf.mxu0
        %v3455 = vadd.f32 0.0, %v3454
        %v3456 = vpop.f32.mrf.mxu0
        %v3457 = vadd.f32 0.0, %v3456
        %3458 = vdwg.mxu0
        %v3459 = vadd.f32 %v3145, %v3455
        %v3460 = vadd.f32 %v3146, %v3457
        %v3461 = vld [vmem:[%s2] sm:$0xf]
        %3463 = vset.pattern.permute.xlu0 0
        %3464 = vperm.xlu0 %3463, %v3461
        %v3465 = vpop.permute.xlu0 %3464
        %v3467 = vadd.f32 %v3459, %v3465
        %v3468 = vadd.f32 %v3460, %v3465
        %v3469 = vsel %vm1091, %v3467, 0.0
        %v3470 = vsel %vm1091, %v3468, 0.0
        %v3471 = vadd.f32 %v3469, %v3470
        %3472 = vadd.xlane.f32.xlu0 %v3471
        %v3473 = vpop.xlane.xlu0 %3472
        %v3474 = vmul.f32 %v3473, 0.00390625
        %v3475 = vmul.f32 %v3467, %v3467
        %v3476 = vmul.f32 %v3468, %v3468
        %v3477 = vsel %vm1091, %v3475, 0.0
        %v3478 = vsel %vm1091, %v3476, 0.0
        %v3479 = vadd.f32 %v3477, %v3478
        %3480 = vadd.xlane.f32.xlu0 %v3479
        %v3481 = vpop.xlane.xlu0 %3480
        %v3482 = vmul.f32 %v3481, 0.00390625
        %v3483 = vmul.f32 %v3474, %v3474
        %v3484 = vsub.f32 %v3482, %v3483
        %v3485 = vmax.f32 %v3484, 0.0
        %v3486 = vsub.f32 %v3467, %v3474
        %v3487 = vsub.f32 %v3468, %v3474
        %v3488 = vadd.f32 %v3485, 1e-05
        %v3489 = vrsqrt.pop %v3488
        %v3490 = vmul.f32 %v3486, %v3489
        %v3491 = vmul.f32 %v3487, %v3489
        %v3492 = vmax.f32 %v3490, 0.0
        %v3493 = vmax.f32 %v3491, 0.0
        %3495 = vrot.lane.b32.xlu0 %v3492, 112
        %v3496 = vpop.permute.xlu0 %3495
        %3498 = vrot.lane.b32.xlu0 %v3492, 96
        %v3499 = vpop.permute.xlu0 %3498
        %3501 = vrot.lane.b32.xlu0 %v3492, 80
        %v3502 = vpop.permute.xlu0 %3501
        %3504 = vrot.lane.b32.xlu0 %v3492, 64
        %v3505 = vpop.permute.xlu0 %3504
        %3507 = vrot.lane.b32.xlu0 %v3492, 48
        %v3508 = vpop.permute.xlu0 %3507
        %3510 = vrot.lane.b32.xlu0 %v3492, 32
        %v3511 = vpop.permute.xlu0 %3510
        %3513 = vrot.lane.b32.xlu0 %v3492, 16
        %v3514 = vpop.permute.xlu0 %3513
        %3517 = vrot.lane.b32.xlu0 %v3493, 112
        %v3518 = vpop.permute.xlu0 %3517
        %3520 = vrot.lane.b32.xlu0 %v3493, 96
        %v3521 = vpop.permute.xlu0 %3520
        %3523 = vrot.lane.b32.xlu0 %v3493, 80
        %v3524 = vpop.permute.xlu0 %3523
        %3526 = vrot.lane.b32.xlu0 %v3493, 64
        %v3527 = vpop.permute.xlu0 %3526
        %3529 = vrot.lane.b32.xlu0 %v3493, 48
        %v3530 = vpop.permute.xlu0 %3529
        %3532 = vrot.lane.b32.xlu0 %v3493, 32
        %v3533 = vpop.permute.xlu0 %3532
        %3535 = vrot.lane.b32.xlu0 %v3493, 16
        %v3536 = vpop.permute.xlu0 %3535
        %v3538 = vcombine.low %v3492, %v3499
        %v3540 = vunpack.c.l.s4 1983009808
        %v3541 = vunpack.c.0.s8 %v3540
        %v3542 = vlaneseq
        %v3543 = vshrl.u32 %v3542, 7
        %v3544 = vsub.s32 %v3541, %v3543
        %v3545 = vrot.slane %v3538, %v3544
        %v3546 = vcombine.low %v3496, %v3502
        %v3548 = vunpack.c.l.s4 1983009808
        %v3549 = vunpack.c.0.s8 %v3548
        %v3550 = vlaneseq
        %v3551 = vshrl.u32 %v3550, 7
        %v3552 = vsub.s32 %v3549, %v3551
        %v3553 = vrot.slane %v3546, %v3552
        %v3554 = vcombine.low %v3505, %v3511
        %v3556 = vunpack.c.l.s4 1983009808
        %v3557 = vunpack.c.0.s8 %v3556
        %v3558 = vlaneseq
        %v3559 = vshrl.u32 %v3558, 7
        %v3560 = vsub.s32 %v3557, %v3559
        %v3561 = vrot.slane %v3554, %v3560
        %v3562 = vcombine.low %v3508, %v3514
        %v3564 = vunpack.c.l.s4 1983009808
        %v3565 = vunpack.c.0.s8 %v3564
        %v3566 = vlaneseq
        %v3567 = vshrl.u32 %v3566, 7
        %v3568 = vsub.s32 %v3565, %v3567
        %v3569 = vrot.slane %v3562, %v3568
        %v3570 = vcombine.low %v3545, %v3553
        %v3571 = vcombine.high %v3545, %v3553
        %v3573 = vunpack.c.l.s4 1934713408
        %v3574 = vunpack.c.0.s8 %v3573
        %v3575 = vlaneseq
        %v3576 = vshrl.u32 %v3575, 7
        %v3577 = vsub.s32 %v3574, %v3576
        %v3578 = vrot.slane %v3570, %v3577
        %v3580 = vunpack.c.l.s4 1934713408
        %v3581 = vunpack.c.0.s8 %v3580
        %v3582 = vlaneseq
        %v3583 = vshrl.u32 %v3582, 7
        %v3584 = vsub.s32 %v3581, %v3583
        %v3585 = vrot.slane %v3571, %v3584
        %v3586 = vcombine.low %v3561, %v3569
        %v3587 = vcombine.high %v3561, %v3569
        %v3589 = vunpack.c.l.s4 1934713408
        %v3590 = vunpack.c.0.s8 %v3589
        %v3591 = vlaneseq
        %v3592 = vshrl.u32 %v3591, 7
        %v3593 = vsub.s32 %v3590, %v3592
        %v3594 = vrot.slane %v3586, %v3593
        %v3596 = vunpack.c.l.s4 1934713408
        %v3597 = vunpack.c.0.s8 %v3596
        %v3598 = vlaneseq
        %v3599 = vshrl.u32 %v3598, 7
        %v3600 = vsub.s32 %v3597, %v3599
        %v3601 = vrot.slane %v3587, %v3600
        %v3602 = vcombine.low %v3578, %v3594
        %v3603 = vcombine.high %v3578, %v3594
        %v3604 = vcombine.low %v3585, %v3601
        %v3605 = vcombine.high %v3585, %v3601
        %v3606 = vcombine.low %v3493, %v3521
        %v3608 = vunpack.c.l.s4 1983009808
        %v3609 = vunpack.c.0.s8 %v3608
        %v3610 = vlaneseq
        %v3611 = vshrl.u32 %v3610, 7
        %v3612 = vsub.s32 %v3609, %v3611
        %v3613 = vrot.slane %v3606, %v3612
        %v3614 = vcombine.low %v3518, %v3524
        %v3616 = vunpack.c.l.s4 1983009808
        %v3617 = vunpack.c.0.s8 %v3616
        %v3618 = vlaneseq
        %v3619 = vshrl.u32 %v3618, 7
        %v3620 = vsub.s32 %v3617, %v3619
        %v3621 = vrot.slane %v3614, %v3620
        %v3622 = vcombine.low %v3527, %v3533
        %v3624 = vunpack.c.l.s4 1983009808
        %v3625 = vunpack.c.0.s8 %v3624
        %v3626 = vlaneseq
        %v3627 = vshrl.u32 %v3626, 7
        %v3628 = vsub.s32 %v3625, %v3627
        %v3629 = vrot.slane %v3622, %v3628
        %v3630 = vcombine.low %v3530, %v3536
        %v3632 = vunpack.c.l.s4 1983009808
        %v3633 = vunpack.c.0.s8 %v3632
        %v3634 = vlaneseq
        %v3635 = vshrl.u32 %v3634, 7
        %v3636 = vsub.s32 %v3633, %v3635
        %v3637 = vrot.slane %v3630, %v3636
        %v3638 = vcombine.low %v3613, %v3621
        %v3639 = vcombine.high %v3613, %v3621
        %v3641 = vunpack.c.l.s4 1934713408
        %v3642 = vunpack.c.0.s8 %v3641
        %v3643 = vlaneseq
        %v3644 = vshrl.u32 %v3643, 7
        %v3645 = vsub.s32 %v3642, %v3644
        %v3646 = vrot.slane %v3638, %v3645
        %v3648 = vunpack.c.l.s4 1934713408
        %v3649 = vunpack.c.0.s8 %v3648
        %v3650 = vlaneseq
        %v3651 = vshrl.u32 %v3650, 7
        %v3652 = vsub.s32 %v3649, %v3651
        %v3653 = vrot.slane %v3639, %v3652
        %v3654 = vcombine.low %v3629, %v3637
        %v3655 = vcombine.high %v3629, %v3637
        %v3657 = vunpack.c.l.s4 1934713408
        %v3658 = vunpack.c.0.s8 %v3657
        %v3659 = vlaneseq
        %v3660 = vshrl.u32 %v3659, 7
        %v3661 = vsub.s32 %v3658, %v3660
        %v3662 = vrot.slane %v3654, %v3661
        %v3664 = vunpack.c.l.s4 1934713408
        %v3665 = vunpack.c.0.s8 %v3664
        %v3666 = vlaneseq
        %v3667 = vshrl.u32 %v3666, 7
        %v3668 = vsub.s32 %v3665, %v3667
        %v3669 = vrot.slane %v3655, %v3668
        %v3670 = vcombine.low %v3646, %v3662
        %v3671 = vcombine.high %v3646, %v3662
        %v3672 = vcombine.low %v3653, %v3669
        %v3673 = vcombine.high %v3653, %v3669
        %v3678 = vrot.slane %v3602, 1
        %v3679 = vrot.slane %v3603, 1
        %v3680 = vrot.slane %v3604, 1
        %v3681 = vrot.slane %v3605, 1
        %v3690 = vrot.slane %v3602, 7
        %v3691 = vrot.slane %v3670, 7
        %v3692 = vsel %vm442, %v3690, %v3691
        %v3693 = vrot.slane %v3603, 7
        %v3694 = vrot.slane %v3671, 7
        %v3695 = vsel %vm442, %v3693, %v3694
        %v3696 = vrot.slane %v3604, 7
        %v3697 = vrot.slane %v3672, 7
        %v3698 = vsel %vm442, %v3696, %v3697
        %v3699 = vrot.slane %v3605, 7
        %v3700 = vrot.slane %v3673, 7
        %v3701 = vsel %vm442, %v3699, %v3700
        %v3710 = vrot.slane %v3670, 5
        %v3711 = vrot.slane %v3671, 5
        %v3712 = vrot.slane %v3672, 5
        %v3713 = vrot.slane %v3673, 5
        %v3718 = vsel %vm442, %v3678, %v3690
        %v3719 = vsel %vm442, %v3679, %v3693
        %v3720 = vsel %vm442, %v3680, %v3696
        %v3721 = vsel %vm442, %v3681, %v3699
        %v3722 = vsel %vm442, %v3691, %v3710
        %v3723 = vsel %vm442, %v3694, %v3711
        %v3724 = vsel %vm442, %v3697, %v3712
        %v3725 = vsel %vm442, %v3700, %v3713
        %3734 = vrot.lane.b32.xlu0 %v3718, 127
        %v3735 = vpop.permute.xlu0 %3734
        %3736 = vrot.lane.b32.xlu0 %v3692, 127
        %v3737 = vpop.permute.xlu0 %3736
        %3738 = vrot.lane.b32.xlu0 %v3722, 127
        %v3739 = vpop.permute.xlu0 %3738
        %3740 = vrot.lane.b32.xlu0 %v3719, 127
        %v3741 = vpop.permute.xlu0 %3740
        %3742 = vrot.lane.b32.xlu0 %v3695, 127
        %v3743 = vpop.permute.xlu0 %3742
        %3744 = vrot.lane.b32.xlu0 %v3723, 127
        %v3745 = vpop.permute.xlu0 %3744
        %3746 = vrot.lane.b32.xlu0 %v3720, 127
        %v3747 = vpop.permute.xlu0 %3746
        %3748 = vrot.lane.b32.xlu0 %v3698, 127
        %v3749 = vpop.permute.xlu0 %3748
        %3750 = vrot.lane.b32.xlu0 %v3724, 127
        %v3751 = vpop.permute.xlu0 %3750
        %3752 = vrot.lane.b32.xlu0 %v3721, 127
        %v3753 = vpop.permute.xlu0 %3752
        %3754 = vrot.lane.b32.xlu0 %v3701, 127
        %v3755 = vpop.permute.xlu0 %3754
        %3756 = vrot.lane.b32.xlu0 %v3725, 127
        %v3757 = vpop.permute.xlu0 %3756
        %3770 = vrot.lane.b32.xlu0 %v3718, 1
        %v3771 = vpop.permute.xlu0 %3770
        %3772 = vrot.lane.b32.xlu0 %v3692, 1
        %v3773 = vpop.permute.xlu0 %3772
        %3774 = vrot.lane.b32.xlu0 %v3722, 1
        %v3775 = vpop.permute.xlu0 %3774
        %3776 = vrot.lane.b32.xlu0 %v3719, 1
        %v3777 = vpop.permute.xlu0 %3776
        %3778 = vrot.lane.b32.xlu0 %v3695, 1
        %v3779 = vpop.permute.xlu0 %3778
        %3780 = vrot.lane.b32.xlu0 %v3723, 1
        %v3781 = vpop.permute.xlu0 %3780
        %3782 = vrot.lane.b32.xlu0 %v3720, 1
        %v3783 = vpop.permute.xlu0 %3782
        %3784 = vrot.lane.b32.xlu0 %v3698, 1
        %v3785 = vpop.permute.xlu0 %3784
        %3786 = vrot.lane.b32.xlu0 %v3724, 1
        %v3787 = vpop.permute.xlu0 %3786
        %3788 = vrot.lane.b32.xlu0 %v3721, 1
        %v3789 = vpop.permute.xlu0 %3788
        %3790 = vrot.lane.b32.xlu0 %v3701, 1
        %v3791 = vpop.permute.xlu0 %3790
        %3792 = vrot.lane.b32.xlu0 %v3725, 1
        %v3793 = vpop.permute.xlu0 %3792
        %3806 = vrot.lane.b32.xlu0 %v3718, 3
        %v3807 = vpop.permute.xlu0 %3806
        %3808 = vrot.lane.b32.xlu0 %v3692, 3
        %v3809 = vpop.permute.xlu0 %3808
        %3810 = vrot.lane.b32.xlu0 %v3722, 3
        %v3811 = vpop.permute.xlu0 %3810
        %3812 = vrot.lane.b32.xlu0 %v3719, 3
        %v3813 = vpop.permute.xlu0 %3812
        %3814 = vrot.lane.b32.xlu0 %v3695, 3
        %v3815 = vpop.permute.xlu0 %3814
        %3816 = vrot.lane.b32.xlu0 %v3723, 3
        %v3817 = vpop.permute.xlu0 %3816
        %3818 = vrot.lane.b32.xlu0 %v3720, 3
        %v3819 = vpop.permute.xlu0 %3818
        %3820 = vrot.lane.b32.xlu0 %v3698, 3
        %v3821 = vpop.permute.xlu0 %3820
        %3822 = vrot.lane.b32.xlu0 %v3724, 3
        %v3823 = vpop.permute.xlu0 %3822
        %3824 = vrot.lane.b32.xlu0 %v3721, 3
        %v3825 = vpop.permute.xlu0 %3824
        %3826 = vrot.lane.b32.xlu0 %v3701, 3
        %v3827 = vpop.permute.xlu0 %3826
        %3828 = vrot.lane.b32.xlu0 %v3725, 3
        %v3829 = vpop.permute.xlu0 %3828
        %v3842 = vsel %vm607, %v3735, %v3771
        %v3843 = vsel %vm607, %v3737, %v3773
        %v3844 = vsel %vm607, %v3739, %v3775
        %v3845 = vsel %vm607, %v3741, %v3777
        %v3846 = vsel %vm607, %v3743, %v3779
        %v3847 = vsel %vm607, %v3745, %v3781
        %v3848 = vsel %vm607, %v3747, %v3783
        %v3849 = vsel %vm607, %v3749, %v3785
        %v3850 = vsel %vm607, %v3751, %v3787
        %v3851 = vsel %vm607, %v3753, %v3789
        %v3852 = vsel %vm607, %v3755, %v3791
        %v3853 = vsel %vm607, %v3757, %v3793
        %v3854 = vsel %vm620, %v3842, %v3807
        %v3855 = vsel %vm620, %v3843, %v3809
        %v3856 = vsel %vm620, %v3844, %v3811
        %v3857 = vsel %vm620, %v3845, %v3813
        %v3858 = vsel %vm620, %v3846, %v3815
        %v3859 = vsel %vm620, %v3847, %v3817
        %v3860 = vsel %vm620, %v3848, %v3819
        %v3861 = vsel %vm620, %v3849, %v3821
        %v3862 = vsel %vm620, %v3850, %v3823
        %v3863 = vsel %vm620, %v3851, %v3825
        %v3864 = vsel %vm620, %v3852, %v3827
        %v3865 = vsel %vm620, %v3853, %v3829
        %v3866 = vcombine.low %v3854, %v3860
        %v3867 = vcombine.high %v3854, %v3860
        %v3869 = vunpack.c.l.s4 1983009808
        %v3870 = vunpack.c.0.s8 %v3869
        %v3871 = vlaneseq
        %v3872 = vshrl.u32 %v3871, 7
        %v3873 = vsub.s32 %v3870, %v3872
        %v3874 = vrot.slane %v3866, %v3873
        %v3876 = vunpack.c.l.s4 1983009808
        %v3877 = vunpack.c.0.s8 %v3876
        %v3878 = vlaneseq
        %v3879 = vshrl.u32 %v3878, 7
        %v3880 = vsub.s32 %v3877, %v3879
        %v3881 = vrot.slane %v3867, %v3880
        %v3882 = vcombine.low %v3857, %v3863
        %v3883 = vcombine.high %v3857, %v3863
        %v3885 = vunpack.c.l.s4 1983009808
        %v3886 = vunpack.c.0.s8 %v3885
        %v3887 = vlaneseq
        %v3888 = vshrl.u32 %v3887, 7
        %v3889 = vsub.s32 %v3886, %v3888
        %v3890 = vrot.slane %v3882, %v3889
        %v3892 = vunpack.c.l.s4 1983009808
        %v3893 = vunpack.c.0.s8 %v3892
        %v3894 = vlaneseq
        %v3895 = vshrl.u32 %v3894, 7
        %v3896 = vsub.s32 %v3893, %v3895
        %v3897 = vrot.slane %v3883, %v3896
        %v3898 = vcombine.low %v3874, %v3890
        %v3899 = vcombine.high %v3874, %v3890
        %v3901 = vunpack.c.l.s4 1934713408
        %v3902 = vunpack.c.0.s8 %v3901
        %v3903 = vlaneseq
        %v3904 = vshrl.u32 %v3903, 7
        %v3905 = vsub.s32 %v3902, %v3904
        %v3906 = vrot.slane %v3898, %v3905
        %v3908 = vunpack.c.l.s4 1934713408
        %v3909 = vunpack.c.0.s8 %v3908
        %v3910 = vlaneseq
        %v3911 = vshrl.u32 %v3910, 7
        %v3912 = vsub.s32 %v3909, %v3911
        %v3913 = vrot.slane %v3899, %v3912
        %v3914 = vcombine.low %v3881, %v3897
        %v3915 = vcombine.high %v3881, %v3897
        %v3917 = vunpack.c.l.s4 1934713408
        %v3918 = vunpack.c.0.s8 %v3917
        %v3919 = vlaneseq
        %v3920 = vshrl.u32 %v3919, 7
        %v3921 = vsub.s32 %v3918, %v3920
        %v3922 = vrot.slane %v3914, %v3921
        %v3924 = vunpack.c.l.s4 1934713408
        %v3925 = vunpack.c.0.s8 %v3924
        %v3926 = vlaneseq
        %v3927 = vshrl.u32 %v3926, 7
        %v3928 = vsub.s32 %v3925, %v3927
        %v3929 = vrot.slane %v3915, %v3928
        %v3930 = vcombine.high %v3906, 0.0
        %v3931 = vcombine.high %v3913, 0.0
        %v3932 = vcombine.high %v3922, 0.0
        %v3933 = vcombine.high %v3929, 0.0
        %v3934 = vcombine.low %v3855, %v3861
        %v3935 = vcombine.high %v3855, %v3861
        %v3937 = vunpack.c.l.s4 1983009808
        %v3938 = vunpack.c.0.s8 %v3937
        %v3939 = vlaneseq
        %v3940 = vshrl.u32 %v3939, 7
        %v3941 = vsub.s32 %v3938, %v3940
        %v3942 = vrot.slane %v3934, %v3941
        %v3944 = vunpack.c.l.s4 1983009808
        %v3945 = vunpack.c.0.s8 %v3944
        %v3946 = vlaneseq
        %v3947 = vshrl.u32 %v3946, 7
        %v3948 = vsub.s32 %v3945, %v3947
        %v3949 = vrot.slane %v3935, %v3948
        %v3950 = vcombine.low %v3858, %v3864
        %v3951 = vcombine.high %v3858, %v3864
        %v3953 = vunpack.c.l.s4 1983009808
        %v3954 = vunpack.c.0.s8 %v3953
        %v3955 = vlaneseq
        %v3956 = vshrl.u32 %v3955, 7
        %v3957 = vsub.s32 %v3954, %v3956
        %v3958 = vrot.slane %v3950, %v3957
        %v3960 = vunpack.c.l.s4 1983009808
        %v3961 = vunpack.c.0.s8 %v3960
        %v3962 = vlaneseq
        %v3963 = vshrl.u32 %v3962, 7
        %v3964 = vsub.s32 %v3961, %v3963
        %v3965 = vrot.slane %v3951, %v3964
        %v3966 = vcombine.low %v3942, %v3958
        %v3967 = vcombine.high %v3942, %v3958
        %v3969 = vunpack.c.l.s4 1934713408
        %v3970 = vunpack.c.0.s8 %v3969
        %v3971 = vlaneseq
        %v3972 = vshrl.u32 %v3971, 7
        %v3973 = vsub.s32 %v3970, %v3972
        %v3974 = vrot.slane %v3966, %v3973
        %v3976 = vunpack.c.l.s4 1934713408
        %v3977 = vunpack.c.0.s8 %v3976
        %v3978 = vlaneseq
        %v3979 = vshrl.u32 %v3978, 7
        %v3980 = vsub.s32 %v3977, %v3979
        %v3981 = vrot.slane %v3967, %v3980
        %v3982 = vcombine.low %v3949, %v3965
        %v3983 = vcombine.high %v3949, %v3965
        %v3985 = vunpack.c.l.s4 1934713408
        %v3986 = vunpack.c.0.s8 %v3985
        %v3987 = vlaneseq
        %v3988 = vshrl.u32 %v3987, 7
        %v3989 = vsub.s32 %v3986, %v3988
        %v3990 = vrot.slane %v3982, %v3989
        %v3992 = vunpack.c.l.s4 1934713408
        %v3993 = vunpack.c.0.s8 %v3992
        %v3994 = vlaneseq
        %v3995 = vshrl.u32 %v3994, 7
        %v3996 = vsub.s32 %v3993, %v3995
        %v3997 = vrot.slane %v3983, %v3996
        %v3998 = vcombine.high %v3974, 0.0
        %v3999 = vcombine.high %v3981, 0.0
        %v4000 = vcombine.high %v3990, 0.0
        %v4001 = vcombine.high %v3997, 0.0
        %4003 = vrot.lane.b32.xlu0 %v3930, 16
        %v4004 = vpop.permute.xlu0 %4003
        %4007 = vrot.lane.b32.xlu0 %v3913, 32
        %v4008 = vpop.permute.xlu0 %4007
        %4011 = vrot.lane.b32.xlu0 %v3931, 48
        %v4012 = vpop.permute.xlu0 %4011
        %4015 = vrot.lane.b32.xlu0 %v3922, 64
        %v4016 = vpop.permute.xlu0 %4015
        %4019 = vrot.lane.b32.xlu0 %v3932, 80
        %v4020 = vpop.permute.xlu0 %4019
        %4023 = vrot.lane.b32.xlu0 %v3929, 96
        %v4024 = vpop.permute.xlu0 %4023
        %4027 = vrot.lane.b32.xlu0 %v3933, 112
        %v4028 = vpop.permute.xlu0 %4027
        %4031 = vrot.lane.b32.xlu0 %v3998, 16
        %v4032 = vpop.permute.xlu0 %4031
        %4035 = vrot.lane.b32.xlu0 %v3981, 32
        %v4036 = vpop.permute.xlu0 %4035
        %4039 = vrot.lane.b32.xlu0 %v3999, 48
        %v4040 = vpop.permute.xlu0 %4039
        %4043 = vrot.lane.b32.xlu0 %v3990, 64
        %v4044 = vpop.permute.xlu0 %4043
        %4047 = vrot.lane.b32.xlu0 %v4000, 80
        %v4048 = vpop.permute.xlu0 %4047
        %4051 = vrot.lane.b32.xlu0 %v3997, 96
        %v4052 = vpop.permute.xlu0 %4051
        %4055 = vrot.lane.b32.xlu0 %v4001, 112
        %v4056 = vpop.permute.xlu0 %4055
        %v4058 = vsel %vm825, %v3906, %v4004
        %v4059 = vsel %vm827, %v4058, %v4008
        %v4060 = vsel %vm829, %v4059, %v4012
        %v4061 = vsel %vm831, %v4060, %v4016
        %v4062 = vsel %vm833, %v4061, %v4020
        %v4063 = vsel %vm835, %v4062, %v4024
        %v4064 = vsel %vm837, %v4063, %v4028
        %v4065 = vsel %vm825, %v3974, %v4032
        %v4066 = vsel %vm827, %v4065, %v4036
        %v4067 = vsel %vm829, %v4066, %v4040
        %v4068 = vsel %vm831, %v4067, %v4044
        %v4069 = vsel %vm833, %v4068, %v4048
        %v4070 = vsel %vm835, %v4069, %v4052
        %v4071 = vsel %vm837, %v4070, %v4056
        %v4072 = vld [vmem:[%s3] sm:$0xf]
        %4081 = vrot.lane.b32.xlu0 %v3854, 127
        %v4082 = vpop.permute.xlu0 %4081
        %4083 = vrot.lane.b32.xlu0 %v3855, 127
        %v4084 = vpop.permute.xlu0 %4083
        %4085 = vrot.lane.b32.xlu0 %v3857, 127
        %v4086 = vpop.permute.xlu0 %4085
        %4087 = vrot.lane.b32.xlu0 %v3858, 127
        %v4088 = vpop.permute.xlu0 %4087
        %4089 = vrot.lane.b32.xlu0 %v3860, 127
        %v4090 = vpop.permute.xlu0 %4089
        %4091 = vrot.lane.b32.xlu0 %v3861, 127
        %v4092 = vpop.permute.xlu0 %4091
        %4093 = vrot.lane.b32.xlu0 %v3863, 127
        %v4094 = vpop.permute.xlu0 %4093
        %4095 = vrot.lane.b32.xlu0 %v3864, 127
        %v4096 = vpop.permute.xlu0 %4095
        %v4105 = vcombine.low %v4082, %v4090
        %v4106 = vcombine.high %v4082, %v4090
        %v4108 = vunpack.c.l.s4 1983009808
        %v4109 = vunpack.c.0.s8 %v4108
        %v4110 = vlaneseq
        %v4111 = vshrl.u32 %v4110, 7
        %v4112 = vsub.s32 %v4109, %v4111
        %v4113 = vrot.slane %v4105, %v4112
        %v4115 = vunpack.c.l.s4 1983009808
        %v4116 = vunpack.c.0.s8 %v4115
        %v4117 = vlaneseq
        %v4118 = vshrl.u32 %v4117, 7
        %v4119 = vsub.s32 %v4116, %v4118
        %v4120 = vrot.slane %v4106, %v4119
        %v4121 = vcombine.low %v4086, %v4094
        %v4122 = vcombine.high %v4086, %v4094
        %v4124 = vunpack.c.l.s4 1983009808
        %v4125 = vunpack.c.0.s8 %v4124
        %v4126 = vlaneseq
        %v4127 = vshrl.u32 %v4126, 7
        %v4128 = vsub.s32 %v4125, %v4127
        %v4129 = vrot.slane %v4121, %v4128
        %v4131 = vunpack.c.l.s4 1983009808
        %v4132 = vunpack.c.0.s8 %v4131
        %v4133 = vlaneseq
        %v4134 = vshrl.u32 %v4133, 7
        %v4135 = vsub.s32 %v4132, %v4134
        %v4136 = vrot.slane %v4122, %v4135
        %v4137 = vcombine.low %v4113, %v4129
        %v4138 = vcombine.high %v4113, %v4129
        %v4140 = vunpack.c.l.s4 1934713408
        %v4141 = vunpack.c.0.s8 %v4140
        %v4142 = vlaneseq
        %v4143 = vshrl.u32 %v4142, 7
        %v4144 = vsub.s32 %v4141, %v4143
        %v4145 = vrot.slane %v4137, %v4144
        %v4147 = vunpack.c.l.s4 1934713408
        %v4148 = vunpack.c.0.s8 %v4147
        %v4149 = vlaneseq
        %v4150 = vshrl.u32 %v4149, 7
        %v4151 = vsub.s32 %v4148, %v4150
        %v4152 = vrot.slane %v4138, %v4151
        %v4153 = vcombine.low %v4120, %v4136
        %v4154 = vcombine.high %v4120, %v4136
        %v4156 = vunpack.c.l.s4 1934713408
        %v4157 = vunpack.c.0.s8 %v4156
        %v4158 = vlaneseq
        %v4159 = vshrl.u32 %v4158, 7
        %v4160 = vsub.s32 %v4157, %v4159
        %v4161 = vrot.slane %v4153, %v4160
        %v4163 = vunpack.c.l.s4 1934713408
        %v4164 = vunpack.c.0.s8 %v4163
        %v4165 = vlaneseq
        %v4166 = vshrl.u32 %v4165, 7
        %v4167 = vsub.s32 %v4164, %v4166
        %v4168 = vrot.slane %v4154, %v4167
        %v4169 = vcombine.high %v4145, 0.0
        %v4170 = vcombine.high %v4152, 0.0
        %v4171 = vcombine.high %v4161, 0.0
        %v4172 = vcombine.high %v4168, 0.0
        %v4173 = vcombine.low %v4084, %v4092
        %v4174 = vcombine.high %v4084, %v4092
        %v4176 = vunpack.c.l.s4 1983009808
        %v4177 = vunpack.c.0.s8 %v4176
        %v4178 = vlaneseq
        %v4179 = vshrl.u32 %v4178, 7
        %v4180 = vsub.s32 %v4177, %v4179
        %v4181 = vrot.slane %v4173, %v4180
        %v4183 = vunpack.c.l.s4 1983009808
        %v4184 = vunpack.c.0.s8 %v4183
        %v4185 = vlaneseq
        %v4186 = vshrl.u32 %v4185, 7
        %v4187 = vsub.s32 %v4184, %v4186
        %v4188 = vrot.slane %v4174, %v4187
        %v4189 = vcombine.low %v4088, %v4096
        %v4190 = vcombine.high %v4088, %v4096
        %v4192 = vunpack.c.l.s4 1983009808
        %v4193 = vunpack.c.0.s8 %v4192
        %v4194 = vlaneseq
        %v4195 = vshrl.u32 %v4194, 7
        %v4196 = vsub.s32 %v4193, %v4195
        %v4197 = vrot.slane %v4189, %v4196
        %v4199 = vunpack.c.l.s4 1983009808
        %v4200 = vunpack.c.0.s8 %v4199
        %v4201 = vlaneseq
        %v4202 = vshrl.u32 %v4201, 7
        %v4203 = vsub.s32 %v4200, %v4202
        %v4204 = vrot.slane %v4190, %v4203
        %v4205 = vcombine.low %v4181, %v4197
        %v4206 = vcombine.high %v4181, %v4197
        %v4208 = vunpack.c.l.s4 1934713408
        %v4209 = vunpack.c.0.s8 %v4208
        %v4210 = vlaneseq
        %v4211 = vshrl.u32 %v4210, 7
        %v4212 = vsub.s32 %v4209, %v4211
        %v4213 = vrot.slane %v4205, %v4212
        %v4215 = vunpack.c.l.s4 1934713408
        %v4216 = vunpack.c.0.s8 %v4215
        %v4217 = vlaneseq
        %v4218 = vshrl.u32 %v4217, 7
        %v4219 = vsub.s32 %v4216, %v4218
        %v4220 = vrot.slane %v4206, %v4219
        %v4221 = vcombine.low %v4188, %v4204
        %v4222 = vcombine.high %v4188, %v4204
        %v4224 = vunpack.c.l.s4 1934713408
        %v4225 = vunpack.c.0.s8 %v4224
        %v4226 = vlaneseq
        %v4227 = vshrl.u32 %v4226, 7
        %v4228 = vsub.s32 %v4225, %v4227
        %v4229 = vrot.slane %v4221, %v4228
        %v4231 = vunpack.c.l.s4 1934713408
        %v4232 = vunpack.c.0.s8 %v4231
        %v4233 = vlaneseq
        %v4234 = vshrl.u32 %v4233, 7
        %v4235 = vsub.s32 %v4232, %v4234
        %v4236 = vrot.slane %v4222, %v4235
        %v4237 = vcombine.high %v4213, 0.0
        %v4238 = vcombine.high %v4220, 0.0
        %v4239 = vcombine.high %v4229, 0.0
        %v4240 = vcombine.high %v4236, 0.0
        %4242 = vrot.lane.b32.xlu0 %v4169, 16
        %v4243 = vpop.permute.xlu0 %4242
        %4246 = vrot.lane.b32.xlu0 %v4152, 32
        %v4247 = vpop.permute.xlu0 %4246
        %4250 = vrot.lane.b32.xlu0 %v4170, 48
        %v4251 = vpop.permute.xlu0 %4250
        %4254 = vrot.lane.b32.xlu0 %v4161, 64
        %v4255 = vpop.permute.xlu0 %4254
        %4258 = vrot.lane.b32.xlu0 %v4171, 80
        %v4259 = vpop.permute.xlu0 %4258
        %4262 = vrot.lane.b32.xlu0 %v4168, 96
        %v4263 = vpop.permute.xlu0 %4262
        %4266 = vrot.lane.b32.xlu0 %v4172, 112
        %v4267 = vpop.permute.xlu0 %4266
        %4270 = vrot.lane.b32.xlu0 %v4237, 16
        %v4271 = vpop.permute.xlu0 %4270
        %4274 = vrot.lane.b32.xlu0 %v4220, 32
        %v4275 = vpop.permute.xlu0 %4274
        %4278 = vrot.lane.b32.xlu0 %v4238, 48
        %v4279 = vpop.permute.xlu0 %4278
        %4282 = vrot.lane.b32.xlu0 %v4229, 64
        %v4283 = vpop.permute.xlu0 %4282
        %4286 = vrot.lane.b32.xlu0 %v4239, 80
        %v4287 = vpop.permute.xlu0 %4286
        %4290 = vrot.lane.b32.xlu0 %v4236, 96
        %v4291 = vpop.permute.xlu0 %4290
        %4294 = vrot.lane.b32.xlu0 %v4240, 112
        %v4295 = vpop.permute.xlu0 %4294
        %v4297 = vsel %vm825, %v4145, %v4243
        %v4298 = vsel %vm827, %v4297, %v4247
        %v4299 = vsel %vm829, %v4298, %v4251
        %v4300 = vsel %vm831, %v4299, %v4255
        %v4301 = vsel %vm833, %v4300, %v4259
        %v4302 = vsel %vm835, %v4301, %v4263
        %v4303 = vsel %vm837, %v4302, %v4267
        %v4304 = vsel %vm825, %v4213, %v4271
        %v4305 = vsel %vm827, %v4304, %v4275
        %v4306 = vsel %vm829, %v4305, %v4279
        %v4307 = vsel %vm831, %v4306, %v4283
        %v4308 = vsel %vm833, %v4307, %v4287
        %v4309 = vsel %vm835, %v4308, %v4291
        %v4310 = vsel %vm837, %v4309, %v4295
        %s4311 = scalar_lea.vmem %s3, 4
        %v4312 = vld [vmem:[%s4311] sm:$0xf]
        %v4314 = vsel %vm1087, %v4312, 0
        %v4317 = vsel %vm1091, %v4303, 0
        %v4320 = vsel %vm1091, %v4310, 0
        %4322 = vmatprep.subr.mxu0 0.0
        %4323 = vmatpush1.msra.mxu0 0.0
        %4324 = vmatprep.subr.mxu0 0.0
        %4325 = vmatpush1.msra.mxu0 0.0
        %4326 = vmatprep.subr.mxu0 0.0
        %4327 = vmatpush1.msra.mxu0 0.0
        %4328 = vmatprep.subr.mxu0 0.0
        %4329 = vmatpush1.msra.mxu0 0.0
        %4330 = vmatprep.subr.mxu0 0.0
        %4331 = vmatpush1.msra.mxu0 0.0
        %4332 = vmatprep.subr.mxu0 0.0
        %4333 = vmatpush1.msra.mxu0 0.0
        %4334 = vmatprep.subr.mxu0 0.0
        %4335 = vmatpush1.msra.mxu0 0.0
        %4336 = vmatprep.subr.mxu0 0.0
        %4337 = vmatpush1.msra.mxu0 0.0
        %4338 = vmatprep.subr.mxu0 0.0
        %4339 = vmatpush1.msra.mxu0 0.0
        %4340 = vmatprep.subr.mxu0 0.0
        %4341 = vmatpush1.msra.mxu0 0.0
        %4342 = vmatprep.subr.mxu0 0.0
        %4343 = vmatpush1.msra.mxu0 0.0
        %4344 = vmatprep.subr.mxu0 0.0
        %4345 = vmatpush1.msra.mxu0 0.0
        %4346 = vmatprep.subr.mxu0 0.0
        %4347 = vmatpush1.msra.mxu0 0.0
        %4348 = vmatprep.subr.mxu0 0.0
        %4349 = vmatpush1.msra.mxu0 0.0
        %4350 = vmatprep.subr.mxu0 0.0
        %4351 = vmatpush1.msra.mxu0 0.0
        %4352 = vmatprep.subr.mxu0 %v4320
        %4353 = vmatpush1.msra.mxu0 %v4317
        %4354 = vmatprep.subr.mxu0 0.0
        %4355 = vmatpush2.msra.mxu0 0.0
        %4356 = vmatprep.subr.mxu0 0.0
        %4357 = vmatpush2.msra.mxu0 0.0
        %4358 = vmatprep.subr.mxu0 0.0
        %4359 = vmatpush2.msra.mxu0 0.0
        %4360 = vmatprep.subr.mxu0 0.0
        %4361 = vmatpush2.msra.mxu0 0.0
        %4362 = vmatprep.subr.mxu0 0.0
        %4363 = vmatpush2.msra.mxu0 0.0
        %4364 = vmatprep.subr.mxu0 0.0
        %4365 = vmatpush2.msra.mxu0 0.0
        %4366 = vmatprep.subr.mxu0 0.0
        %4367 = vmatpush2.msra.mxu0 0.0
        %4368 = vmatprep.subr.mxu0 0.0
        %4369 = vmatpush2.msra.mxu0 0.0
        %4370 = vmatprep.subr.mxu0 0.0
        %4371 = vmatpush2.msra.mxu0 0.0
        %4372 = vmatprep.subr.mxu0 0.0
        %4373 = vmatpush2.msra.mxu0 0.0
        %4374 = vmatprep.subr.mxu0 0.0
        %4375 = vmatpush2.msra.mxu0 0.0
        %4376 = vmatprep.subr.mxu0 0.0
        %4377 = vmatpush2.msra.mxu0 0.0
        %4378 = vmatprep.subr.mxu0 0.0
        %4379 = vmatpush2.msra.mxu0 0.0
        %4380 = vmatprep.subr.mxu0 0.0
        %4381 = vmatpush2.msra.mxu0 0.0
        %4382 = vmatprep.subr.mxu0 0.0
        %4383 = vmatpush2.msra.mxu0 0.0
        %4384 = vmatprep.subr.mxu0 0.0
        %4385 = vmatpush2.msra.mxu0 0.0
        %4386 = vmatprep.mubr.f32.mxu0 0.0
        %4387 = vmatmul.mubr.f32.gmra.mxu0 %v4314
        %v4388 = vpop.f32.mrf.mxu0
        %v4389 = vadd.f32 0.0, %v4388
        %v4390 = vpop.f32.mrf.mxu0
        %v4391 = vadd.f32 0.0, %v4390
        %4392 = vdwg.mxu0
        %v4394 = vsel %vm1087, %v4072, 0
        %v4397 = vsel %vm1091, %v4064, 0
        %v4400 = vsel %vm1091, %v4071, 0
        %4402 = vmatprep.subr.mxu0 0.0
        %4403 = vmatpush1.msra.mxu0 0.0
        %4404 = vmatprep.subr.mxu0 0.0
        %4405 = vmatpush1.msra.mxu0 0.0
        %4406 = vmatprep.subr.mxu0 0.0
        %4407 = vmatpush1.msra.mxu0 0.0
        %4408 = vmatprep.subr.mxu0 0.0
        %4409 = vmatpush1.msra.mxu0 0.0
        %4410 = vmatprep.subr.mxu0 0.0
        %4411 = vmatpush1.msra.mxu0 0.0
        %4412 = vmatprep.subr.mxu0 0.0
        %4413 = vmatpush1.msra.mxu0 0.0
        %4414 = vmatprep.subr.mxu0 0.0
        %4415 = vmatpush1.msra.mxu0 0.0
        %4416 = vmatprep.subr.mxu0 0.0
        %4417 = vmatpush1.msra.mxu0 0.0
        %4418 = vmatprep.subr.mxu0 0.0
        %4419 = vmatpush1.msra.mxu0 0.0
        %4420 = vmatprep.subr.mxu0 0.0
        %4421 = vmatpush1.msra.mxu0 0.0
        %4422 = vmatprep.subr.mxu0 0.0
        %4423 = vmatpush1.msra.mxu0 0.0
        %4424 = vmatprep.subr.mxu0 0.0
        %4425 = vmatpush1.msra.mxu0 0.0
        %4426 = vmatprep.subr.mxu0 0.0
        %4427 = vmatpush1.msra.mxu0 0.0
        %4428 = vmatprep.subr.mxu0 0.0
        %4429 = vmatpush1.msra.mxu0 0.0
        %4430 = vmatprep.subr.mxu0 0.0
        %4431 = vmatpush1.msra.mxu0 0.0
        %4432 = vmatprep.subr.mxu0 %v4400
        %4433 = vmatpush1.msra.mxu0 %v4397
        %4434 = vmatprep.subr.mxu0 0.0
        %4435 = vmatpush2.msra.mxu0 0.0
        %4436 = vmatprep.subr.mxu0 0.0
        %4437 = vmatpush2.msra.mxu0 0.0
        %4438 = vmatprep.subr.mxu0 0.0
        %4439 = vmatpush2.msra.mxu0 0.0
        %4440 = vmatprep.subr.mxu0 0.0
        %4441 = vmatpush2.msra.mxu0 0.0
        %4442 = vmatprep.subr.mxu0 0.0
        %4443 = vmatpush2.msra.mxu0 0.0
        %4444 = vmatprep.subr.mxu0 0.0
        %4445 = vmatpush2.msra.mxu0 0.0
        %4446 = vmatprep.subr.mxu0 0.0
        %4447 = vmatpush2.msra.mxu0 0.0
        %4448 = vmatprep.subr.mxu0 0.0
        %4449 = vmatpush2.msra.mxu0 0.0
        %4450 = vmatprep.subr.mxu0 0.0
        %4451 = vmatpush2.msra.mxu0 0.0
        %4452 = vmatprep.subr.mxu0 0.0
        %4453 = vmatpush2.msra.mxu0 0.0
        %4454 = vmatprep.subr.mxu0 0.0
        %4455 = vmatpush2.msra.mxu0 0.0
        %4456 = vmatprep.subr.mxu0 0.0
        %4457 = vmatpush2.msra.mxu0 0.0
        %4458 = vmatprep.subr.mxu0 0.0
        %4459 = vmatpush2.msra.mxu0 0.0
        %4460 = vmatprep.subr.mxu0 0.0
        %4461 = vmatpush2.msra.mxu0 0.0
        %4462 = vmatprep.subr.mxu0 0.0
        %4463 = vmatpush2.msra.mxu0 0.0
        %4464 = vmatprep.subr.mxu0 0.0
        %4465 = vmatpush2.msra.mxu0 0.0
        %4466 = vmatprep.mubr.f32.mxu0 0.0
        %4467 = vmatmul.mubr.f32.gmra.mxu0 %v4394
        %v4468 = vpop.f32.mrf.mxu0
        %v4469 = vadd.f32 %v4389, %v4468
        %v4470 = vpop.f32.mrf.mxu0
        %v4471 = vadd.f32 %v4391, %v4470
        %4472 = vdwg.mxu0
        %4473 = vrot.lane.b32.xlu0 %v3854, 126
        %v4474 = vpop.permute.xlu0 %4473
        %4475 = vrot.lane.b32.xlu0 %v3855, 126
        %v4476 = vpop.permute.xlu0 %4475
        %4477 = vrot.lane.b32.xlu0 %v3857, 126
        %v4478 = vpop.permute.xlu0 %4477
        %4479 = vrot.lane.b32.xlu0 %v3858, 126
        %v4480 = vpop.permute.xlu0 %4479
        %4481 = vrot.lane.b32.xlu0 %v3860, 126
        %v4482 = vpop.permute.xlu0 %4481
        %4483 = vrot.lane.b32.xlu0 %v3861, 126
        %v4484 = vpop.permute.xlu0 %4483
        %4485 = vrot.lane.b32.xlu0 %v3863, 126
        %v4486 = vpop.permute.xlu0 %4485
        %4487 = vrot.lane.b32.xlu0 %v3864, 126
        %v4488 = vpop.permute.xlu0 %4487
        %v4497 = vcombine.low %v4474, %v4482
        %v4498 = vcombine.high %v4474, %v4482
        %v4500 = vunpack.c.l.s4 1983009808
        %v4501 = vunpack.c.0.s8 %v4500
        %v4502 = vlaneseq
        %v4503 = vshrl.u32 %v4502, 7
        %v4504 = vsub.s32 %v4501, %v4503
        %v4505 = vrot.slane %v4497, %v4504
        %v4507 = vunpack.c.l.s4 1983009808
        %v4508 = vunpack.c.0.s8 %v4507
        %v4509 = vlaneseq
        %v4510 = vshrl.u32 %v4509, 7
        %v4511 = vsub.s32 %v4508, %v4510
        %v4512 = vrot.slane %v4498, %v4511
        %v4513 = vcombine.low %v4478, %v4486
        %v4514 = vcombine.high %v4478, %v4486
        %v4516 = vunpack.c.l.s4 1983009808
        %v4517 = vunpack.c.0.s8 %v4516
        %v4518 = vlaneseq
        %v4519 = vshrl.u32 %v4518, 7
        %v4520 = vsub.s32 %v4517, %v4519
        %v4521 = vrot.slane %v4513, %v4520
        %v4523 = vunpack.c.l.s4 1983009808
        %v4524 = vunpack.c.0.s8 %v4523
        %v4525 = vlaneseq
        %v4526 = vshrl.u32 %v4525, 7
        %v4527 = vsub.s32 %v4524, %v4526
        %v4528 = vrot.slane %v4514, %v4527
        %v4529 = vcombine.low %v4505, %v4521
        %v4530 = vcombine.high %v4505, %v4521
        %v4532 = vunpack.c.l.s4 1934713408
        %v4533 = vunpack.c.0.s8 %v4532
        %v4534 = vlaneseq
        %v4535 = vshrl.u32 %v4534, 7
        %v4536 = vsub.s32 %v4533, %v4535
        %v4537 = vrot.slane %v4529, %v4536
        %v4539 = vunpack.c.l.s4 1934713408
        %v4540 = vunpack.c.0.s8 %v4539
        %v4541 = vlaneseq
        %v4542 = vshrl.u32 %v4541, 7
        %v4543 = vsub.s32 %v4540, %v4542
        %v4544 = vrot.slane %v4530, %v4543
        %v4545 = vcombine.low %v4512, %v4528
        %v4546 = vcombine.high %v4512, %v4528
        %v4548 = vunpack.c.l.s4 1934713408
        %v4549 = vunpack.c.0.s8 %v4548
        %v4550 = vlaneseq
        %v4551 = vshrl.u32 %v4550, 7
        %v4552 = vsub.s32 %v4549, %v4551
        %v4553 = vrot.slane %v4545, %v4552
        %v4555 = vunpack.c.l.s4 1934713408
        %v4556 = vunpack.c.0.s8 %v4555
        %v4557 = vlaneseq
        %v4558 = vshrl.u32 %v4557, 7
        %v4559 = vsub.s32 %v4556, %v4558
        %v4560 = vrot.slane %v4546, %v4559
        %v4561 = vcombine.high %v4537, 0.0
        %v4562 = vcombine.high %v4544, 0.0
        %v4563 = vcombine.high %v4553, 0.0
        %v4564 = vcombine.high %v4560, 0.0
        %v4565 = vcombine.low %v4476, %v4484
        %v4566 = vcombine.high %v4476, %v4484
        %v4568 = vunpack.c.l.s4 1983009808
        %v4569 = vunpack.c.0.s8 %v4568
        %v4570 = vlaneseq
        %v4571 = vshrl.u32 %v4570, 7
        %v4572 = vsub.s32 %v4569, %v4571
        %v4573 = vrot.slane %v4565, %v4572
        %v4575 = vunpack.c.l.s4 1983009808
        %v4576 = vunpack.c.0.s8 %v4575
        %v4577 = vlaneseq
        %v4578 = vshrl.u32 %v4577, 7
        %v4579 = vsub.s32 %v4576, %v4578
        %v4580 = vrot.slane %v4566, %v4579
        %v4581 = vcombine.low %v4480, %v4488
        %v4582 = vcombine.high %v4480, %v4488
        %v4584 = vunpack.c.l.s4 1983009808
        %v4585 = vunpack.c.0.s8 %v4584
        %v4586 = vlaneseq
        %v4587 = vshrl.u32 %v4586, 7
        %v4588 = vsub.s32 %v4585, %v4587
        %v4589 = vrot.slane %v4581, %v4588
        %v4591 = vunpack.c.l.s4 1983009808
        %v4592 = vunpack.c.0.s8 %v4591
        %v4593 = vlaneseq
        %v4594 = vshrl.u32 %v4593, 7
        %v4595 = vsub.s32 %v4592, %v4594
        %v4596 = vrot.slane %v4582, %v4595
        %v4597 = vcombine.low %v4573, %v4589
        %v4598 = vcombine.high %v4573, %v4589
        %v4600 = vunpack.c.l.s4 1934713408
        %v4601 = vunpack.c.0.s8 %v4600
        %v4602 = vlaneseq
        %v4603 = vshrl.u32 %v4602, 7
        %v4604 = vsub.s32 %v4601, %v4603
        %v4605 = vrot.slane %v4597, %v4604
        %v4607 = vunpack.c.l.s4 1934713408
        %v4608 = vunpack.c.0.s8 %v4607
        %v4609 = vlaneseq
        %v4610 = vshrl.u32 %v4609, 7
        %v4611 = vsub.s32 %v4608, %v4610
        %v4612 = vrot.slane %v4598, %v4611
        %v4613 = vcombine.low %v4580, %v4596
        %v4614 = vcombine.high %v4580, %v4596
        %v4616 = vunpack.c.l.s4 1934713408
        %v4617 = vunpack.c.0.s8 %v4616
        %v4618 = vlaneseq
        %v4619 = vshrl.u32 %v4618, 7
        %v4620 = vsub.s32 %v4617, %v4619
        %v4621 = vrot.slane %v4613, %v4620
        %v4623 = vunpack.c.l.s4 1934713408
        %v4624 = vunpack.c.0.s8 %v4623
        %v4625 = vlaneseq
        %v4626 = vshrl.u32 %v4625, 7
        %v4627 = vsub.s32 %v4624, %v4626
        %v4628 = vrot.slane %v4614, %v4627
        %v4629 = vcombine.high %v4605, 0.0
        %v4630 = vcombine.high %v4612, 0.0
        %v4631 = vcombine.high %v4621, 0.0
        %v4632 = vcombine.high %v4628, 0.0
        %4634 = vrot.lane.b32.xlu0 %v4561, 16
        %v4635 = vpop.permute.xlu0 %4634
        %4638 = vrot.lane.b32.xlu0 %v4544, 32
        %v4639 = vpop.permute.xlu0 %4638
        %4642 = vrot.lane.b32.xlu0 %v4562, 48
        %v4643 = vpop.permute.xlu0 %4642
        %4646 = vrot.lane.b32.xlu0 %v4553, 64
        %v4647 = vpop.permute.xlu0 %4646
        %4650 = vrot.lane.b32.xlu0 %v4563, 80
        %v4651 = vpop.permute.xlu0 %4650
        %4654 = vrot.lane.b32.xlu0 %v4560, 96
        %v4655 = vpop.permute.xlu0 %4654
        %4658 = vrot.lane.b32.xlu0 %v4564, 112
        %v4659 = vpop.permute.xlu0 %4658
        %4662 = vrot.lane.b32.xlu0 %v4629, 16
        %v4663 = vpop.permute.xlu0 %4662
        %4666 = vrot.lane.b32.xlu0 %v4612, 32
        %v4667 = vpop.permute.xlu0 %4666
        %4670 = vrot.lane.b32.xlu0 %v4630, 48
        %v4671 = vpop.permute.xlu0 %4670
        %4674 = vrot.lane.b32.xlu0 %v4621, 64
        %v4675 = vpop.permute.xlu0 %4674
        %4678 = vrot.lane.b32.xlu0 %v4631, 80
        %v4679 = vpop.permute.xlu0 %4678
        %4682 = vrot.lane.b32.xlu0 %v4628, 96
        %v4683 = vpop.permute.xlu0 %4682
        %4686 = vrot.lane.b32.xlu0 %v4632, 112
        %v4687 = vpop.permute.xlu0 %4686
        %v4689 = vsel %vm825, %v4537, %v4635
        %v4690 = vsel %vm827, %v4689, %v4639
        %v4691 = vsel %vm829, %v4690, %v4643
        %v4692 = vsel %vm831, %v4691, %v4647
        %v4693 = vsel %vm833, %v4692, %v4651
        %v4694 = vsel %vm835, %v4693, %v4655
        %v4695 = vsel %vm837, %v4694, %v4659
        %v4696 = vsel %vm825, %v4605, %v4663
        %v4697 = vsel %vm827, %v4696, %v4667
        %v4698 = vsel %vm829, %v4697, %v4671
        %v4699 = vsel %vm831, %v4698, %v4675
        %v4700 = vsel %vm833, %v4699, %v4679
        %v4701 = vsel %vm835, %v4700, %v4683
        %v4702 = vsel %vm837, %v4701, %v4687
        %s4703 = scalar_lea.vmem %s3, 8
        %v4704 = vld [vmem:[%s4703] sm:$0xf]
        %v4706 = vsel %vm1087, %v4704, 0
        %v4709 = vsel %vm1091, %v4695, 0
        %v4712 = vsel %vm1091, %v4702, 0
        %4714 = vmatprep.subr.mxu0 0.0
        %4715 = vmatpush1.msra.mxu0 0.0
        %4716 = vmatprep.subr.mxu0 0.0
        %4717 = vmatpush1.msra.mxu0 0.0
        %4718 = vmatprep.subr.mxu0 0.0
        %4719 = vmatpush1.msra.mxu0 0.0
        %4720 = vmatprep.subr.mxu0 0.0
        %4721 = vmatpush1.msra.mxu0 0.0
        %4722 = vmatprep.subr.mxu0 0.0
        %4723 = vmatpush1.msra.mxu0 0.0
        %4724 = vmatprep.subr.mxu0 0.0
        %4725 = vmatpush1.msra.mxu0 0.0
        %4726 = vmatprep.subr.mxu0 0.0
        %4727 = vmatpush1.msra.mxu0 0.0
        %4728 = vmatprep.subr.mxu0 0.0
        %4729 = vmatpush1.msra.mxu0 0.0
        %4730 = vmatprep.subr.mxu0 0.0
        %4731 = vmatpush1.msra.mxu0 0.0
        %4732 = vmatprep.subr.mxu0 0.0
        %4733 = vmatpush1.msra.mxu0 0.0
        %4734 = vmatprep.subr.mxu0 0.0
        %4735 = vmatpush1.msra.mxu0 0.0
        %4736 = vmatprep.subr.mxu0 0.0
        %4737 = vmatpush1.msra.mxu0 0.0
        %4738 = vmatprep.subr.mxu0 0.0
        %4739 = vmatpush1.msra.mxu0 0.0
        %4740 = vmatprep.subr.mxu0 0.0
        %4741 = vmatpush1.msra.mxu0 0.0
        %4742 = vmatprep.subr.mxu0 0.0
        %4743 = vmatpush1.msra.mxu0 0.0
        %4744 = vmatprep.subr.mxu0 %v4712
        %4745 = vmatpush1.msra.mxu0 %v4709
        %4746 = vmatprep.subr.mxu0 0.0
        %4747 = vmatpush2.msra.mxu0 0.0
        %4748 = vmatprep.subr.mxu0 0.0
        %4749 = vmatpush2.msra.mxu0 0.0
        %4750 = vmatprep.subr.mxu0 0.0
        %4751 = vmatpush2.msra.mxu0 0.0
        %4752 = vmatprep.subr.mxu0 0.0
        %4753 = vmatpush2.msra.mxu0 0.0
        %4754 = vmatprep.subr.mxu0 0.0
        %4755 = vmatpush2.msra.mxu0 0.0
        %4756 = vmatprep.subr.mxu0 0.0
        %4757 = vmatpush2.msra.mxu0 0.0
        %4758 = vmatprep.subr.mxu0 0.0
        %4759 = vmatpush2.msra.mxu0 0.0
        %4760 = vmatprep.subr.mxu0 0.0
        %4761 = vmatpush2.msra.mxu0 0.0
        %4762 = vmatprep.subr.mxu0 0.0
        %4763 = vmatpush2.msra.mxu0 0.0
        %4764 = vmatprep.subr.mxu0 0.0
        %4765 = vmatpush2.msra.mxu0 0.0
        %4766 = vmatprep.subr.mxu0 0.0
        %4767 = vmatpush2.msra.mxu0 0.0
        %4768 = vmatprep.subr.mxu0 0.0
        %4769 = vmatpush2.msra.mxu0 0.0
        %4770 = vmatprep.subr.mxu0 0.0
        %4771 = vmatpush2.msra.mxu0 0.0
        %4772 = vmatprep.subr.mxu0 0.0
        %4773 = vmatpush2.msra.mxu0 0.0
        %4774 = vmatprep.subr.mxu0 0.0
        %4775 = vmatpush2.msra.mxu0 0.0
        %4776 = vmatprep.subr.mxu0 0.0
        %4777 = vmatpush2.msra.mxu0 0.0
        %4778 = vmatprep.mubr.f32.mxu0 0.0
        %4779 = vmatmul.mubr.f32.gmra.mxu0 %v4706
        %v4780 = vpop.f32.mrf.mxu0
        %v4781 = vadd.f32 0.0, %v4780
        %v4782 = vpop.f32.mrf.mxu0
        %v4783 = vadd.f32 0.0, %v4782
        %4784 = vdwg.mxu0
        %v4785 = vadd.f32 %v4469, %v4781
        %v4786 = vadd.f32 %v4471, %v4783
        %v4791 = vrot.slane %v3854, 1
        %v4792 = vrot.slane %v3855, 1
        %v4793 = vsel %vm1567, %v4791, %v4792
        %v4794 = vrot.slane %v3856, 1
        %v4795 = vsel %vm1567, %v4792, %v4794
        %v4796 = vrot.slane %v3857, 1
        %v4797 = vrot.slane %v3858, 1
        %v4798 = vsel %vm1567, %v4796, %v4797
        %v4799 = vrot.slane %v3859, 1
        %v4800 = vsel %vm1567, %v4797, %v4799
        %v4801 = vrot.slane %v3860, 1
        %v4802 = vrot.slane %v3861, 1
        %v4803 = vsel %vm1567, %v4801, %v4802
        %v4804 = vrot.slane %v3862, 1
        %v4805 = vsel %vm1567, %v4802, %v4804
        %v4806 = vrot.slane %v3863, 1
        %v4807 = vrot.slane %v3864, 1
        %v4808 = vsel %vm1567, %v4806, %v4807
        %v4809 = vrot.slane %v3865, 1
        %v4810 = vsel %vm1567, %v4807, %v4809
        %v4819 = vcombine.low %v4793, %v4803
        %v4820 = vcombine.high %v4793, %v4803
        %v4822 = vunpack.c.l.s4 1983009808
        %v4823 = vunpack.c.0.s8 %v4822
        %v4824 = vlaneseq
        %v4825 = vshrl.u32 %v4824, 7
        %v4826 = vsub.s32 %v4823, %v4825
        %v4827 = vrot.slane %v4819, %v4826
        %v4829 = vunpack.c.l.s4 1983009808
        %v4830 = vunpack.c.0.s8 %v4829
        %v4831 = vlaneseq
        %v4832 = vshrl.u32 %v4831, 7
        %v4833 = vsub.s32 %v4830, %v4832
        %v4834 = vrot.slane %v4820, %v4833
        %v4835 = vcombine.low %v4798, %v4808
        %v4836 = vcombine.high %v4798, %v4808
        %v4838 = vunpack.c.l.s4 1983009808
        %v4839 = vunpack.c.0.s8 %v4838
        %v4840 = vlaneseq
        %v4841 = vshrl.u32 %v4840, 7
        %v4842 = vsub.s32 %v4839, %v4841
        %v4843 = vrot.slane %v4835, %v4842
        %v4845 = vunpack.c.l.s4 1983009808
        %v4846 = vunpack.c.0.s8 %v4845
        %v4847 = vlaneseq
        %v4848 = vshrl.u32 %v4847, 7
        %v4849 = vsub.s32 %v4846, %v4848
        %v4850 = vrot.slane %v4836, %v4849
        %v4851 = vcombine.low %v4827, %v4843
        %v4852 = vcombine.high %v4827, %v4843
        %v4854 = vunpack.c.l.s4 1934713408
        %v4855 = vunpack.c.0.s8 %v4854
        %v4856 = vlaneseq
        %v4857 = vshrl.u32 %v4856, 7
        %v4858 = vsub.s32 %v4855, %v4857
        %v4859 = vrot.slane %v4851, %v4858
        %v4861 = vunpack.c.l.s4 1934713408
        %v4862 = vunpack.c.0.s8 %v4861
        %v4863 = vlaneseq
        %v4864 = vshrl.u32 %v4863, 7
        %v4865 = vsub.s32 %v4862, %v4864
        %v4866 = vrot.slane %v4852, %v4865
        %v4867 = vcombine.low %v4834, %v4850
        %v4868 = vcombine.high %v4834, %v4850
        %v4870 = vunpack.c.l.s4 1934713408
        %v4871 = vunpack.c.0.s8 %v4870
        %v4872 = vlaneseq
        %v4873 = vshrl.u32 %v4872, 7
        %v4874 = vsub.s32 %v4871, %v4873
        %v4875 = vrot.slane %v4867, %v4874
        %v4877 = vunpack.c.l.s4 1934713408
        %v4878 = vunpack.c.0.s8 %v4877
        %v4879 = vlaneseq
        %v4880 = vshrl.u32 %v4879, 7
        %v4881 = vsub.s32 %v4878, %v4880
        %v4882 = vrot.slane %v4868, %v4881
        %v4883 = vcombine.high %v4859, 0.0
        %v4884 = vcombine.high %v4866, 0.0
        %v4885 = vcombine.high %v4875, 0.0
        %v4886 = vcombine.high %v4882, 0.0
        %v4887 = vcombine.low %v4795, %v4805
        %v4888 = vcombine.high %v4795, %v4805
        %v4890 = vunpack.c.l.s4 1983009808
        %v4891 = vunpack.c.0.s8 %v4890
        %v4892 = vlaneseq
        %v4893 = vshrl.u32 %v4892, 7
        %v4894 = vsub.s32 %v4891, %v4893
        %v4895 = vrot.slane %v4887, %v4894
        %v4897 = vunpack.c.l.s4 1983009808
        %v4898 = vunpack.c.0.s8 %v4897
        %v4899 = vlaneseq
        %v4900 = vshrl.u32 %v4899, 7
        %v4901 = vsub.s32 %v4898, %v4900
        %v4902 = vrot.slane %v4888, %v4901
        %v4903 = vcombine.low %v4800, %v4810
        %v4904 = vcombine.high %v4800, %v4810
        %v4906 = vunpack.c.l.s4 1983009808
        %v4907 = vunpack.c.0.s8 %v4906
        %v4908 = vlaneseq
        %v4909 = vshrl.u32 %v4908, 7
        %v4910 = vsub.s32 %v4907, %v4909
        %v4911 = vrot.slane %v4903, %v4910
        %v4913 = vunpack.c.l.s4 1983009808
        %v4914 = vunpack.c.0.s8 %v4913
        %v4915 = vlaneseq
        %v4916 = vshrl.u32 %v4915, 7
        %v4917 = vsub.s32 %v4914, %v4916
        %v4918 = vrot.slane %v4904, %v4917
        %v4919 = vcombine.low %v4895, %v4911
        %v4920 = vcombine.high %v4895, %v4911
        %v4922 = vunpack.c.l.s4 1934713408
        %v4923 = vunpack.c.0.s8 %v4922
        %v4924 = vlaneseq
        %v4925 = vshrl.u32 %v4924, 7
        %v4926 = vsub.s32 %v4923, %v4925
        %v4927 = vrot.slane %v4919, %v4926
        %v4929 = vunpack.c.l.s4 1934713408
        %v4930 = vunpack.c.0.s8 %v4929
        %v4931 = vlaneseq
        %v4932 = vshrl.u32 %v4931, 7
        %v4933 = vsub.s32 %v4930, %v4932
        %v4934 = vrot.slane %v4920, %v4933
        %v4935 = vcombine.low %v4902, %v4918
        %v4936 = vcombine.high %v4902, %v4918
        %v4938 = vunpack.c.l.s4 1934713408
        %v4939 = vunpack.c.0.s8 %v4938
        %v4940 = vlaneseq
        %v4941 = vshrl.u32 %v4940, 7
        %v4942 = vsub.s32 %v4939, %v4941
        %v4943 = vrot.slane %v4935, %v4942
        %v4945 = vunpack.c.l.s4 1934713408
        %v4946 = vunpack.c.0.s8 %v4945
        %v4947 = vlaneseq
        %v4948 = vshrl.u32 %v4947, 7
        %v4949 = vsub.s32 %v4946, %v4948
        %v4950 = vrot.slane %v4936, %v4949
        %v4951 = vcombine.high %v4927, 0.0
        %v4952 = vcombine.high %v4934, 0.0
        %v4953 = vcombine.high %v4943, 0.0
        %v4954 = vcombine.high %v4950, 0.0
        %4956 = vrot.lane.b32.xlu0 %v4883, 16
        %v4957 = vpop.permute.xlu0 %4956
        %4960 = vrot.lane.b32.xlu0 %v4866, 32
        %v4961 = vpop.permute.xlu0 %4960
        %4964 = vrot.lane.b32.xlu0 %v4884, 48
        %v4965 = vpop.permute.xlu0 %4964
        %4968 = vrot.lane.b32.xlu0 %v4875, 64
        %v4969 = vpop.permute.xlu0 %4968
        %4972 = vrot.lane.b32.xlu0 %v4885, 80
        %v4973 = vpop.permute.xlu0 %4972
        %4976 = vrot.lane.b32.xlu0 %v4882, 96
        %v4977 = vpop.permute.xlu0 %4976
        %4980 = vrot.lane.b32.xlu0 %v4886, 112
        %v4981 = vpop.permute.xlu0 %4980
        %4984 = vrot.lane.b32.xlu0 %v4951, 16
        %v4985 = vpop.permute.xlu0 %4984
        %4988 = vrot.lane.b32.xlu0 %v4934, 32
        %v4989 = vpop.permute.xlu0 %4988
        %4992 = vrot.lane.b32.xlu0 %v4952, 48
        %v4993 = vpop.permute.xlu0 %4992
        %4996 = vrot.lane.b32.xlu0 %v4943, 64
        %v4997 = vpop.permute.xlu0 %4996
        %5000 = vrot.lane.b32.xlu0 %v4953, 80
        %v5001 = vpop.permute.xlu0 %5000
        %5004 = vrot.lane.b32.xlu0 %v4950, 96
        %v5005 = vpop.permute.xlu0 %5004
        %5008 = vrot.lane.b32.xlu0 %v4954, 112
        %v5009 = vpop.permute.xlu0 %5008
        %v5011 = vsel %vm825, %v4859, %v4957
        %v5012 = vsel %vm827, %v5011, %v4961
        %v5013 = vsel %vm829, %v5012, %v4965
        %v5014 = vsel %vm831, %v5013, %v4969
        %v5015 = vsel %vm833, %v5014, %v4973
        %v5016 = vsel %vm835, %v5015, %v4977
        %v5017 = vsel %vm837, %v5016, %v4981
        %v5018 = vsel %vm825, %v4927, %v4985
        %v5019 = vsel %vm827, %v5018, %v4989
        %v5020 = vsel %vm829, %v5019, %v4993
        %v5021 = vsel %vm831, %v5020, %v4997
        %v5022 = vsel %vm833, %v5021, %v5001
        %v5023 = vsel %vm835, %v5022, %v5005
        %v5024 = vsel %vm837, %v5023, %v5009
        %s5025 = scalar_lea.vmem %s3, 12
        %v5026 = vld [vmem:[%s5025] sm:$0xf]
        %v5028 = vsel %vm1087, %v5026, 0
        %v5031 = vsel %vm1091, %v5017, 0
        %v5034 = vsel %vm1091, %v5024, 0
        %5036 = vmatprep.subr.mxu0 0.0
        %5037 = vmatpush1.msra.mxu0 0.0
        %5038 = vmatprep.subr.mxu0 0.0
        %5039 = vmatpush1.msra.mxu0 0.0
        %5040 = vmatprep.subr.mxu0 0.0
        %5041 = vmatpush1.msra.mxu0 0.0
        %5042 = vmatprep.subr.mxu0 0.0
        %5043 = vmatpush1.msra.mxu0 0.0
        %5044 = vmatprep.subr.mxu0 0.0
        %5045 = vmatpush1.msra.mxu0 0.0
        %5046 = vmatprep.subr.mxu0 0.0
        %5047 = vmatpush1.msra.mxu0 0.0
        %5048 = vmatprep.subr.mxu0 0.0
        %5049 = vmatpush1.msra.mxu0 0.0
        %5050 = vmatprep.subr.mxu0 0.0
        %5051 = vmatpush1.msra.mxu0 0.0
        %5052 = vmatprep.subr.mxu0 0.0
        %5053 = vmatpush1.msra.mxu0 0.0
        %5054 = vmatprep.subr.mxu0 0.0
        %5055 = vmatpush1.msra.mxu0 0.0
        %5056 = vmatprep.subr.mxu0 0.0
        %5057 = vmatpush1.msra.mxu0 0.0
        %5058 = vmatprep.subr.mxu0 0.0
        %5059 = vmatpush1.msra.mxu0 0.0
        %5060 = vmatprep.subr.mxu0 0.0
        %5061 = vmatpush1.msra.mxu0 0.0
        %5062 = vmatprep.subr.mxu0 0.0
        %5063 = vmatpush1.msra.mxu0 0.0
        %5064 = vmatprep.subr.mxu0 0.0
        %5065 = vmatpush1.msra.mxu0 0.0
        %5066 = vmatprep.subr.mxu0 %v5034
        %5067 = vmatpush1.msra.mxu0 %v5031
        %5068 = vmatprep.subr.mxu0 0.0
        %5069 = vmatpush2.msra.mxu0 0.0
        %5070 = vmatprep.subr.mxu0 0.0
        %5071 = vmatpush2.msra.mxu0 0.0
        %5072 = vmatprep.subr.mxu0 0.0
        %5073 = vmatpush2.msra.mxu0 0.0
        %5074 = vmatprep.subr.mxu0 0.0
        %5075 = vmatpush2.msra.mxu0 0.0
        %5076 = vmatprep.subr.mxu0 0.0
        %5077 = vmatpush2.msra.mxu0 0.0
        %5078 = vmatprep.subr.mxu0 0.0
        %5079 = vmatpush2.msra.mxu0 0.0
        %5080 = vmatprep.subr.mxu0 0.0
        %5081 = vmatpush2.msra.mxu0 0.0
        %5082 = vmatprep.subr.mxu0 0.0
        %5083 = vmatpush2.msra.mxu0 0.0
        %5084 = vmatprep.subr.mxu0 0.0
        %5085 = vmatpush2.msra.mxu0 0.0
        %5086 = vmatprep.subr.mxu0 0.0
        %5087 = vmatpush2.msra.mxu0 0.0
        %5088 = vmatprep.subr.mxu0 0.0
        %5089 = vmatpush2.msra.mxu0 0.0
        %5090 = vmatprep.subr.mxu0 0.0
        %5091 = vmatpush2.msra.mxu0 0.0
        %5092 = vmatprep.subr.mxu0 0.0
        %5093 = vmatpush2.msra.mxu0 0.0
        %5094 = vmatprep.subr.mxu0 0.0
        %5095 = vmatpush2.msra.mxu0 0.0
        %5096 = vmatprep.subr.mxu0 0.0
        %5097 = vmatpush2.msra.mxu0 0.0
        %5098 = vmatprep.subr.mxu0 0.0
        %5099 = vmatpush2.msra.mxu0 0.0
        %5100 = vmatprep.mubr.f32.mxu0 0.0
        %5101 = vmatmul.mubr.f32.gmra.mxu0 %v5028
        %v5102 = vpop.f32.mrf.mxu0
        %v5103 = vadd.f32 0.0, %v5102
        %v5104 = vpop.f32.mrf.mxu0
        %v5105 = vadd.f32 0.0, %v5104
        %5106 = vdwg.mxu0
        %v5107 = vadd.f32 %v4785, %v5103
        %v5108 = vadd.f32 %v4786, %v5105
        %5109 = vrot.lane.b32.xlu0 %v4793, 127
        %v5110 = vpop.permute.xlu0 %5109
        %5111 = vrot.lane.b32.xlu0 %v4795, 127
        %v5112 = vpop.permute.xlu0 %5111
        %5113 = vrot.lane.b32.xlu0 %v4798, 127
        %v5114 = vpop.permute.xlu0 %5113
        %5115 = vrot.lane.b32.xlu0 %v4800, 127
        %v5116 = vpop.permute.xlu0 %5115
        %5117 = vrot.lane.b32.xlu0 %v4803, 127
        %v5118 = vpop.permute.xlu0 %5117
        %5119 = vrot.lane.b32.xlu0 %v4805, 127
        %v5120 = vpop.permute.xlu0 %5119
        %5121 = vrot.lane.b32.xlu0 %v4808, 127
        %v5122 = vpop.permute.xlu0 %5121
        %5123 = vrot.lane.b32.xlu0 %v4810, 127
        %v5124 = vpop.permute.xlu0 %5123
        %v5133 = vcombine.low %v5110, %v5118
        %v5134 = vcombine.high %v5110, %v5118
        %v5136 = vunpack.c.l.s4 1983009808
        %v5137 = vunpack.c.0.s8 %v5136
        %v5138 = vlaneseq
        %v5139 = vshrl.u32 %v5138, 7
        %v5140 = vsub.s32 %v5137, %v5139
        %v5141 = vrot.slane %v5133, %v5140
        %v5143 = vunpack.c.l.s4 1983009808
        %v5144 = vunpack.c.0.s8 %v5143
        %v5145 = vlaneseq
        %v5146 = vshrl.u32 %v5145, 7
        %v5147 = vsub.s32 %v5144, %v5146
        %v5148 = vrot.slane %v5134, %v5147
        %v5149 = vcombine.low %v5114, %v5122
        %v5150 = vcombine.high %v5114, %v5122
        %v5152 = vunpack.c.l.s4 1983009808
        %v5153 = vunpack.c.0.s8 %v5152
        %v5154 = vlaneseq
        %v5155 = vshrl.u32 %v5154, 7
        %v5156 = vsub.s32 %v5153, %v5155
        %v5157 = vrot.slane %v5149, %v5156
        %v5159 = vunpack.c.l.s4 1983009808
        %v5160 = vunpack.c.0.s8 %v5159
        %v5161 = vlaneseq
        %v5162 = vshrl.u32 %v5161, 7
        %v5163 = vsub.s32 %v5160, %v5162
        %v5164 = vrot.slane %v5150, %v5163
        %v5165 = vcombine.low %v5141, %v5157
        %v5166 = vcombine.high %v5141, %v5157
        %v5168 = vunpack.c.l.s4 1934713408
        %v5169 = vunpack.c.0.s8 %v5168
        %v5170 = vlaneseq
        %v5171 = vshrl.u32 %v5170, 7
        %v5172 = vsub.s32 %v5169, %v5171
        %v5173 = vrot.slane %v5165, %v5172
        %v5175 = vunpack.c.l.s4 1934713408
        %v5176 = vunpack.c.0.s8 %v5175
        %v5177 = vlaneseq
        %v5178 = vshrl.u32 %v5177, 7
        %v5179 = vsub.s32 %v5176, %v5178
        %v5180 = vrot.slane %v5166, %v5179
        %v5181 = vcombine.low %v5148, %v5164
        %v5182 = vcombine.high %v5148, %v5164
        %v5184 = vunpack.c.l.s4 1934713408
        %v5185 = vunpack.c.0.s8 %v5184
        %v5186 = vlaneseq
        %v5187 = vshrl.u32 %v5186, 7
        %v5188 = vsub.s32 %v5185, %v5187
        %v5189 = vrot.slane %v5181, %v5188
        %v5191 = vunpack.c.l.s4 1934713408
        %v5192 = vunpack.c.0.s8 %v5191
        %v5193 = vlaneseq
        %v5194 = vshrl.u32 %v5193, 7
        %v5195 = vsub.s32 %v5192, %v5194
        %v5196 = vrot.slane %v5182, %v5195
        %v5197 = vcombine.high %v5173, 0.0
        %v5198 = vcombine.high %v5180, 0.0
        %v5199 = vcombine.high %v5189, 0.0
        %v5200 = vcombine.high %v5196, 0.0
        %v5201 = vcombine.low %v5112, %v5120
        %v5202 = vcombine.high %v5112, %v5120
        %v5204 = vunpack.c.l.s4 1983009808
        %v5205 = vunpack.c.0.s8 %v5204
        %v5206 = vlaneseq
        %v5207 = vshrl.u32 %v5206, 7
        %v5208 = vsub.s32 %v5205, %v5207
        %v5209 = vrot.slane %v5201, %v5208
        %v5211 = vunpack.c.l.s4 1983009808
        %v5212 = vunpack.c.0.s8 %v5211
        %v5213 = vlaneseq
        %v5214 = vshrl.u32 %v5213, 7
        %v5215 = vsub.s32 %v5212, %v5214
        %v5216 = vrot.slane %v5202, %v5215
        %v5217 = vcombine.low %v5116, %v5124
        %v5218 = vcombine.high %v5116, %v5124
        %v5220 = vunpack.c.l.s4 1983009808
        %v5221 = vunpack.c.0.s8 %v5220
        %v5222 = vlaneseq
        %v5223 = vshrl.u32 %v5222, 7
        %v5224 = vsub.s32 %v5221, %v5223
        %v5225 = vrot.slane %v5217, %v5224
        %v5227 = vunpack.c.l.s4 1983009808
        %v5228 = vunpack.c.0.s8 %v5227
        %v5229 = vlaneseq
        %v5230 = vshrl.u32 %v5229, 7
        %v5231 = vsub.s32 %v5228, %v5230
        %v5232 = vrot.slane %v5218, %v5231
        %v5233 = vcombine.low %v5209, %v5225
        %v5234 = vcombine.high %v5209, %v5225
        %v5236 = vunpack.c.l.s4 1934713408
        %v5237 = vunpack.c.0.s8 %v5236
        %v5238 = vlaneseq
        %v5239 = vshrl.u32 %v5238, 7
        %v5240 = vsub.s32 %v5237, %v5239
        %v5241 = vrot.slane %v5233, %v5240
        %v5243 = vunpack.c.l.s4 1934713408
        %v5244 = vunpack.c.0.s8 %v5243
        %v5245 = vlaneseq
        %v5246 = vshrl.u32 %v5245, 7
        %v5247 = vsub.s32 %v5244, %v5246
        %v5248 = vrot.slane %v5234, %v5247
        %v5249 = vcombine.low %v5216, %v5232
        %v5250 = vcombine.high %v5216, %v5232
        %v5252 = vunpack.c.l.s4 1934713408
        %v5253 = vunpack.c.0.s8 %v5252
        %v5254 = vlaneseq
        %v5255 = vshrl.u32 %v5254, 7
        %v5256 = vsub.s32 %v5253, %v5255
        %v5257 = vrot.slane %v5249, %v5256
        %v5259 = vunpack.c.l.s4 1934713408
        %v5260 = vunpack.c.0.s8 %v5259
        %v5261 = vlaneseq
        %v5262 = vshrl.u32 %v5261, 7
        %v5263 = vsub.s32 %v5260, %v5262
        %v5264 = vrot.slane %v5250, %v5263
        %v5265 = vcombine.high %v5241, 0.0
        %v5266 = vcombine.high %v5248, 0.0
        %v5267 = vcombine.high %v5257, 0.0
        %v5268 = vcombine.high %v5264, 0.0
        %5270 = vrot.lane.b32.xlu0 %v5197, 16
        %v5271 = vpop.permute.xlu0 %5270
        %5274 = vrot.lane.b32.xlu0 %v5180, 32
        %v5275 = vpop.permute.xlu0 %5274
        %5278 = vrot.lane.b32.xlu0 %v5198, 48
        %v5279 = vpop.permute.xlu0 %5278
        %5282 = vrot.lane.b32.xlu0 %v5189, 64
        %v5283 = vpop.permute.xlu0 %5282
        %5286 = vrot.lane.b32.xlu0 %v5199, 80
        %v5287 = vpop.permute.xlu0 %5286
        %5290 = vrot.lane.b32.xlu0 %v5196, 96
        %v5291 = vpop.permute.xlu0 %5290
        %5294 = vrot.lane.b32.xlu0 %v5200, 112
        %v5295 = vpop.permute.xlu0 %5294
        %5298 = vrot.lane.b32.xlu0 %v5265, 16
        %v5299 = vpop.permute.xlu0 %5298
        %5302 = vrot.lane.b32.xlu0 %v5248, 32
        %v5303 = vpop.permute.xlu0 %5302
        %5306 = vrot.lane.b32.xlu0 %v5266, 48
        %v5307 = vpop.permute.xlu0 %5306
        %5310 = vrot.lane.b32.xlu0 %v5257, 64
        %v5311 = vpop.permute.xlu0 %5310
        %5314 = vrot.lane.b32.xlu0 %v5267, 80
        %v5315 = vpop.permute.xlu0 %5314
        %5318 = vrot.lane.b32.xlu0 %v5264, 96
        %v5319 = vpop.permute.xlu0 %5318
        %5322 = vrot.lane.b32.xlu0 %v5268, 112
        %v5323 = vpop.permute.xlu0 %5322
        %v5325 = vsel %vm825, %v5173, %v5271
        %v5326 = vsel %vm827, %v5325, %v5275
        %v5327 = vsel %vm829, %v5326, %v5279
        %v5328 = vsel %vm831, %v5327, %v5283
        %v5329 = vsel %vm833, %v5328, %v5287
        %v5330 = vsel %vm835, %v5329, %v5291
        %v5331 = vsel %vm837, %v5330, %v5295
        %v5332 = vsel %vm825, %v5241, %v5299
        %v5333 = vsel %vm827, %v5332, %v5303
        %v5334 = vsel %vm829, %v5333, %v5307
        %v5335 = vsel %vm831, %v5334, %v5311
        %v5336 = vsel %vm833, %v5335, %v5315
        %v5337 = vsel %vm835, %v5336, %v5319
        %v5338 = vsel %vm837, %v5337, %v5323
        %s5339 = scalar_lea.vmem %s3, 16
        %v5340 = vld [vmem:[%s5339] sm:$0xf]
        %v5342 = vsel %vm1087, %v5340, 0
        %v5345 = vsel %vm1091, %v5331, 0
        %v5348 = vsel %vm1091, %v5338, 0
        %5350 = vmatprep.subr.mxu0 0.0
        %5351 = vmatpush1.msra.mxu0 0.0
        %5352 = vmatprep.subr.mxu0 0.0
        %5353 = vmatpush1.msra.mxu0 0.0
        %5354 = vmatprep.subr.mxu0 0.0
        %5355 = vmatpush1.msra.mxu0 0.0
        %5356 = vmatprep.subr.mxu0 0.0
        %5357 = vmatpush1.msra.mxu0 0.0
        %5358 = vmatprep.subr.mxu0 0.0
        %5359 = vmatpush1.msra.mxu0 0.0
        %5360 = vmatprep.subr.mxu0 0.0
        %5361 = vmatpush1.msra.mxu0 0.0
        %5362 = vmatprep.subr.mxu0 0.0
        %5363 = vmatpush1.msra.mxu0 0.0
        %5364 = vmatprep.subr.mxu0 0.0
        %5365 = vmatpush1.msra.mxu0 0.0
        %5366 = vmatprep.subr.mxu0 0.0
        %5367 = vmatpush1.msra.mxu0 0.0
        %5368 = vmatprep.subr.mxu0 0.0
        %5369 = vmatpush1.msra.mxu0 0.0
        %5370 = vmatprep.subr.mxu0 0.0
        %5371 = vmatpush1.msra.mxu0 0.0
        %5372 = vmatprep.subr.mxu0 0.0
        %5373 = vmatpush1.msra.mxu0 0.0
        %5374 = vmatprep.subr.mxu0 0.0
        %5375 = vmatpush1.msra.mxu0 0.0
        %5376 = vmatprep.subr.mxu0 0.0
        %5377 = vmatpush1.msra.mxu0 0.0
        %5378 = vmatprep.subr.mxu0 0.0
        %5379 = vmatpush1.msra.mxu0 0.0
        %5380 = vmatprep.subr.mxu0 %v5348
        %5381 = vmatpush1.msra.mxu0 %v5345
        %5382 = vmatprep.subr.mxu0 0.0
        %5383 = vmatpush2.msra.mxu0 0.0
        %5384 = vmatprep.subr.mxu0 0.0
        %5385 = vmatpush2.msra.mxu0 0.0
        %5386 = vmatprep.subr.mxu0 0.0
        %5387 = vmatpush2.msra.mxu0 0.0
        %5388 = vmatprep.subr.mxu0 0.0
        %5389 = vmatpush2.msra.mxu0 0.0
        %5390 = vmatprep.subr.mxu0 0.0
        %5391 = vmatpush2.msra.mxu0 0.0
        %5392 = vmatprep.subr.mxu0 0.0
        %5393 = vmatpush2.msra.mxu0 0.0
        %5394 = vmatprep.subr.mxu0 0.0
        %5395 = vmatpush2.msra.mxu0 0.0
        %5396 = vmatprep.subr.mxu0 0.0
        %5397 = vmatpush2.msra.mxu0 0.0
        %5398 = vmatprep.subr.mxu0 0.0
        %5399 = vmatpush2.msra.mxu0 0.0
        %5400 = vmatprep.subr.mxu0 0.0
        %5401 = vmatpush2.msra.mxu0 0.0
        %5402 = vmatprep.subr.mxu0 0.0
        %5403 = vmatpush2.msra.mxu0 0.0
        %5404 = vmatprep.subr.mxu0 0.0
        %5405 = vmatpush2.msra.mxu0 0.0
        %5406 = vmatprep.subr.mxu0 0.0
        %5407 = vmatpush2.msra.mxu0 0.0
        %5408 = vmatprep.subr.mxu0 0.0
        %5409 = vmatpush2.msra.mxu0 0.0
        %5410 = vmatprep.subr.mxu0 0.0
        %5411 = vmatpush2.msra.mxu0 0.0
        %5412 = vmatprep.subr.mxu0 0.0
        %5413 = vmatpush2.msra.mxu0 0.0
        %5414 = vmatprep.mubr.f32.mxu0 0.0
        %5415 = vmatmul.mubr.f32.gmra.mxu0 %v5342
        %v5416 = vpop.f32.mrf.mxu0
        %v5417 = vadd.f32 0.0, %v5416
        %v5418 = vpop.f32.mrf.mxu0
        %v5419 = vadd.f32 0.0, %v5418
        %5420 = vdwg.mxu0
        %v5421 = vadd.f32 %v5107, %v5417
        %v5422 = vadd.f32 %v5108, %v5419
        %5423 = vrot.lane.b32.xlu0 %v4793, 126
        %v5424 = vpop.permute.xlu0 %5423
        %5425 = vrot.lane.b32.xlu0 %v4795, 126
        %v5426 = vpop.permute.xlu0 %5425
        %5427 = vrot.lane.b32.xlu0 %v4798, 126
        %v5428 = vpop.permute.xlu0 %5427
        %5429 = vrot.lane.b32.xlu0 %v4800, 126
        %v5430 = vpop.permute.xlu0 %5429
        %5431 = vrot.lane.b32.xlu0 %v4803, 126
        %v5432 = vpop.permute.xlu0 %5431
        %5433 = vrot.lane.b32.xlu0 %v4805, 126
        %v5434 = vpop.permute.xlu0 %5433
        %5435 = vrot.lane.b32.xlu0 %v4808, 126
        %v5436 = vpop.permute.xlu0 %5435
        %5437 = vrot.lane.b32.xlu0 %v4810, 126
        %v5438 = vpop.permute.xlu0 %5437
        %v5447 = vcombine.low %v5424, %v5432
        %v5448 = vcombine.high %v5424, %v5432
        %v5450 = vunpack.c.l.s4 1983009808
        %v5451 = vunpack.c.0.s8 %v5450
        %v5452 = vlaneseq
        %v5453 = vshrl.u32 %v5452, 7
        %v5454 = vsub.s32 %v5451, %v5453
        %v5455 = vrot.slane %v5447, %v5454
        %v5457 = vunpack.c.l.s4 1983009808
        %v5458 = vunpack.c.0.s8 %v5457
        %v5459 = vlaneseq
        %v5460 = vshrl.u32 %v5459, 7
        %v5461 = vsub.s32 %v5458, %v5460
        %v5462 = vrot.slane %v5448, %v5461
        %v5463 = vcombine.low %v5428, %v5436
        %v5464 = vcombine.high %v5428, %v5436
        %v5466 = vunpack.c.l.s4 1983009808
        %v5467 = vunpack.c.0.s8 %v5466
        %v5468 = vlaneseq
        %v5469 = vshrl.u32 %v5468, 7
        %v5470 = vsub.s32 %v5467, %v5469
        %v5471 = vrot.slane %v5463, %v5470
        %v5473 = vunpack.c.l.s4 1983009808
        %v5474 = vunpack.c.0.s8 %v5473
        %v5475 = vlaneseq
        %v5476 = vshrl.u32 %v5475, 7
        %v5477 = vsub.s32 %v5474, %v5476
        %v5478 = vrot.slane %v5464, %v5477
        %v5479 = vcombine.low %v5455, %v5471
        %v5480 = vcombine.high %v5455, %v5471
        %v5482 = vunpack.c.l.s4 1934713408
        %v5483 = vunpack.c.0.s8 %v5482
        %v5484 = vlaneseq
        %v5485 = vshrl.u32 %v5484, 7
        %v5486 = vsub.s32 %v5483, %v5485
        %v5487 = vrot.slane %v5479, %v5486
        %v5489 = vunpack.c.l.s4 1934713408
        %v5490 = vunpack.c.0.s8 %v5489
        %v5491 = vlaneseq
        %v5492 = vshrl.u32 %v5491, 7
        %v5493 = vsub.s32 %v5490, %v5492
        %v5494 = vrot.slane %v5480, %v5493
        %v5495 = vcombine.low %v5462, %v5478
        %v5496 = vcombine.high %v5462, %v5478
        %v5498 = vunpack.c.l.s4 1934713408
        %v5499 = vunpack.c.0.s8 %v5498
        %v5500 = vlaneseq
        %v5501 = vshrl.u32 %v5500, 7
        %v5502 = vsub.s32 %v5499, %v5501
        %v5503 = vrot.slane %v5495, %v5502
        %v5505 = vunpack.c.l.s4 1934713408
        %v5506 = vunpack.c.0.s8 %v5505
        %v5507 = vlaneseq
        %v5508 = vshrl.u32 %v5507, 7
        %v5509 = vsub.s32 %v5506, %v5508
        %v5510 = vrot.slane %v5496, %v5509
        %v5511 = vcombine.high %v5487, 0.0
        %v5512 = vcombine.high %v5494, 0.0
        %v5513 = vcombine.high %v5503, 0.0
        %v5514 = vcombine.high %v5510, 0.0
        %v5515 = vcombine.low %v5426, %v5434
        %v5516 = vcombine.high %v5426, %v5434
        %v5518 = vunpack.c.l.s4 1983009808
        %v5519 = vunpack.c.0.s8 %v5518
        %v5520 = vlaneseq
        %v5521 = vshrl.u32 %v5520, 7
        %v5522 = vsub.s32 %v5519, %v5521
        %v5523 = vrot.slane %v5515, %v5522
        %v5525 = vunpack.c.l.s4 1983009808
        %v5526 = vunpack.c.0.s8 %v5525
        %v5527 = vlaneseq
        %v5528 = vshrl.u32 %v5527, 7
        %v5529 = vsub.s32 %v5526, %v5528
        %v5530 = vrot.slane %v5516, %v5529
        %v5531 = vcombine.low %v5430, %v5438
        %v5532 = vcombine.high %v5430, %v5438
        %v5534 = vunpack.c.l.s4 1983009808
        %v5535 = vunpack.c.0.s8 %v5534
        %v5536 = vlaneseq
        %v5537 = vshrl.u32 %v5536, 7
        %v5538 = vsub.s32 %v5535, %v5537
        %v5539 = vrot.slane %v5531, %v5538
        %v5541 = vunpack.c.l.s4 1983009808
        %v5542 = vunpack.c.0.s8 %v5541
        %v5543 = vlaneseq
        %v5544 = vshrl.u32 %v5543, 7
        %v5545 = vsub.s32 %v5542, %v5544
        %v5546 = vrot.slane %v5532, %v5545
        %v5547 = vcombine.low %v5523, %v5539
        %v5548 = vcombine.high %v5523, %v5539
        %v5550 = vunpack.c.l.s4 1934713408
        %v5551 = vunpack.c.0.s8 %v5550
        %v5552 = vlaneseq
        %v5553 = vshrl.u32 %v5552, 7
        %v5554 = vsub.s32 %v5551, %v5553
        %v5555 = vrot.slane %v5547, %v5554
        %v5557 = vunpack.c.l.s4 1934713408
        %v5558 = vunpack.c.0.s8 %v5557
        %v5559 = vlaneseq
        %v5560 = vshrl.u32 %v5559, 7
        %v5561 = vsub.s32 %v5558, %v5560
        %v5562 = vrot.slane %v5548, %v5561
        %v5563 = vcombine.low %v5530, %v5546
        %v5564 = vcombine.high %v5530, %v5546
        %v5566 = vunpack.c.l.s4 1934713408
        %v5567 = vunpack.c.0.s8 %v5566
        %v5568 = vlaneseq
        %v5569 = vshrl.u32 %v5568, 7
        %v5570 = vsub.s32 %v5567, %v5569
        %v5571 = vrot.slane %v5563, %v5570
        %v5573 = vunpack.c.l.s4 1934713408
        %v5574 = vunpack.c.0.s8 %v5573
        %v5575 = vlaneseq
        %v5576 = vshrl.u32 %v5575, 7
        %v5577 = vsub.s32 %v5574, %v5576
        %v5578 = vrot.slane %v5564, %v5577
        %v5579 = vcombine.high %v5555, 0.0
        %v5580 = vcombine.high %v5562, 0.0
        %v5581 = vcombine.high %v5571, 0.0
        %v5582 = vcombine.high %v5578, 0.0
        %5584 = vrot.lane.b32.xlu0 %v5511, 16
        %v5585 = vpop.permute.xlu0 %5584
        %5588 = vrot.lane.b32.xlu0 %v5494, 32
        %v5589 = vpop.permute.xlu0 %5588
        %5592 = vrot.lane.b32.xlu0 %v5512, 48
        %v5593 = vpop.permute.xlu0 %5592
        %5596 = vrot.lane.b32.xlu0 %v5503, 64
        %v5597 = vpop.permute.xlu0 %5596
        %5600 = vrot.lane.b32.xlu0 %v5513, 80
        %v5601 = vpop.permute.xlu0 %5600
        %5604 = vrot.lane.b32.xlu0 %v5510, 96
        %v5605 = vpop.permute.xlu0 %5604
        %5608 = vrot.lane.b32.xlu0 %v5514, 112
        %v5609 = vpop.permute.xlu0 %5608
        %5612 = vrot.lane.b32.xlu0 %v5579, 16
        %v5613 = vpop.permute.xlu0 %5612
        %5616 = vrot.lane.b32.xlu0 %v5562, 32
        %v5617 = vpop.permute.xlu0 %5616
        %5620 = vrot.lane.b32.xlu0 %v5580, 48
        %v5621 = vpop.permute.xlu0 %5620
        %5624 = vrot.lane.b32.xlu0 %v5571, 64
        %v5625 = vpop.permute.xlu0 %5624
        %5628 = vrot.lane.b32.xlu0 %v5581, 80
        %v5629 = vpop.permute.xlu0 %5628
        %5632 = vrot.lane.b32.xlu0 %v5578, 96
        %v5633 = vpop.permute.xlu0 %5632
        %5636 = vrot.lane.b32.xlu0 %v5582, 112
        %v5637 = vpop.permute.xlu0 %5636
        %v5639 = vsel %vm825, %v5487, %v5585
        %v5640 = vsel %vm827, %v5639, %v5589
        %v5641 = vsel %vm829, %v5640, %v5593
        %v5642 = vsel %vm831, %v5641, %v5597
        %v5643 = vsel %vm833, %v5642, %v5601
        %v5644 = vsel %vm835, %v5643, %v5605
        %v5645 = vsel %vm837, %v5644, %v5609
        %v5646 = vsel %vm825, %v5555, %v5613
        %v5647 = vsel %vm827, %v5646, %v5617
        %v5648 = vsel %vm829, %v5647, %v5621
        %v5649 = vsel %vm831, %v5648, %v5625
        %v5650 = vsel %vm833, %v5649, %v5629
        %v5651 = vsel %vm835, %v5650, %v5633
        %v5652 = vsel %vm837, %v5651, %v5637
        %s5653 = scalar_lea.vmem %s3, 20
        %v5654 = vld [vmem:[%s5653] sm:$0xf]
        %v5656 = vsel %vm1087, %v5654, 0
        %v5659 = vsel %vm1091, %v5645, 0
        %v5662 = vsel %vm1091, %v5652, 0
        %5664 = vmatprep.subr.mxu0 0.0
        %5665 = vmatpush1.msra.mxu0 0.0
        %5666 = vmatprep.subr.mxu0 0.0
        %5667 = vmatpush1.msra.mxu0 0.0
        %5668 = vmatprep.subr.mxu0 0.0
        %5669 = vmatpush1.msra.mxu0 0.0
        %5670 = vmatprep.subr.mxu0 0.0
        %5671 = vmatpush1.msra.mxu0 0.0
        %5672 = vmatprep.subr.mxu0 0.0
        %5673 = vmatpush1.msra.mxu0 0.0
        %5674 = vmatprep.subr.mxu0 0.0
        %5675 = vmatpush1.msra.mxu0 0.0
        %5676 = vmatprep.subr.mxu0 0.0
        %5677 = vmatpush1.msra.mxu0 0.0
        %5678 = vmatprep.subr.mxu0 0.0
        %5679 = vmatpush1.msra.mxu0 0.0
        %5680 = vmatprep.subr.mxu0 0.0
        %5681 = vmatpush1.msra.mxu0 0.0
        %5682 = vmatprep.subr.mxu0 0.0
        %5683 = vmatpush1.msra.mxu0 0.0
        %5684 = vmatprep.subr.mxu0 0.0
        %5685 = vmatpush1.msra.mxu0 0.0
        %5686 = vmatprep.subr.mxu0 0.0
        %5687 = vmatpush1.msra.mxu0 0.0
        %5688 = vmatprep.subr.mxu0 0.0
        %5689 = vmatpush1.msra.mxu0 0.0
        %5690 = vmatprep.subr.mxu0 0.0
        %5691 = vmatpush1.msra.mxu0 0.0
        %5692 = vmatprep.subr.mxu0 0.0
        %5693 = vmatpush1.msra.mxu0 0.0
        %5694 = vmatprep.subr.mxu0 %v5662
        %5695 = vmatpush1.msra.mxu0 %v5659
        %5696 = vmatprep.subr.mxu0 0.0
        %5697 = vmatpush2.msra.mxu0 0.0
        %5698 = vmatprep.subr.mxu0 0.0
        %5699 = vmatpush2.msra.mxu0 0.0
        %5700 = vmatprep.subr.mxu0 0.0
        %5701 = vmatpush2.msra.mxu0 0.0
        %5702 = vmatprep.subr.mxu0 0.0
        %5703 = vmatpush2.msra.mxu0 0.0
        %5704 = vmatprep.subr.mxu0 0.0
        %5705 = vmatpush2.msra.mxu0 0.0
        %5706 = vmatprep.subr.mxu0 0.0
        %5707 = vmatpush2.msra.mxu0 0.0
        %5708 = vmatprep.subr.mxu0 0.0
        %5709 = vmatpush2.msra.mxu0 0.0
        %5710 = vmatprep.subr.mxu0 0.0
        %5711 = vmatpush2.msra.mxu0 0.0
        %5712 = vmatprep.subr.mxu0 0.0
        %5713 = vmatpush2.msra.mxu0 0.0
        %5714 = vmatprep.subr.mxu0 0.0
        %5715 = vmatpush2.msra.mxu0 0.0
        %5716 = vmatprep.subr.mxu0 0.0
        %5717 = vmatpush2.msra.mxu0 0.0
        %5718 = vmatprep.subr.mxu0 0.0
        %5719 = vmatpush2.msra.mxu0 0.0
        %5720 = vmatprep.subr.mxu0 0.0
        %5721 = vmatpush2.msra.mxu0 0.0
        %5722 = vmatprep.subr.mxu0 0.0
        %5723 = vmatpush2.msra.mxu0 0.0
        %5724 = vmatprep.subr.mxu0 0.0
        %5725 = vmatpush2.msra.mxu0 0.0
        %5726 = vmatprep.subr.mxu0 0.0
        %5727 = vmatpush2.msra.mxu0 0.0
        %5728 = vmatprep.mubr.f32.mxu0 0.0
        %5729 = vmatmul.mubr.f32.gmra.mxu0 %v5656
        %v5730 = vpop.f32.mrf.mxu0
        %v5731 = vadd.f32 0.0, %v5730
        %v5732 = vpop.f32.mrf.mxu0
        %v5733 = vadd.f32 0.0, %v5732
        %5734 = vdwg.mxu0
        %v5735 = vadd.f32 %v5421, %v5731
        %v5736 = vadd.f32 %v5422, %v5733
        %v5737 = vrot.slane %v3854, 2
        %v5738 = vrot.slane %v3855, 2
        %v5739 = vsel %vm2514, %v5737, %v5738
        %v5740 = vrot.slane %v3856, 2
        %v5741 = vsel %vm2514, %v5738, %v5740
        %v5742 = vrot.slane %v3857, 2
        %v5743 = vrot.slane %v3858, 2
        %v5744 = vsel %vm2514, %v5742, %v5743
        %v5745 = vrot.slane %v3859, 2
        %v5746 = vsel %vm2514, %v5743, %v5745
        %v5747 = vrot.slane %v3860, 2
        %v5748 = vrot.slane %v3861, 2
        %v5749 = vsel %vm2514, %v5747, %v5748
        %v5750 = vrot.slane %v3862, 2
        %v5751 = vsel %vm2514, %v5748, %v5750
        %v5752 = vrot.slane %v3863, 2
        %v5753 = vrot.slane %v3864, 2
        %v5754 = vsel %vm2514, %v5752, %v5753
        %v5755 = vrot.slane %v3865, 2
        %v5756 = vsel %vm2514, %v5753, %v5755
        %v5765 = vcombine.low %v5739, %v5749
        %v5766 = vcombine.high %v5739, %v5749
        %v5768 = vunpack.c.l.s4 1983009808
        %v5769 = vunpack.c.0.s8 %v5768
        %v5770 = vlaneseq
        %v5771 = vshrl.u32 %v5770, 7
        %v5772 = vsub.s32 %v5769, %v5771
        %v5773 = vrot.slane %v5765, %v5772
        %v5775 = vunpack.c.l.s4 1983009808
        %v5776 = vunpack.c.0.s8 %v5775
        %v5777 = vlaneseq
        %v5778 = vshrl.u32 %v5777, 7
        %v5779 = vsub.s32 %v5776, %v5778
        %v5780 = vrot.slane %v5766, %v5779
        %v5781 = vcombine.low %v5744, %v5754
        %v5782 = vcombine.high %v5744, %v5754
        %v5784 = vunpack.c.l.s4 1983009808
        %v5785 = vunpack.c.0.s8 %v5784
        %v5786 = vlaneseq
        %v5787 = vshrl.u32 %v5786, 7
        %v5788 = vsub.s32 %v5785, %v5787
        %v5789 = vrot.slane %v5781, %v5788
        %v5791 = vunpack.c.l.s4 1983009808
        %v5792 = vunpack.c.0.s8 %v5791
        %v5793 = vlaneseq
        %v5794 = vshrl.u32 %v5793, 7
        %v5795 = vsub.s32 %v5792, %v5794
        %v5796 = vrot.slane %v5782, %v5795
        %v5797 = vcombine.low %v5773, %v5789
        %v5798 = vcombine.high %v5773, %v5789
        %v5800 = vunpack.c.l.s4 1934713408
        %v5801 = vunpack.c.0.s8 %v5800
        %v5802 = vlaneseq
        %v5803 = vshrl.u32 %v5802, 7
        %v5804 = vsub.s32 %v5801, %v5803
        %v5805 = vrot.slane %v5797, %v5804
        %v5807 = vunpack.c.l.s4 1934713408
        %v5808 = vunpack.c.0.s8 %v5807
        %v5809 = vlaneseq
        %v5810 = vshrl.u32 %v5809, 7
        %v5811 = vsub.s32 %v5808, %v5810
        %v5812 = vrot.slane %v5798, %v5811
        %v5813 = vcombine.low %v5780, %v5796
        %v5814 = vcombine.high %v5780, %v5796
        %v5816 = vunpack.c.l.s4 1934713408
        %v5817 = vunpack.c.0.s8 %v5816
        %v5818 = vlaneseq
        %v5819 = vshrl.u32 %v5818, 7
        %v5820 = vsub.s32 %v5817, %v5819
        %v5821 = vrot.slane %v5813, %v5820
        %v5823 = vunpack.c.l.s4 1934713408
        %v5824 = vunpack.c.0.s8 %v5823
        %v5825 = vlaneseq
        %v5826 = vshrl.u32 %v5825, 7
        %v5827 = vsub.s32 %v5824, %v5826
        %v5828 = vrot.slane %v5814, %v5827
        %v5829 = vcombine.high %v5805, 0.0
        %v5830 = vcombine.high %v5812, 0.0
        %v5831 = vcombine.high %v5821, 0.0
        %v5832 = vcombine.high %v5828, 0.0
        %v5833 = vcombine.low %v5741, %v5751
        %v5834 = vcombine.high %v5741, %v5751
        %v5836 = vunpack.c.l.s4 1983009808
        %v5837 = vunpack.c.0.s8 %v5836
        %v5838 = vlaneseq
        %v5839 = vshrl.u32 %v5838, 7
        %v5840 = vsub.s32 %v5837, %v5839
        %v5841 = vrot.slane %v5833, %v5840
        %v5843 = vunpack.c.l.s4 1983009808
        %v5844 = vunpack.c.0.s8 %v5843
        %v5845 = vlaneseq
        %v5846 = vshrl.u32 %v5845, 7
        %v5847 = vsub.s32 %v5844, %v5846
        %v5848 = vrot.slane %v5834, %v5847
        %v5849 = vcombine.low %v5746, %v5756
        %v5850 = vcombine.high %v5746, %v5756
        %v5852 = vunpack.c.l.s4 1983009808
        %v5853 = vunpack.c.0.s8 %v5852
        %v5854 = vlaneseq
        %v5855 = vshrl.u32 %v5854, 7
        %v5856 = vsub.s32 %v5853, %v5855
        %v5857 = vrot.slane %v5849, %v5856
        %v5859 = vunpack.c.l.s4 1983009808
        %v5860 = vunpack.c.0.s8 %v5859
        %v5861 = vlaneseq
        %v5862 = vshrl.u32 %v5861, 7
        %v5863 = vsub.s32 %v5860, %v5862
        %v5864 = vrot.slane %v5850, %v5863
        %v5865 = vcombine.low %v5841, %v5857
        %v5866 = vcombine.high %v5841, %v5857
        %v5868 = vunpack.c.l.s4 1934713408
        %v5869 = vunpack.c.0.s8 %v5868
        %v5870 = vlaneseq
        %v5871 = vshrl.u32 %v5870, 7
        %v5872 = vsub.s32 %v5869, %v5871
        %v5873 = vrot.slane %v5865, %v5872
        %v5875 = vunpack.c.l.s4 1934713408
        %v5876 = vunpack.c.0.s8 %v5875
        %v5877 = vlaneseq
        %v5878 = vshrl.u32 %v5877, 7
        %v5879 = vsub.s32 %v5876, %v5878
        %v5880 = vrot.slane %v5866, %v5879
        %v5881 = vcombine.low %v5848, %v5864
        %v5882 = vcombine.high %v5848, %v5864
        %v5884 = vunpack.c.l.s4 1934713408
        %v5885 = vunpack.c.0.s8 %v5884
        %v5886 = vlaneseq
        %v5887 = vshrl.u32 %v5886, 7
        %v5888 = vsub.s32 %v5885, %v5887
        %v5889 = vrot.slane %v5881, %v5888
        %v5891 = vunpack.c.l.s4 1934713408
        %v5892 = vunpack.c.0.s8 %v5891
        %v5893 = vlaneseq
        %v5894 = vshrl.u32 %v5893, 7
        %v5895 = vsub.s32 %v5892, %v5894
        %v5896 = vrot.slane %v5882, %v5895
        %v5897 = vcombine.high %v5873, 0.0
        %v5898 = vcombine.high %v5880, 0.0
        %v5899 = vcombine.high %v5889, 0.0
        %v5900 = vcombine.high %v5896, 0.0
        %5902 = vrot.lane.b32.xlu0 %v5829, 16
        %v5903 = vpop.permute.xlu0 %5902
        %5906 = vrot.lane.b32.xlu0 %v5812, 32
        %v5907 = vpop.permute.xlu0 %5906
        %5910 = vrot.lane.b32.xlu0 %v5830, 48
        %v5911 = vpop.permute.xlu0 %5910
        %5914 = vrot.lane.b32.xlu0 %v5821, 64
        %v5915 = vpop.permute.xlu0 %5914
        %5918 = vrot.lane.b32.xlu0 %v5831, 80
        %v5919 = vpop.permute.xlu0 %5918
        %5922 = vrot.lane.b32.xlu0 %v5828, 96
        %v5923 = vpop.permute.xlu0 %5922
        %5926 = vrot.lane.b32.xlu0 %v5832, 112
        %v5927 = vpop.permute.xlu0 %5926
        %5930 = vrot.lane.b32.xlu0 %v5897, 16
        %v5931 = vpop.permute.xlu0 %5930
        %5934 = vrot.lane.b32.xlu0 %v5880, 32
        %v5935 = vpop.permute.xlu0 %5934
        %5938 = vrot.lane.b32.xlu0 %v5898, 48
        %v5939 = vpop.permute.xlu0 %5938
        %5942 = vrot.lane.b32.xlu0 %v5889, 64
        %v5943 = vpop.permute.xlu0 %5942
        %5946 = vrot.lane.b32.xlu0 %v5899, 80
        %v5947 = vpop.permute.xlu0 %5946
        %5950 = vrot.lane.b32.xlu0 %v5896, 96
        %v5951 = vpop.permute.xlu0 %5950
        %5954 = vrot.lane.b32.xlu0 %v5900, 112
        %v5955 = vpop.permute.xlu0 %5954
        %v5957 = vsel %vm825, %v5805, %v5903
        %v5958 = vsel %vm827, %v5957, %v5907
        %v5959 = vsel %vm829, %v5958, %v5911
        %v5960 = vsel %vm831, %v5959, %v5915
        %v5961 = vsel %vm833, %v5960, %v5919
        %v5962 = vsel %vm835, %v5961, %v5923
        %v5963 = vsel %vm837, %v5962, %v5927
        %v5964 = vsel %vm825, %v5873, %v5931
        %v5965 = vsel %vm827, %v5964, %v5935
        %v5966 = vsel %vm829, %v5965, %v5939
        %v5967 = vsel %vm831, %v5966, %v5943
        %v5968 = vsel %vm833, %v5967, %v5947
        %v5969 = vsel %vm835, %v5968, %v5951
        %v5970 = vsel %vm837, %v5969, %v5955
        %s5971 = scalar_lea.vmem %s3, 24
        %v5972 = vld [vmem:[%s5971] sm:$0xf]
        %v5974 = vsel %vm1087, %v5972, 0
        %v5977 = vsel %vm1091, %v5963, 0
        %v5980 = vsel %vm1091, %v5970, 0
        %5982 = vmatprep.subr.mxu0 0.0
        %5983 = vmatpush1.msra.mxu0 0.0
        %5984 = vmatprep.subr.mxu0 0.0
        %5985 = vmatpush1.msra.mxu0 0.0
        %5986 = vmatprep.subr.mxu0 0.0
        %5987 = vmatpush1.msra.mxu0 0.0
        %5988 = vmatprep.subr.mxu0 0.0
        %5989 = vmatpush1.msra.mxu0 0.0
        %5990 = vmatprep.subr.mxu0 0.0
        %5991 = vmatpush1.msra.mxu0 0.0
        %5992 = vmatprep.subr.mxu0 0.0
        %5993 = vmatpush1.msra.mxu0 0.0
        %5994 = vmatprep.subr.mxu0 0.0
        %5995 = vmatpush1.msra.mxu0 0.0
        %5996 = vmatprep.subr.mxu0 0.0
        %5997 = vmatpush1.msra.mxu0 0.0
        %5998 = vmatprep.subr.mxu0 0.0
        %5999 = vmatpush1.msra.mxu0 0.0
        %6000 = vmatprep.subr.mxu0 0.0
        %6001 = vmatpush1.msra.mxu0 0.0
        %6002 = vmatprep.subr.mxu0 0.0
        %6003 = vmatpush1.msra.mxu0 0.0
        %6004 = vmatprep.subr.mxu0 0.0
        %6005 = vmatpush1.msra.mxu0 0.0
        %6006 = vmatprep.subr.mxu0 0.0
        %6007 = vmatpush1.msra.mxu0 0.0
        %6008 = vmatprep.subr.mxu0 0.0
        %6009 = vmatpush1.msra.mxu0 0.0
        %6010 = vmatprep.subr.mxu0 0.0
        %6011 = vmatpush1.msra.mxu0 0.0
        %6012 = vmatprep.subr.mxu0 %v5980
        %6013 = vmatpush1.msra.mxu0 %v5977
        %6014 = vmatprep.subr.mxu0 0.0
        %6015 = vmatpush2.msra.mxu0 0.0
        %6016 = vmatprep.subr.mxu0 0.0
        %6017 = vmatpush2.msra.mxu0 0.0
        %6018 = vmatprep.subr.mxu0 0.0
        %6019 = vmatpush2.msra.mxu0 0.0
        %6020 = vmatprep.subr.mxu0 0.0
        %6021 = vmatpush2.msra.mxu0 0.0
        %6022 = vmatprep.subr.mxu0 0.0
        %6023 = vmatpush2.msra.mxu0 0.0
        %6024 = vmatprep.subr.mxu0 0.0
        %6025 = vmatpush2.msra.mxu0 0.0
        %6026 = vmatprep.subr.mxu0 0.0
        %6027 = vmatpush2.msra.mxu0 0.0
        %6028 = vmatprep.subr.mxu0 0.0
        %6029 = vmatpush2.msra.mxu0 0.0
        %6030 = vmatprep.subr.mxu0 0.0
        %6031 = vmatpush2.msra.mxu0 0.0
        %6032 = vmatprep.subr.mxu0 0.0
        %6033 = vmatpush2.msra.mxu0 0.0
        %6034 = vmatprep.subr.mxu0 0.0
        %6035 = vmatpush2.msra.mxu0 0.0
        %6036 = vmatprep.subr.mxu0 0.0
        %6037 = vmatpush2.msra.mxu0 0.0
        %6038 = vmatprep.subr.mxu0 0.0
        %6039 = vmatpush2.msra.mxu0 0.0
        %6040 = vmatprep.subr.mxu0 0.0
        %6041 = vmatpush2.msra.mxu0 0.0
        %6042 = vmatprep.subr.mxu0 0.0
        %6043 = vmatpush2.msra.mxu0 0.0
        %6044 = vmatprep.subr.mxu0 0.0
        %6045 = vmatpush2.msra.mxu0 0.0
        %6046 = vmatprep.mubr.f32.mxu0 0.0
        %6047 = vmatmul.mubr.f32.gmra.mxu0 %v5974
        %v6048 = vpop.f32.mrf.mxu0
        %v6049 = vadd.f32 0.0, %v6048
        %v6050 = vpop.f32.mrf.mxu0
        %v6051 = vadd.f32 0.0, %v6050
        %6052 = vdwg.mxu0
        %v6053 = vadd.f32 %v5735, %v6049
        %v6054 = vadd.f32 %v5736, %v6051
        %6055 = vrot.lane.b32.xlu0 %v5739, 127
        %v6056 = vpop.permute.xlu0 %6055
        %6057 = vrot.lane.b32.xlu0 %v5741, 127
        %v6058 = vpop.permute.xlu0 %6057
        %6059 = vrot.lane.b32.xlu0 %v5744, 127
        %v6060 = vpop.permute.xlu0 %6059
        %6061 = vrot.lane.b32.xlu0 %v5746, 127
        %v6062 = vpop.permute.xlu0 %6061
        %6063 = vrot.lane.b32.xlu0 %v5749, 127
        %v6064 = vpop.permute.xlu0 %6063
        %6065 = vrot.lane.b32.xlu0 %v5751, 127
        %v6066 = vpop.permute.xlu0 %6065
        %6067 = vrot.lane.b32.xlu0 %v5754, 127
        %v6068 = vpop.permute.xlu0 %6067
        %6069 = vrot.lane.b32.xlu0 %v5756, 127
        %v6070 = vpop.permute.xlu0 %6069
        %v6079 = vcombine.low %v6056, %v6064
        %v6080 = vcombine.high %v6056, %v6064
        %v6082 = vunpack.c.l.s4 1983009808
        %v6083 = vunpack.c.0.s8 %v6082
        %v6084 = vlaneseq
        %v6085 = vshrl.u32 %v6084, 7
        %v6086 = vsub.s32 %v6083, %v6085
        %v6087 = vrot.slane %v6079, %v6086
        %v6089 = vunpack.c.l.s4 1983009808
        %v6090 = vunpack.c.0.s8 %v6089
        %v6091 = vlaneseq
        %v6092 = vshrl.u32 %v6091, 7
        %v6093 = vsub.s32 %v6090, %v6092
        %v6094 = vrot.slane %v6080, %v6093
        %v6095 = vcombine.low %v6060, %v6068
        %v6096 = vcombine.high %v6060, %v6068
        %v6098 = vunpack.c.l.s4 1983009808
        %v6099 = vunpack.c.0.s8 %v6098
        %v6100 = vlaneseq
        %v6101 = vshrl.u32 %v6100, 7
        %v6102 = vsub.s32 %v6099, %v6101
        %v6103 = vrot.slane %v6095, %v6102
        %v6105 = vunpack.c.l.s4 1983009808
        %v6106 = vunpack.c.0.s8 %v6105
        %v6107 = vlaneseq
        %v6108 = vshrl.u32 %v6107, 7
        %v6109 = vsub.s32 %v6106, %v6108
        %v6110 = vrot.slane %v6096, %v6109
        %v6111 = vcombine.low %v6087, %v6103
        %v6112 = vcombine.high %v6087, %v6103
        %v6114 = vunpack.c.l.s4 1934713408
        %v6115 = vunpack.c.0.s8 %v6114
        %v6116 = vlaneseq
        %v6117 = vshrl.u32 %v6116, 7
        %v6118 = vsub.s32 %v6115, %v6117
        %v6119 = vrot.slane %v6111, %v6118
        %v6121 = vunpack.c.l.s4 1934713408
        %v6122 = vunpack.c.0.s8 %v6121
        %v6123 = vlaneseq
        %v6124 = vshrl.u32 %v6123, 7
        %v6125 = vsub.s32 %v6122, %v6124
        %v6126 = vrot.slane %v6112, %v6125
        %v6127 = vcombine.low %v6094, %v6110
        %v6128 = vcombine.high %v6094, %v6110
        %v6130 = vunpack.c.l.s4 1934713408
        %v6131 = vunpack.c.0.s8 %v6130
        %v6132 = vlaneseq
        %v6133 = vshrl.u32 %v6132, 7
        %v6134 = vsub.s32 %v6131, %v6133
        %v6135 = vrot.slane %v6127, %v6134
        %v6137 = vunpack.c.l.s4 1934713408
        %v6138 = vunpack.c.0.s8 %v6137
        %v6139 = vlaneseq
        %v6140 = vshrl.u32 %v6139, 7
        %v6141 = vsub.s32 %v6138, %v6140
        %v6142 = vrot.slane %v6128, %v6141
        %v6143 = vcombine.high %v6119, 0.0
        %v6144 = vcombine.high %v6126, 0.0
        %v6145 = vcombine.high %v6135, 0.0
        %v6146 = vcombine.high %v6142, 0.0
        %v6147 = vcombine.low %v6058, %v6066
        %v6148 = vcombine.high %v6058, %v6066
        %v6150 = vunpack.c.l.s4 1983009808
        %v6151 = vunpack.c.0.s8 %v6150
        %v6152 = vlaneseq
        %v6153 = vshrl.u32 %v6152, 7
        %v6154 = vsub.s32 %v6151, %v6153
        %v6155 = vrot.slane %v6147, %v6154
        %v6157 = vunpack.c.l.s4 1983009808
        %v6158 = vunpack.c.0.s8 %v6157
        %v6159 = vlaneseq
        %v6160 = vshrl.u32 %v6159, 7
        %v6161 = vsub.s32 %v6158, %v6160
        %v6162 = vrot.slane %v6148, %v6161
        %v6163 = vcombine.low %v6062, %v6070
        %v6164 = vcombine.high %v6062, %v6070
        %v6166 = vunpack.c.l.s4 1983009808
        %v6167 = vunpack.c.0.s8 %v6166
        %v6168 = vlaneseq
        %v6169 = vshrl.u32 %v6168, 7
        %v6170 = vsub.s32 %v6167, %v6169
        %v6171 = vrot.slane %v6163, %v6170
        %v6173 = vunpack.c.l.s4 1983009808
        %v6174 = vunpack.c.0.s8 %v6173
        %v6175 = vlaneseq
        %v6176 = vshrl.u32 %v6175, 7
        %v6177 = vsub.s32 %v6174, %v6176
        %v6178 = vrot.slane %v6164, %v6177
        %v6179 = vcombine.low %v6155, %v6171
        %v6180 = vcombine.high %v6155, %v6171
        %v6182 = vunpack.c.l.s4 1934713408
        %v6183 = vunpack.c.0.s8 %v6182
        %v6184 = vlaneseq
        %v6185 = vshrl.u32 %v6184, 7
        %v6186 = vsub.s32 %v6183, %v6185
        %v6187 = vrot.slane %v6179, %v6186
        %v6189 = vunpack.c.l.s4 1934713408
        %v6190 = vunpack.c.0.s8 %v6189
        %v6191 = vlaneseq
        %v6192 = vshrl.u32 %v6191, 7
        %v6193 = vsub.s32 %v6190, %v6192
        %v6194 = vrot.slane %v6180, %v6193
        %v6195 = vcombine.low %v6162, %v6178
        %v6196 = vcombine.high %v6162, %v6178
        %v6198 = vunpack.c.l.s4 1934713408
        %v6199 = vunpack.c.0.s8 %v6198
        %v6200 = vlaneseq
        %v6201 = vshrl.u32 %v6200, 7
        %v6202 = vsub.s32 %v6199, %v6201
        %v6203 = vrot.slane %v6195, %v6202
        %v6205 = vunpack.c.l.s4 1934713408
        %v6206 = vunpack.c.0.s8 %v6205
        %v6207 = vlaneseq
        %v6208 = vshrl.u32 %v6207, 7
        %v6209 = vsub.s32 %v6206, %v6208
        %v6210 = vrot.slane %v6196, %v6209
        %v6211 = vcombine.high %v6187, 0.0
        %v6212 = vcombine.high %v6194, 0.0
        %v6213 = vcombine.high %v6203, 0.0
        %v6214 = vcombine.high %v6210, 0.0
        %6216 = vrot.lane.b32.xlu0 %v6143, 16
        %v6217 = vpop.permute.xlu0 %6216
        %6220 = vrot.lane.b32.xlu0 %v6126, 32
        %v6221 = vpop.permute.xlu0 %6220
        %6224 = vrot.lane.b32.xlu0 %v6144, 48
        %v6225 = vpop.permute.xlu0 %6224
        %6228 = vrot.lane.b32.xlu0 %v6135, 64
        %v6229 = vpop.permute.xlu0 %6228
        %6232 = vrot.lane.b32.xlu0 %v6145, 80
        %v6233 = vpop.permute.xlu0 %6232
        %6236 = vrot.lane.b32.xlu0 %v6142, 96
        %v6237 = vpop.permute.xlu0 %6236
        %6240 = vrot.lane.b32.xlu0 %v6146, 112
        %v6241 = vpop.permute.xlu0 %6240
        %6244 = vrot.lane.b32.xlu0 %v6211, 16
        %v6245 = vpop.permute.xlu0 %6244
        %6248 = vrot.lane.b32.xlu0 %v6194, 32
        %v6249 = vpop.permute.xlu0 %6248
        %6252 = vrot.lane.b32.xlu0 %v6212, 48
        %v6253 = vpop.permute.xlu0 %6252
        %6256 = vrot.lane.b32.xlu0 %v6203, 64
        %v6257 = vpop.permute.xlu0 %6256
        %6260 = vrot.lane.b32.xlu0 %v6213, 80
        %v6261 = vpop.permute.xlu0 %6260
        %6264 = vrot.lane.b32.xlu0 %v6210, 96
        %v6265 = vpop.permute.xlu0 %6264
        %6268 = vrot.lane.b32.xlu0 %v6214, 112
        %v6269 = vpop.permute.xlu0 %6268
        %v6271 = vsel %vm825, %v6119, %v6217
        %v6272 = vsel %vm827, %v6271, %v6221
        %v6273 = vsel %vm829, %v6272, %v6225
        %v6274 = vsel %vm831, %v6273, %v6229
        %v6275 = vsel %vm833, %v6274, %v6233
        %v6276 = vsel %vm835, %v6275, %v6237
        %v6277 = vsel %vm837, %v6276, %v6241
        %v6278 = vsel %vm825, %v6187, %v6245
        %v6279 = vsel %vm827, %v6278, %v6249
        %v6280 = vsel %vm829, %v6279, %v6253
        %v6281 = vsel %vm831, %v6280, %v6257
        %v6282 = vsel %vm833, %v6281, %v6261
        %v6283 = vsel %vm835, %v6282, %v6265
        %v6284 = vsel %vm837, %v6283, %v6269
        %s6285 = scalar_lea.vmem %s3, 28
        %v6286 = vld [vmem:[%s6285] sm:$0xf]
        %v6288 = vsel %vm1087, %v6286, 0
        %v6291 = vsel %vm1091, %v6277, 0
        %v6294 = vsel %vm1091, %v6284, 0
        %6296 = vmatprep.subr.mxu0 0.0
        %6297 = vmatpush1.msra.mxu0 0.0
        %6298 = vmatprep.subr.mxu0 0.0
        %6299 = vmatpush1.msra.mxu0 0.0
        %6300 = vmatprep.subr.mxu0 0.0
        %6301 = vmatpush1.msra.mxu0 0.0
        %6302 = vmatprep.subr.mxu0 0.0
        %6303 = vmatpush1.msra.mxu0 0.0
        %6304 = vmatprep.subr.mxu0 0.0
        %6305 = vmatpush1.msra.mxu0 0.0
        %6306 = vmatprep.subr.mxu0 0.0
        %6307 = vmatpush1.msra.mxu0 0.0
        %6308 = vmatprep.subr.mxu0 0.0
        %6309 = vmatpush1.msra.mxu0 0.0
        %6310 = vmatprep.subr.mxu0 0.0
        %6311 = vmatpush1.msra.mxu0 0.0
        %6312 = vmatprep.subr.mxu0 0.0
        %6313 = vmatpush1.msra.mxu0 0.0
        %6314 = vmatprep.subr.mxu0 0.0
        %6315 = vmatpush1.msra.mxu0 0.0
        %6316 = vmatprep.subr.mxu0 0.0
        %6317 = vmatpush1.msra.mxu0 0.0
        %6318 = vmatprep.subr.mxu0 0.0
        %6319 = vmatpush1.msra.mxu0 0.0
        %6320 = vmatprep.subr.mxu0 0.0
        %6321 = vmatpush1.msra.mxu0 0.0
        %6322 = vmatprep.subr.mxu0 0.0
        %6323 = vmatpush1.msra.mxu0 0.0
        %6324 = vmatprep.subr.mxu0 0.0
        %6325 = vmatpush1.msra.mxu0 0.0
        %6326 = vmatprep.subr.mxu0 %v6294
        %6327 = vmatpush1.msra.mxu0 %v6291
        %6328 = vmatprep.subr.mxu0 0.0
        %6329 = vmatpush2.msra.mxu0 0.0
        %6330 = vmatprep.subr.mxu0 0.0
        %6331 = vmatpush2.msra.mxu0 0.0
        %6332 = vmatprep.subr.mxu0 0.0
        %6333 = vmatpush2.msra.mxu0 0.0
        %6334 = vmatprep.subr.mxu0 0.0
        %6335 = vmatpush2.msra.mxu0 0.0
        %6336 = vmatprep.subr.mxu0 0.0
        %6337 = vmatpush2.msra.mxu0 0.0
        %6338 = vmatprep.subr.mxu0 0.0
        %6339 = vmatpush2.msra.mxu0 0.0
        %6340 = vmatprep.subr.mxu0 0.0
        %6341 = vmatpush2.msra.mxu0 0.0
        %6342 = vmatprep.subr.mxu0 0.0
        %6343 = vmatpush2.msra.mxu0 0.0
        %6344 = vmatprep.subr.mxu0 0.0
        %6345 = vmatpush2.msra.mxu0 0.0
        %6346 = vmatprep.subr.mxu0 0.0
        %6347 = vmatpush2.msra.mxu0 0.0
        %6348 = vmatprep.subr.mxu0 0.0
        %6349 = vmatpush2.msra.mxu0 0.0
        %6350 = vmatprep.subr.mxu0 0.0
        %6351 = vmatpush2.msra.mxu0 0.0
        %6352 = vmatprep.subr.mxu0 0.0
        %6353 = vmatpush2.msra.mxu0 0.0
        %6354 = vmatprep.subr.mxu0 0.0
        %6355 = vmatpush2.msra.mxu0 0.0
        %6356 = vmatprep.subr.mxu0 0.0
        %6357 = vmatpush2.msra.mxu0 0.0
        %6358 = vmatprep.subr.mxu0 0.0
        %6359 = vmatpush2.msra.mxu0 0.0
        %6360 = vmatprep.mubr.f32.mxu0 0.0
        %6361 = vmatmul.mubr.f32.gmra.mxu0 %v6288
        %v6362 = vpop.f32.mrf.mxu0
        %v6363 = vadd.f32 0.0, %v6362
        %v6364 = vpop.f32.mrf.mxu0
        %v6365 = vadd.f32 0.0, %v6364
        %6366 = vdwg.mxu0
        %v6367 = vadd.f32 %v6053, %v6363
        %v6368 = vadd.f32 %v6054, %v6365
        %6369 = vrot.lane.b32.xlu0 %v5739, 126
        %v6370 = vpop.permute.xlu0 %6369
        %6371 = vrot.lane.b32.xlu0 %v5741, 126
        %v6372 = vpop.permute.xlu0 %6371
        %6373 = vrot.lane.b32.xlu0 %v5744, 126
        %v6374 = vpop.permute.xlu0 %6373
        %6375 = vrot.lane.b32.xlu0 %v5746, 126
        %v6376 = vpop.permute.xlu0 %6375
        %6377 = vrot.lane.b32.xlu0 %v5749, 126
        %v6378 = vpop.permute.xlu0 %6377
        %6379 = vrot.lane.b32.xlu0 %v5751, 126
        %v6380 = vpop.permute.xlu0 %6379
        %6381 = vrot.lane.b32.xlu0 %v5754, 126
        %v6382 = vpop.permute.xlu0 %6381
        %6383 = vrot.lane.b32.xlu0 %v5756, 126
        %v6384 = vpop.permute.xlu0 %6383
        %v6393 = vcombine.low %v6370, %v6378
        %v6394 = vcombine.high %v6370, %v6378
        %v6396 = vunpack.c.l.s4 1983009808
        %v6397 = vunpack.c.0.s8 %v6396
        %v6398 = vlaneseq
        %v6399 = vshrl.u32 %v6398, 7
        %v6400 = vsub.s32 %v6397, %v6399
        %v6401 = vrot.slane %v6393, %v6400
        %v6403 = vunpack.c.l.s4 1983009808
        %v6404 = vunpack.c.0.s8 %v6403
        %v6405 = vlaneseq
        %v6406 = vshrl.u32 %v6405, 7
        %v6407 = vsub.s32 %v6404, %v6406
        %v6408 = vrot.slane %v6394, %v6407
        %v6409 = vcombine.low %v6374, %v6382
        %v6410 = vcombine.high %v6374, %v6382
        %v6412 = vunpack.c.l.s4 1983009808
        %v6413 = vunpack.c.0.s8 %v6412
        %v6414 = vlaneseq
        %v6415 = vshrl.u32 %v6414, 7
        %v6416 = vsub.s32 %v6413, %v6415
        %v6417 = vrot.slane %v6409, %v6416
        %v6419 = vunpack.c.l.s4 1983009808
        %v6420 = vunpack.c.0.s8 %v6419
        %v6421 = vlaneseq
        %v6422 = vshrl.u32 %v6421, 7
        %v6423 = vsub.s32 %v6420, %v6422
        %v6424 = vrot.slane %v6410, %v6423
        %v6425 = vcombine.low %v6401, %v6417
        %v6426 = vcombine.high %v6401, %v6417
        %v6428 = vunpack.c.l.s4 1934713408
        %v6429 = vunpack.c.0.s8 %v6428
        %v6430 = vlaneseq
        %v6431 = vshrl.u32 %v6430, 7
        %v6432 = vsub.s32 %v6429, %v6431
        %v6433 = vrot.slane %v6425, %v6432
        %v6435 = vunpack.c.l.s4 1934713408
        %v6436 = vunpack.c.0.s8 %v6435
        %v6437 = vlaneseq
        %v6438 = vshrl.u32 %v6437, 7
        %v6439 = vsub.s32 %v6436, %v6438
        %v6440 = vrot.slane %v6426, %v6439
        %v6441 = vcombine.low %v6408, %v6424
        %v6442 = vcombine.high %v6408, %v6424
        %v6444 = vunpack.c.l.s4 1934713408
        %v6445 = vunpack.c.0.s8 %v6444
        %v6446 = vlaneseq
        %v6447 = vshrl.u32 %v6446, 7
        %v6448 = vsub.s32 %v6445, %v6447
        %v6449 = vrot.slane %v6441, %v6448
        %v6451 = vunpack.c.l.s4 1934713408
        %v6452 = vunpack.c.0.s8 %v6451
        %v6453 = vlaneseq
        %v6454 = vshrl.u32 %v6453, 7
        %v6455 = vsub.s32 %v6452, %v6454
        %v6456 = vrot.slane %v6442, %v6455
        %v6457 = vcombine.high %v6433, 0.0
        %v6458 = vcombine.high %v6440, 0.0
        %v6459 = vcombine.high %v6449, 0.0
        %v6460 = vcombine.high %v6456, 0.0
        %v6461 = vcombine.low %v6372, %v6380
        %v6462 = vcombine.high %v6372, %v6380
        %v6464 = vunpack.c.l.s4 1983009808
        %v6465 = vunpack.c.0.s8 %v6464
        %v6466 = vlaneseq
        %v6467 = vshrl.u32 %v6466, 7
        %v6468 = vsub.s32 %v6465, %v6467
        %v6469 = vrot.slane %v6461, %v6468
        %v6471 = vunpack.c.l.s4 1983009808
        %v6472 = vunpack.c.0.s8 %v6471
        %v6473 = vlaneseq
        %v6474 = vshrl.u32 %v6473, 7
        %v6475 = vsub.s32 %v6472, %v6474
        %v6476 = vrot.slane %v6462, %v6475
        %v6477 = vcombine.low %v6376, %v6384
        %v6478 = vcombine.high %v6376, %v6384
        %v6480 = vunpack.c.l.s4 1983009808
        %v6481 = vunpack.c.0.s8 %v6480
        %v6482 = vlaneseq
        %v6483 = vshrl.u32 %v6482, 7
        %v6484 = vsub.s32 %v6481, %v6483
        %v6485 = vrot.slane %v6477, %v6484
        %v6487 = vunpack.c.l.s4 1983009808
        %v6488 = vunpack.c.0.s8 %v6487
        %v6489 = vlaneseq
        %v6490 = vshrl.u32 %v6489, 7
        %v6491 = vsub.s32 %v6488, %v6490
        %v6492 = vrot.slane %v6478, %v6491
        %v6493 = vcombine.low %v6469, %v6485
        %v6494 = vcombine.high %v6469, %v6485
        %v6496 = vunpack.c.l.s4 1934713408
        %v6497 = vunpack.c.0.s8 %v6496
        %v6498 = vlaneseq
        %v6499 = vshrl.u32 %v6498, 7
        %v6500 = vsub.s32 %v6497, %v6499
        %v6501 = vrot.slane %v6493, %v6500
        %v6503 = vunpack.c.l.s4 1934713408
        %v6504 = vunpack.c.0.s8 %v6503
        %v6505 = vlaneseq
        %v6506 = vshrl.u32 %v6505, 7
        %v6507 = vsub.s32 %v6504, %v6506
        %v6508 = vrot.slane %v6494, %v6507
        %v6509 = vcombine.low %v6476, %v6492
        %v6510 = vcombine.high %v6476, %v6492
        %v6512 = vunpack.c.l.s4 1934713408
        %v6513 = vunpack.c.0.s8 %v6512
        %v6514 = vlaneseq
        %v6515 = vshrl.u32 %v6514, 7
        %v6516 = vsub.s32 %v6513, %v6515
        %v6517 = vrot.slane %v6509, %v6516
        %v6519 = vunpack.c.l.s4 1934713408
        %v6520 = vunpack.c.0.s8 %v6519
        %v6521 = vlaneseq
        %v6522 = vshrl.u32 %v6521, 7
        %v6523 = vsub.s32 %v6520, %v6522
        %v6524 = vrot.slane %v6510, %v6523
        %v6525 = vcombine.high %v6501, 0.0
        %v6526 = vcombine.high %v6508, 0.0
        %v6527 = vcombine.high %v6517, 0.0
        %v6528 = vcombine.high %v6524, 0.0
        %6530 = vrot.lane.b32.xlu0 %v6457, 16
        %v6531 = vpop.permute.xlu0 %6530
        %6534 = vrot.lane.b32.xlu0 %v6440, 32
        %v6535 = vpop.permute.xlu0 %6534
        %6538 = vrot.lane.b32.xlu0 %v6458, 48
        %v6539 = vpop.permute.xlu0 %6538
        %6542 = vrot.lane.b32.xlu0 %v6449, 64
        %v6543 = vpop.permute.xlu0 %6542
        %6546 = vrot.lane.b32.xlu0 %v6459, 80
        %v6547 = vpop.permute.xlu0 %6546
        %6550 = vrot.lane.b32.xlu0 %v6456, 96
        %v6551 = vpop.permute.xlu0 %6550
        %6554 = vrot.lane.b32.xlu0 %v6460, 112
        %v6555 = vpop.permute.xlu0 %6554
        %6558 = vrot.lane.b32.xlu0 %v6525, 16
        %v6559 = vpop.permute.xlu0 %6558
        %6562 = vrot.lane.b32.xlu0 %v6508, 32
        %v6563 = vpop.permute.xlu0 %6562
        %6566 = vrot.lane.b32.xlu0 %v6526, 48
        %v6567 = vpop.permute.xlu0 %6566
        %6570 = vrot.lane.b32.xlu0 %v6517, 64
        %v6571 = vpop.permute.xlu0 %6570
        %6574 = vrot.lane.b32.xlu0 %v6527, 80
        %v6575 = vpop.permute.xlu0 %6574
        %6578 = vrot.lane.b32.xlu0 %v6524, 96
        %v6579 = vpop.permute.xlu0 %6578
        %6582 = vrot.lane.b32.xlu0 %v6528, 112
        %v6583 = vpop.permute.xlu0 %6582
        %v6585 = vsel %vm825, %v6433, %v6531
        %v6586 = vsel %vm827, %v6585, %v6535
        %v6587 = vsel %vm829, %v6586, %v6539
        %v6588 = vsel %vm831, %v6587, %v6543
        %v6589 = vsel %vm833, %v6588, %v6547
        %v6590 = vsel %vm835, %v6589, %v6551
        %v6591 = vsel %vm837, %v6590, %v6555
        %v6592 = vsel %vm825, %v6501, %v6559
        %v6593 = vsel %vm827, %v6592, %v6563
        %v6594 = vsel %vm829, %v6593, %v6567
        %v6595 = vsel %vm831, %v6594, %v6571
        %v6596 = vsel %vm833, %v6595, %v6575
        %v6597 = vsel %vm835, %v6596, %v6579
        %v6598 = vsel %vm837, %v6597, %v6583
        %s6599 = scalar_lea.vmem %s3, 32
        %v6600 = vld [vmem:[%s6599] sm:$0xf]
        %v6602 = vsel %vm1087, %v6600, 0
        %v6605 = vsel %vm1091, %v6591, 0
        %v6608 = vsel %vm1091, %v6598, 0
        %6610 = vmatprep.subr.mxu0 0.0
        %6611 = vmatpush1.msra.mxu0 0.0
        %6612 = vmatprep.subr.mxu0 0.0
        %6613 = vmatpush1.msra.mxu0 0.0
        %6614 = vmatprep.subr.mxu0 0.0
        %6615 = vmatpush1.msra.mxu0 0.0
        %6616 = vmatprep.subr.mxu0 0.0
        %6617 = vmatpush1.msra.mxu0 0.0
        %6618 = vmatprep.subr.mxu0 0.0
        %6619 = vmatpush1.msra.mxu0 0.0
        %6620 = vmatprep.subr.mxu0 0.0
        %6621 = vmatpush1.msra.mxu0 0.0
        %6622 = vmatprep.subr.mxu0 0.0
        %6623 = vmatpush1.msra.mxu0 0.0
        %6624 = vmatprep.subr.mxu0 0.0
        %6625 = vmatpush1.msra.mxu0 0.0
        %6626 = vmatprep.subr.mxu0 0.0
        %6627 = vmatpush1.msra.mxu0 0.0
        %6628 = vmatprep.subr.mxu0 0.0
        %6629 = vmatpush1.msra.mxu0 0.0
        %6630 = vmatprep.subr.mxu0 0.0
        %6631 = vmatpush1.msra.mxu0 0.0
        %6632 = vmatprep.subr.mxu0 0.0
        %6633 = vmatpush1.msra.mxu0 0.0
        %6634 = vmatprep.subr.mxu0 0.0
        %6635 = vmatpush1.msra.mxu0 0.0
        %6636 = vmatprep.subr.mxu0 0.0
        %6637 = vmatpush1.msra.mxu0 0.0
        %6638 = vmatprep.subr.mxu0 0.0
        %6639 = vmatpush1.msra.mxu0 0.0
        %6640 = vmatprep.subr.mxu0 %v6608
        %6641 = vmatpush1.msra.mxu0 %v6605
        %6642 = vmatprep.subr.mxu0 0.0
        %6643 = vmatpush2.msra.mxu0 0.0
        %6644 = vmatprep.subr.mxu0 0.0
        %6645 = vmatpush2.msra.mxu0 0.0
        %6646 = vmatprep.subr.mxu0 0.0
        %6647 = vmatpush2.msra.mxu0 0.0
        %6648 = vmatprep.subr.mxu0 0.0
        %6649 = vmatpush2.msra.mxu0 0.0
        %6650 = vmatprep.subr.mxu0 0.0
        %6651 = vmatpush2.msra.mxu0 0.0
        %6652 = vmatprep.subr.mxu0 0.0
        %6653 = vmatpush2.msra.mxu0 0.0
        %6654 = vmatprep.subr.mxu0 0.0
        %6655 = vmatpush2.msra.mxu0 0.0
        %6656 = vmatprep.subr.mxu0 0.0
        %6657 = vmatpush2.msra.mxu0 0.0
        %6658 = vmatprep.subr.mxu0 0.0
        %6659 = vmatpush2.msra.mxu0 0.0
        %6660 = vmatprep.subr.mxu0 0.0
        %6661 = vmatpush2.msra.mxu0 0.0
        %6662 = vmatprep.subr.mxu0 0.0
        %6663 = vmatpush2.msra.mxu0 0.0
        %6664 = vmatprep.subr.mxu0 0.0
        %6665 = vmatpush2.msra.mxu0 0.0
        %6666 = vmatprep.subr.mxu0 0.0
        %6667 = vmatpush2.msra.mxu0 0.0
        %6668 = vmatprep.subr.mxu0 0.0
        %6669 = vmatpush2.msra.mxu0 0.0
        %6670 = vmatprep.subr.mxu0 0.0
        %6671 = vmatpush2.msra.mxu0 0.0
        %6672 = vmatprep.subr.mxu0 0.0
        %6673 = vmatpush2.msra.mxu0 0.0
        %6674 = vmatprep.mubr.f32.mxu0 0.0
        %6675 = vmatmul.mubr.f32.gmra.mxu0 %v6602
        %v6676 = vpop.f32.mrf.mxu0
        %v6677 = vadd.f32 0.0, %v6676
        %v6678 = vpop.f32.mrf.mxu0
        %v6679 = vadd.f32 0.0, %v6678
        %6680 = vdwg.mxu0
        %v6681 = vadd.f32 %v6367, %v6677
        %v6682 = vadd.f32 %v6368, %v6679
        %v6683 = vld [vmem:[%s4] sm:$0xf]
        %6685 = vset.pattern.permute.xlu0 0
        %6686 = vperm.xlu0 %6685, %v6683
        %v6687 = vpop.permute.xlu0 %6686
        %v6689 = vadd.f32 %v6681, %v6687
        %v6690 = vadd.f32 %v6682, %v6687
        %v6691 = vsel %vm1091, %v6689, 0.0
        %v6692 = vsel %vm1091, %v6690, 0.0
        %v6693 = vadd.f32 %v6691, %v6692
        %6694 = vadd.xlane.f32.xlu0 %v6693
        %v6695 = vpop.xlane.xlu0 %6694
        %v6696 = vmul.f32 %v6695, 0.00390625
        %v6697 = vmul.f32 %v6689, %v6689
        %v6698 = vmul.f32 %v6690, %v6690
        %v6699 = vsel %vm1091, %v6697, 0.0
        %v6700 = vsel %vm1091, %v6698, 0.0
        %v6701 = vadd.f32 %v6699, %v6700
        %6702 = vadd.xlane.f32.xlu0 %v6701
        %v6703 = vpop.xlane.xlu0 %6702
        %v6704 = vmul.f32 %v6703, 0.00390625
        %v6705 = vmul.f32 %v6696, %v6696
        %v6706 = vsub.f32 %v6704, %v6705
        %v6707 = vmax.f32 %v6706, 0.0
        %v6708 = vsub.f32 %v6689, %v6696
        %v6709 = vsub.f32 %v6690, %v6696
        %v6710 = vadd.f32 %v6707, 1e-05
        %v6711 = vrsqrt.pop %v6710
        %v6712 = vmul.f32 %v6708, %v6711
        %v6713 = vmul.f32 %v6709, %v6711
        %v6716 = vcombine.low %v6712, %v6713
        %v6718 = vadd.f32 %v223, %v6716
        %6719 = vst [vmem:[%s217] sm:$0xff] %v6718
        %s6720 = sand.u32 %s137, 1
        %s6721 = scalar_lea.sflag [#allocation3], %s6720
        %s6722 = sand.u32 %s137, 1
        %s6723 = smul.addr %s6722, 8
        %s6724 = scalar_lea.vmem [#allocation2], %s6723
        // Predicated region
        $region41: #{tpu_custom_call.1} parent=39 // pred_check
          %p6725 = pneg %p147
        $region42: #{tpu_custom_call.1} parent=39 // pred_check_branch
          %6727 = sbr.rel (%p6725) target = $region44
        $region43: #{tpu_custom_call.1} parent=39 // pred_region
          %s6729 = ssub.s32 128, 128
          %6730 = vsyncadd %s6721, %s6729
          %s6731 = smul.addr %s19, 2
          %s6732 = smul.addr %s6731, 64
          %s6733 = scalar_lea.hbm %s5, %s6732
          %s6735 = sshll.u32 %s6724, 4
          %s6736 = int_to_ptr.vmem [resolvable:$true] %s6735
          %6738 = dma.vmem_to_hbm [thread:$0]  %s6736, 128, %s6733, %s6721
        $region44: #{tpu_custom_call.1} parent=39 // pred_fallthru
          _
      $region40: #{tpu_custom_call.1} parent=5 // pred_fallthru
        _
      %p6739 = scmp.le.s32.totalorder 2, %s14
      // Predicated region
      $region45: #{tpu_custom_call.1} parent=5 // pred_check
        %p6740 = pneg %p6739
      $region46: #{tpu_custom_call.1} parent=5 // pred_check_branch
        %6742 = sbr.rel (%p6740) target = $region48
      $region47: #{tpu_custom_call.1} parent=5 // pred_region
        %s6743 = ssub.s32 %s14, 2
        // Predicated region
        $region49: #{tpu_custom_call.1} parent=47 // pred_check
          %p6744 = pneg %p153
        $region50: #{tpu_custom_call.1} parent=47 // pred_check_branch
          %6746 = sbr.rel (%p6744) target = $region52
        $region51: #{tpu_custom_call.1} parent=47 // pred_region
          %s6747 = sand.u32 %s138, 1
          %s6748 = scalar_lea.sflag [#allocation3], %s6747
          %s6749 = sand.u32 %s138, 1
          %s6750 = smul.addr %s6749, 8
          %s6751 = scalar_lea.vmem [#allocation2], %s6750
          %6752 = dma.done %s6748, 128
        $region52: #{tpu_custom_call.1} parent=47 // pred_fallthru
          _
      $region48: #{tpu_custom_call.1} parent=5 // pred_fallthru
        _
    $region6: #{tpu_custom_call.1} parent=1 // loop_footer
      %s18 = sadd.s32 1, %s14
    $region7: #{tpu_custom_call.1} parent=1 // loop_footer_branch
      %13 = sbr.rel target = $region3
    $region8: #{tpu_custom_call.1} parent=1 // loop_exit
      _
    %6753 = vsyncpa [#allocation3], 1
    %s6754 = scalar_lea.sflag [#allocation3], 1
    %6755 = vsyncpa %s6754, 1

</llo_original>
